<compile_context>
chip_gen: v5e
topology: v5e:2x2
jax: 0.10.0
libtpu: 0.0.40
codegen_flags: <defaults>
</compile_context>

<pallas_src>
import functools

import jax
import jax.numpy as jnp
import numpy as np
from jax.experimental import pallas as pl
from jax.experimental.pallas import tpu as pltpu


def _rup(n, m):
    return ((n + m - 1) // m) * m


# ----------------------------------------------------------------------------
# In-kernel helpers
# ----------------------------------------------------------------------------
def _bf16(x):
    return x.astype(jnp.bfloat16)


def _ln(x, g, b, inv_d):
    """LayerNorm over the real (un-padded) feature width 1/inv_d.

    Padded lanes of x / g / b are zero, so the plain sums only see real lanes;
    the single-pass E[x^2]-mu^2 form keeps padded lanes zero in the output.
    """
    mu = jnp.sum(x, axis=-1, keepdims=True) * inv_d
    ex2 = jnp.sum(x * x, axis=-1, keepdims=True) * inv_d
    var = ex2 - mu * mu
    return (x - mu) * jax.lax.rsqrt(var + 1e-5) * g + b


# ----------------------------------------------------------------------------
# Fused kernel: grid = (stream, layer)
# ----------------------------------------------------------------------------
def _fused_kernel(
    ln_inv_ref, x_ref, tsin_ref, pos_ref, mask_ref,
    in_w_ref, in_b_ref, tw1_ref, tb1_ref, tw2_ref, tb2_ref,
    ln1_g_ref, ln1_b_ref, qkv_w_ref, qkv_b_ref, proj_w_ref, proj_b_ref,
    ln2_g_ref, ln2_b_ref, ff1_w_ref, ff1_b_ref, ff2_w_ref, ff2_b_ref,
    lnf_g_ref, lnf_b_ref, out_w_ref, out_b_ref,
    o_ref, h_ref,
    *, num_heads, dm_p, dh_p,
):
    layer = pl.program_id(1)
    inv_d = ln_inv_ref[0]                       # (1, 1) f32 = 1 / real latent dim

    # ---- layer 0: input proj + positional emb + timestep conditioning ------
    @pl.when(layer == 0)
    def _():
        h0 = jnp.dot(_bf16(x_ref[0]), in_w_ref[0],
                     preferred_element_type=jnp.float32)
        h0 = h0 + in_b_ref[0] + pos_ref[0].astype(jnp.float32)
        t = jnp.dot(_bf16(tsin_ref[0]), tw1_ref[0],
                    preferred_element_type=jnp.float32) + tb1_ref[0]
        t = t * jax.nn.sigmoid(t)               # SiLU
        t = jnp.dot(_bf16(t), tw2_ref[0],
                    preferred_element_type=jnp.float32) + tb2_ref[0]
        h_ref[...] = h0 + t

    h = h_ref[...]

    # ---- pre-LN multi-head self-attention (per-head accumulation) ----------
    hn = _ln(h, ln1_g_ref[0], ln1_b_ref[0], inv_d)
    qkv = jnp.dot(_bf16(hn), qkv_w_ref[0],
                  preferred_element_type=jnp.float32) + qkv_b_ref[0]
    mask = mask_ref[0]
    proj_w = proj_w_ref[0]
    acc = None
    for hh in range(num_heads):                 # tiny static head count
        q = qkv[:, hh * dh_p:(hh + 1) * dh_p]
        k = qkv[:, dm_p + hh * dh_p: dm_p + (hh + 1) * dh_p]
        v = qkv[:, 2 * dm_p + hh * dh_p: 2 * dm_p + (hh + 1) * dh_p]
        # 1/sqrt(dh) is folded into the packed Q weights/bias.
        s = jax.lax.dot_general(_bf16(q), _bf16(k), (((1,), (1,)), ((), ())),
                                preferred_element_type=jnp.float32)
        s = s + mask                            # blocks cross-batch / padded keys
        s = s - jnp.max(s, axis=-1, keepdims=True)
        p = jnp.exp(s)
        p = p * pl.reciprocal(jnp.sum(p, axis=-1, keepdims=True), approx=True)
        hv = jnp.dot(_bf16(p), _bf16(v), preferred_element_type=jnp.float32)
        c = jnp.dot(_bf16(hv), proj_w[hh * dh_p:(hh + 1) * dh_p, :],
                    preferred_element_type=jnp.float32)
        acc = c if acc is None else acc + c
    h = h + acc + proj_b_ref[0]

    # ---- pre-LN feed-forward ------------------------------------------------
    hn = _ln(h, ln2_g_ref[0], ln2_b_ref[0], inv_d)
    f = jnp.dot(_bf16(hn), ff1_w_ref[0],
                preferred_element_type=jnp.float32) + ff1_b_ref[0]
    f = jax.nn.gelu(f, approximate=True)
    f = jnp.dot(_bf16(f), ff2_w_ref[0],
                preferred_element_type=jnp.float32) + ff2_b_ref[0]
    h_ref[...] = h + f

    # ---- last layer: final LN + output projection ---------------------------
    @pl.when(layer == pl.num_programs(1) - 1)
    def _():
        hn_f = _ln(h_ref[...], lnf_g_ref[0], lnf_b_ref[0], inv_d)
        o_ref[0] = jnp.dot(_bf16(hn_f), out_w_ref[0],
                           preferred_element_type=jnp.float32) + out_b_ref[0]


# ----------------------------------------------------------------------------
# Wrapper-side data prep
# ----------------------------------------------------------------------------
def timestep_embedding(timesteps, dim, max_period=10000.0):
    half = dim // 2
    freqs = jnp.exp(-jnp.log(max_period) * jnp.arange(half, dtype=jnp.float32) / half)
    args = timesteps.astype(jnp.float32)[:, None] * freqs[None, :]
    # TODO(synk): verify [cos, sin] ordering against the reference repo.
    return jnp.concatenate([jnp.cos(args), jnp.sin(args)], axis=-1)


def _prep_stream(tokens, timesteps, pos_table, dm_real, dm_p, pin_p, M_p, Lp):
    """Fold batch into rows (row r = b*Lp + l), pad, and build the attn mask."""
    B, L, F = tokens.shape
    rows = B * Lp

    x_rows = jnp.pad(tokens.astype(jnp.float32),
                     ((0, 0), (0, Lp - L), (0, pin_p - F))).reshape(rows, pin_p)
    x_rows = jnp.pad(x_rows, ((0, M_p - rows), (0, 0)))

    ts = timestep_embedding(timesteps, dm_real)
    ts = jnp.pad(ts, ((0, 0), (0, dm_p - dm_real)))
    ts_rows = jnp.repeat(ts, Lp, axis=0)                       # per-row timestep
    ts_rows = jnp.pad(ts_rows, ((0, M_p - rows), (0, 0)))

    pos = jnp.pad(pos_table[:L], ((0, Lp - L), (0, 0)))        # bf16
    pos_rows = jnp.tile(pos, (B, 1))
    pos_rows = jnp.pad(pos_rows, ((0, M_p - rows), (0, 0)))

    r = jnp.arange(M_p)
    valid_key = (r < rows) & ((r % Lp) < L)
    same_batch = (r[:, None] // Lp) == (r[None, :] // Lp)
    mask = jnp.where(same_batch & valid_key[None, :], 0.0, -1e30)
    return x_rows, ts_rows, pos_rows, mask.astype(jnp.float32)


def motion_transformer_forward(x, timesteps, packed, *, meta):
    """x: (B, T, J, D) -> (B, T, J, D). Mirrors MotionTransformer.forward."""
    B, T, J, D = x.shape
    H = meta["num_heads"]
    nl = meta["num_layers"]
    dm_t, dm_s = meta["dm"]
    dm_p = packed["in_w"].shape[2]
    pin_p = packed["in_w"].shape[1]
    pout_p = packed["out_w"].shape[2]
    dh_p = dm_p // H

    Lp_t, Lp_s = _rup(T, 8), _rup(J, 8)
    M_p = max(B * Lp_t, B * Lp_s)

    x_t = x.reshape(B, T, J * D)                                 # temporal stream
    x_s = jnp.transpose(x, (0, 2, 1, 3)).reshape(B, J, T * D)    # spatial stream

    xt, tst, post, mt = _prep_stream(x_t, timesteps, packed["pos"][0],
                                     dm_t, dm_p, pin_p, M_p, Lp_t)
    xs, tss, poss, ms = _prep_stream(x_s, timesteps, packed["pos"][1],
                                     dm_s, dm_p, pin_p, M_p, Lp_s)

    x_in = jnp.stack([xt, xs])
    ts_in = jnp.stack([tst, tss])
    pos_in = jnp.stack([post, poss])
    mask_in = jnp.stack([mt, ms])

    cst = lambda s, l: (s, 0, 0)                 # branch-global: constant per stream
    per_l = lambda s, l: (s * nl + l, 0, 0)      # per-layer: merged (stream, layer) axis

    def spec(arr, imap):
        return pl.BlockSpec((1,) + tuple(arr.shape[1:]), imap)

    cst_ops = [packed["ln_inv"], x_in, ts_in, pos_in, mask_in,
               packed["in_w"], packed["in_b"], packed["tw1"], packed["tb1"],
               packed["tw2"], packed["tb2"]]
    lyr_ops = [packed[k] for k in ("ln1_g", "ln1_b", "qkv_w", "qkv_b",
                                   "proj_w", "proj_b", "ln2_g", "ln2_b",
                                   "ff1_w", "ff1_b", "ff2_w", "ff2_b")]
    fin_ops = [packed[k] for k in ("lnf_g", "lnf_b", "out_w", "out_b")]
    operands = cst_ops + lyr_ops + fin_ops
    in_specs = ([spec(a, cst) for a in cst_ops]
                + [spec(a, per_l) for a in lyr_ops]
                + [spec(a, cst) for a in fin_ops])

    out = pl.pallas_call(
        functools.partial(_fused_kernel, num_heads=H, dm_p=dm_p, dh_p=dh_p),
        out_shape=jax.ShapeDtypeStruct((2, M_p, pout_p), jnp.float32),
        grid_spec=pltpu.PrefetchScalarGridSpec(
            num_scalar_prefetch=0,
            grid=(2, nl),
            in_specs=in_specs,
            out_specs=pl.BlockSpec((1, M_p, pout_p), cst),
            scratch_shapes=[pltpu.VMEM((M_p, dm_p), jnp.float32)],
        ),
        compiler_params=pltpu.CompilerParams(
            dimension_semantics=("parallel", "arbitrary")),
    )(*operands)

    t_out = out[0, :B * Lp_t].reshape(B, Lp_t, pout_p)[:, :T, :J * D]
    t_out = t_out.reshape(B, T, J, D)
    s_out = out[1, :B * Lp_s].reshape(B, Lp_s, pout_p)[:, :J, :T * D]
    s_out = jnp.transpose(s_out.reshape(B, J, T, D), (0, 2, 1, 3))
    return t_out + s_out


# ----------------------------------------------------------------------------
# Parameter init (PyTorch-like shapes) and compact / head-packed packing
# ----------------------------------------------------------------------------
def _init_linear(key, fan_in, fan_out):
    kw, _ = jax.random.split(key)
    w = jax.random.normal(kw, (fan_in, fan_out), jnp.float32) / jnp.sqrt(float(fan_in))
    b = jnp.zeros((fan_out,), jnp.float32)
    return w, b


def init_branch_params(key, in_feats, max_len, latent_dim, ff_size, num_layers):
    keys = jax.random.split(key, 6 + num_layers)
    p = {}
    p["in_w"], p["in_b"] = _init_linear(keys[0], in_feats, latent_dim)
    p["pos"] = 0.02 * jax.random.normal(keys[1], (max_len, latent_dim), jnp.float32)
    p["tw1"], p["tb1"] = _init_linear(keys[2], latent_dim, 4 * latent_dim)
    p["tw2"], p["tb2"] = _init_linear(keys[3], 4 * latent_dim, latent_dim)
    p["lnf_g"] = jnp.ones((latent_dim,), jnp.float32)
    p["lnf_b"] = jnp.zeros((latent_dim,), jnp.float32)
    p["out_w"], p["out_b"] = _init_linear(keys[4], latent_dim, in_feats)
    layers = []
    for l in range(num_layers):
        lk = jax.random.split(keys[5 + l], 4)
        layer = {
            "ln1_g": jnp.ones((latent_dim,), jnp.float32),
            "ln1_b": jnp.zeros((latent_dim,), jnp.float32),
            "ln2_g": jnp.ones((latent_dim,), jnp.float32),
            "ln2_b": jnp.zeros((latent_dim,), jnp.float32),
        }
        layer["qkv_w"], layer["qkv_b"] = _init_linear(lk[0], latent_dim, 3 * latent_dim)
        layer["proj_w"], layer["proj_b"] = _init_linear(lk[1], latent_dim, latent_dim)
        layer["ff1_w"], layer["ff1_b"] = _init_linear(lk[2], latent_dim, ff_size)
        layer["ff2_w"], layer["ff2_b"] = _init_linear(lk[3], ff_size, latent_dim)
        layers.append(layer)
    p["layers"] = layers
    return p


def pack_motion_params(raw_t, raw_s, *, num_heads):
    """Compact (real-dim) packing, bf16 matrices, stacked per-stream / per-layer
    arrays, head-packed QKV/proj with the 1/sqrt(dh) scale folded into Q."""
    dm_t, dm_s = raw_t["in_w"].shape[1], raw_s["in_w"].shape[1]
    pin_t, pin_s = raw_t["in_w"].shape[0], raw_s["in_w"].shape[0]
    ff = raw_t["layers"][0]["ff1_w"].shape[1]
    nl = len(raw_t["layers"])
    H = num_heads
    assert len(raw_s["layers"]) == nl
    assert raw_s["layers"][0]["ff1_w"].shape[1] == ff
    assert dm_t % H == 0 and dm_s % H == 0

    dm_p = _rup(max(dm_t, dm_s), 8)
    while dm_p % H:
        dm_p += 8
    dh_p = dm_p // H
    pin_p = _rup(max(pin_t, pin_s), 8)
    pout_p = pin_p
    ff_p = _rup(ff, 8)
    tp = 4 * dm_p
    pos_len = max(raw_t["pos"].shape[0], raw_s["pos"].shape[0])

    z = lambda *shape: np.zeros(shape, np.float32)
    P = {
        "ln_inv": z(2, 1, 1),
        "in_w": z(2, pin_p, dm_p), "in_b": z(2, 1, dm_p),
        "pos": z(2, pos_len, dm_p),
        "tw1": z(2, dm_p, tp), "tb1": z(2, 1, tp),
        "tw2": z(2, tp, dm_p), "tb2": z(2, 1, dm_p),
        "ln1_g": z(2 * nl, 1, dm_p), "ln1_b": z(2 * nl, 1, dm_p),
        "qkv_w": z(2 * nl, dm_p, 3 * dm_p), "qkv_b": z(2 * nl, 1, 3 * dm_p),
        "proj_w": z(2 * nl, dm_p, dm_p), "proj_b": z(2 * nl, 1, dm_p),
        "ln2_g": z(2 * nl, 1, dm_p), "ln2_b": z(2 * nl, 1, dm_p),
        "ff1_w": z(2 * nl, dm_p, ff_p), "ff1_b": z(2 * nl, 1, ff_p),
        "ff2_w": z(2 * nl, ff_p, dm_p), "ff2_b": z(2 * nl, 1, dm_p),
        "lnf_g": z(2, 1, dm_p), "lnf_b": z(2, 1, dm_p),
        "out_w": z(2, dm_p, pout_p), "out_b": z(2, 1, pout_p),
    }

    for si, raw in enumerate((raw_t, raw_s)):
        r = jax.tree_util.tree_map(np.asarray, raw)
        dm = r["in_w"].shape[1]
        pin = r["in_w"].shape[0]
        dh = dm // H
        scale = 1.0 / np.sqrt(dh)
        P["ln_inv"][si, 0, 0] = 1.0 / dm
        P["in_w"][si, :pin, :dm] = r["in_w"]
        P["in_b"][si, 0, :dm] = r["in_b"]
        P["pos"][si, :r["pos"].shape[0], :dm] = r["pos"]
        P["tw1"][si, :dm, :4 * dm] = r["tw1"]
        P["tb1"][si, 0, :4 * dm] = r["tb1"]
        P["tw2"][si, :4 * dm, :dm] = r["tw2"]
        P["tb2"][si, 0, :dm] = r["tb2"]
        P["lnf_g"][si, 0, :dm] = r["lnf_g"]
        P["lnf_b"][si, 0, :dm] = r["lnf_b"]
        P["out_w"][si, :dm, :pin] = r["out_w"]
        P["out_b"][si, 0, :pin] = r["out_b"]
        for li, lyr in enumerate(r["layers"]):
            gi = si * nl + li
            P["ln1_g"][gi, 0, :dm] = lyr["ln1_g"]
            P["ln1_b"][gi, 0, :dm] = lyr["ln1_b"]
            P["ln2_g"][gi, 0, :dm] = lyr["ln2_g"]
            P["ln2_b"][gi, 0, :dm] = lyr["ln2_b"]
            P["ff1_w"][gi, :dm, :ff] = lyr["ff1_w"]
            P["ff1_b"][gi, 0, :ff] = lyr["ff1_b"]
            P["ff2_w"][gi, :ff, :dm] = lyr["ff2_w"]
            P["ff2_b"][gi, 0, :dm] = lyr["ff2_b"]
            P["proj_b"][gi, 0, :dm] = lyr["proj_b"]
            wq, wk, wv = (lyr["qkv_w"][:, :dm], lyr["qkv_w"][:, dm:2 * dm],
                          lyr["qkv_w"][:, 2 * dm:])
            bq, bk, bv = (lyr["qkv_b"][:dm], lyr["qkv_b"][dm:2 * dm],
                          lyr["qkv_b"][2 * dm:])
            for h in range(H):
                src = slice(h * dh, (h + 1) * dh)
                qd = slice(h * dh_p, h * dh_p + dh)
                kd = slice(dm_p + h * dh_p, dm_p + h * dh_p + dh)
                vd = slice(2 * dm_p + h * dh_p, 2 * dm_p + h * dh_p + dh)
                P["qkv_w"][gi, :dm, qd] = wq[:, src] * scale    # scale folded into Q
                P["qkv_b"][gi, 0, qd] = bq[src] * scale
                P["qkv_w"][gi, :dm, kd] = wk[:, src]
                P["qkv_b"][gi, 0, kd] = bk[src]
                P["qkv_w"][gi, :dm, vd] = wv[:, src]
                P["qkv_b"][gi, 0, vd] = bv[src]
                P["proj_w"][gi, qd, :dm] = lyr["proj_w"][src, :]

    bf16_keys = {"in_w", "pos", "tw1", "tw2", "qkv_w", "proj_w",
                 "ff1_w", "ff2_w", "out_w"}
    packed = {k: jnp.asarray(v, jnp.bfloat16 if k in bf16_keys else jnp.float32)
              for k, v in P.items()}
    meta = {"num_heads": H, "num_layers": nl, "dm": (dm_t, dm_s)}
    return packed, meta


# ----------------------------------------------------------------------------
# Pure-JAX reference (raw params) for numerical validation
# ----------------------------------------------------------------------------
def _bfr(w):
    return w.astype(jnp.bfloat16).astype(jnp.float32)


def _mm(a, w):
    return jnp.dot(_bfr(a), _bfr(w), preferred_element_type=jnp.float32)


def _ln_ref(x, g, b):
    mu = jnp.mean(x, -1, keepdims=True)
    var = jnp.mean((x - mu) ** 2, -1, keepdims=True)
    return (x - mu) * jax.lax.rsqrt(var + 1e-5) * g + b


def _ref_branch(tokens, timesteps, raw, num_heads):
    dm = raw["in_w"].shape[1]
    B, L, F = tokens.shape
    h = _mm(tokens, raw["in_w"]) + raw["in_b"]
    h = h + _bfr(raw["pos"][:L])[None, :, :]
    ts = timestep_embedding(timesteps, dm)
    t = _mm(ts, raw["tw1"]) + raw["tb1"]
    t = t * jax.nn.sigmoid(t)
    t = _mm(t, raw["tw2"]) + raw["tb2"]
    h = h + t[:, None, :]
    dh = dm // num_heads
    scale = 1.0 / (dh ** 0.5)
    for lyr in raw["layers"]:
        hn = _ln_ref(h, lyr["ln1_g"], lyr["ln1_b"])
        qkv = _mm(hn, lyr["qkv_w"]) + lyr["qkv_b"]
        q, k, v = qkv[..., :dm], qkv[..., dm:2 * dm], qkv[..., 2 * dm:]
        outs = []
        for hh in range(num_heads):
            sl = slice(hh * dh, (hh + 1) * dh)
            s = jnp.einsum("bqd,bkd->bqk", _bfr(q[..., sl]), _bfr(k[..., sl])) * scale
            p = jax.nn.softmax(s, axis=-1)
            outs.append(jnp.einsum("bqk,bkd->bqd", _bfr(p), _bfr(v[..., sl])))
        att = jnp.concatenate(outs, -1)
        h = h + _mm(att, lyr["proj_w"]) + lyr["proj_b"]
        hn = _ln_ref(h, lyr["ln2_g"], lyr["ln2_b"])
        f = _mm(hn, lyr["ff1_w"]) + lyr["ff1_b"]
        f = jax.nn.gelu(f, approximate=True)
        h = h + _mm(f, lyr["ff2_w"]) + lyr["ff2_b"]
    hn = _ln_ref(h, raw["lnf_g"], raw["lnf_b"])
    return _mm(hn, raw["out_w"]) + raw["out_b"]


def motion_transformer_reference(x, timesteps, raw_t, raw_s, num_heads):
    B, T, J, D = x.shape
    x_t = x.reshape(B, T, J * D)
    x_s = jnp.transpose(x, (0, 2, 1, 3)).reshape(B, J, T * D)
    t_out = _ref_branch(x_t, timesteps, raw_t, num_heads).reshape(B, T, J, D)
    s_out = _ref_branch(x_s, timesteps, raw_s, num_heads).reshape(B, J, T, D)
    return t_out + jnp.transpose(s_out, (0, 2, 1, 3))


# ----------------------------------------------------------------------------
if __name__ == "__main__":
    # Small-shape configuration consistent with the module's constructor.
    B = 2
    input_feats = 3          # D
    joint_num = 4            # J
    sequence_len = 8         # T fed to forward
    num_frames = 16          # max temporal positional-embedding length
    t_latent_dim = 32
    s_latent_dim = 16
    ff_size = 64
    num_layers = 2
    num_heads = 4

    key = jax.random.PRNGKey(0)
    k_x, k_t, k_s = jax.random.split(key, 3)

    raw_t = init_branch_params(
        k_t, in_feats=input_feats * joint_num, max_len=num_frames,
        latent_dim=t_latent_dim, ff_size=ff_size, num_layers=num_layers)
    raw_s = init_branch_params(
        k_s, in_feats=input_feats * sequence_len, max_len=joint_num,
        latent_dim=s_latent_dim, ff_size=ff_size, num_layers=num_layers)
    packed, meta = pack_motion_params(raw_t, raw_s, num_heads=num_heads)

    x = jax.random.normal(k_x, (B, sequence_len, joint_num, input_feats), jnp.float32)
    timesteps = jnp.array([3, 7], dtype=jnp.int32)

    fwd = jax.jit(functools.partial(motion_transformer_forward, meta=meta))
    out = fwd(x, timesteps, packed)
    jax.block_until_ready(out)

    ref = motion_transformer_reference(x, timesteps, raw_t, raw_s, num_heads)
    err = float(jnp.max(jnp.abs(out - ref)))

    assert out.shape == (B, sequence_len, joint_num, input_feats)
    assert bool(jnp.all(jnp.isfinite(out)))
    assert err < 5e-2, f"max |kernel - ref| = {err}"
    print("KERNEL_OK")
</pallas_src>

<mosaic_0001>
module attributes {stable_mosaic.version = 11 : i64} {
  func.func @_fused_kernel(%arg0: i32, %arg1: i32, %arg2: memref<1x1x1xf32, #tpu.memory_space<vmem>>, %arg3: memref<1x16x24xf32, #tpu.memory_space<vmem>>, %arg4: memref<1x16x32xf32, #tpu.memory_space<vmem>>, %arg5: memref<1x16x32xbf16, #tpu.memory_space<vmem>>, %arg6: memref<1x16x16xf32, #tpu.memory_space<vmem>>, %arg7: memref<1x24x32xbf16, #tpu.memory_space<vmem>>, %arg8: memref<1x1x32xf32, #tpu.memory_space<vmem>>, %arg9: memref<1x32x128xbf16, #tpu.memory_space<vmem>>, %arg10: memref<1x1x128xf32, #tpu.memory_space<vmem>>, %arg11: memref<1x128x32xbf16, #tpu.memory_space<vmem>>, %arg12: memref<1x1x32xf32, #tpu.memory_space<vmem>>, %arg13: memref<1x1x32xf32, #tpu.memory_space<vmem>>, %arg14: memref<1x1x32xf32, #tpu.memory_space<vmem>>, %arg15: memref<1x32x96xbf16, #tpu.memory_space<vmem>>, %arg16: memref<1x1x96xf32, #tpu.memory_space<vmem>>, %arg17: memref<1x32x32xbf16, #tpu.memory_space<vmem>>, %arg18: memref<1x1x32xf32, #tpu.memory_space<vmem>>, %arg19: memref<1x1x32xf32, #tpu.memory_space<vmem>>, %arg20: memref<1x1x32xf32, #tpu.memory_space<vmem>>, %arg21: memref<1x32x64xbf16, #tpu.memory_space<vmem>>, %arg22: memref<1x1x64xf32, #tpu.memory_space<vmem>>, %arg23: memref<1x64x32xbf16, #tpu.memory_space<vmem>>, %arg24: memref<1x1x32xf32, #tpu.memory_space<vmem>>, %arg25: memref<1x1x32xf32, #tpu.memory_space<vmem>>, %arg26: memref<1x1x32xf32, #tpu.memory_space<vmem>>, %arg27: memref<1x32x24xbf16, #tpu.memory_space<vmem>>, %arg28: memref<1x1x24xf32, #tpu.memory_space<vmem>>, %arg29: memref<1x16x24xf32, #tpu.memory_space<vmem>>, %arg30: memref<16x32xf32, #tpu.memory_space<vmem>>) attributes {dimension_semantics = [#tpu.dimension_semantics<parallel>, #tpu.dimension_semantics<arbitrary>], iteration_bounds = array<i64: 2, 2>, scalar_prefetch = 0 : i64, scratch_operands = 1 : i64, tpu.core_type = #tpu.core_type<tc>, window_params = [{transform_indices = @transform_0, window_bounds = array<i64: 1, 1, 1>}, {transform_indices = @transform_1, window_bounds = array<i64: 1, 16, 24>}, {transform_indices = @transform_2, window_bounds = array<i64: 1, 16, 32>}, {transform_indices = @transform_3, window_bounds = array<i64: 1, 16, 32>}, {transform_indices = @transform_4, window_bounds = array<i64: 1, 16, 16>}, {transform_indices = @transform_5, window_bounds = array<i64: 1, 24, 32>}, {transform_indices = @transform_6, window_bounds = array<i64: 1, 1, 32>}, {transform_indices = @transform_7, window_bounds = array<i64: 1, 32, 128>}, {transform_indices = @transform_8, window_bounds = array<i64: 1, 1, 128>}, {transform_indices = @transform_9, window_bounds = array<i64: 1, 128, 32>}, {transform_indices = @transform_10, window_bounds = array<i64: 1, 1, 32>}, {transform_indices = @transform_11, window_bounds = array<i64: 1, 1, 32>}, {transform_indices = @transform_12, window_bounds = array<i64: 1, 1, 32>}, {transform_indices = @transform_13, window_bounds = array<i64: 1, 32, 96>}, {transform_indices = @transform_14, window_bounds = array<i64: 1, 1, 96>}, {transform_indices = @transform_15, window_bounds = array<i64: 1, 32, 32>}, {transform_indices = @transform_16, window_bounds = array<i64: 1, 1, 32>}, {transform_indices = @transform_17, window_bounds = array<i64: 1, 1, 32>}, {transform_indices = @transform_18, window_bounds = array<i64: 1, 1, 32>}, {transform_indices = @transform_19, window_bounds = array<i64: 1, 32, 64>}, {transform_indices = @transform_20, window_bounds = array<i64: 1, 1, 64>}, {transform_indices = @transform_21, window_bounds = array<i64: 1, 64, 32>}, {transform_indices = @transform_22, window_bounds = array<i64: 1, 1, 32>}, {transform_indices = @transform_23, window_bounds = array<i64: 1, 1, 32>}, {transform_indices = @transform_24, window_bounds = array<i64: 1, 1, 32>}, {transform_indices = @transform_25, window_bounds = array<i64: 1, 32, 24>}, {transform_indices = @transform_26, window_bounds = array<i64: 1, 1, 24>}, {transform_indices = @transform_27, window_bounds = array<i64: 1, 16, 24>}]} {
    %c0 = arith.constant 0 : index
    %c0_0 = arith.constant 0 : index
    %c0_1 = arith.constant 0 : index
    %0 = vector.load %arg2[%c0, %c0_0, %c0_1] : memref<1x1x1xf32, #tpu.memory_space<vmem>>, vector<1x1x1xf32>
    %1 = vector.shape_cast %0 : vector<1x1x1xf32> to vector<1x1xf32>
    %c0_i32 = arith.constant 0 : i32
    %2 = arith.cmpi eq, %arg1, %c0_i32 : i32
    %3 = arith.extui %2 : i1 to i32
    %c0_i32_2 = arith.constant 0 : i32
    %4 = arith.cmpi ne, %3, %c0_i32_2 : i32
    scf.if %4 {
      %c0_79 = arith.constant 0 : index
      %c0_80 = arith.constant 0 : index
      %c0_81 = arith.constant 0 : index
      %204 = vector.load %arg3[%c0_79, %c0_80, %c0_81] : memref<1x16x24xf32, #tpu.memory_space<vmem>>, vector<1x16x24xf32>
      %205 = vector.shape_cast %204 : vector<1x16x24xf32> to vector<16x24xf32>
      %206 = arith.truncf %205 : vector<16x24xf32> to vector<16x24xbf16>
      %c0_82 = arith.constant 0 : index
      %c0_83 = arith.constant 0 : index
      %c0_84 = arith.constant 0 : index
      %207 = vector.load %arg7[%c0_82, %c0_83, %c0_84] : memref<1x24x32xbf16, #tpu.memory_space<vmem>>, vector<1x24x32xbf16>
      %208 = vector.shape_cast %207 : vector<1x24x32xbf16> to vector<24x32xbf16>
      %cst_85 = arith.constant dense<0.000000e+00> : vector<16x32xf32>
      %209 = tpu.matmul %206, %208, %cst_85 {dimension_numbers = #tpu.dot_dimension_numbers<[1], [0], [0], [1], [0, 0, 1, 1], [], []>} : vector<16x24xbf16>, vector<24x32xbf16>, vector<16x32xf32> -> vector<16x32xf32>
      %c0_86 = arith.constant 0 : index
      %c0_87 = arith.constant 0 : index
      %c0_88 = arith.constant 0 : index
      %210 = vector.load %arg8[%c0_86, %c0_87, %c0_88] : memref<1x1x32xf32, #tpu.memory_space<vmem>>, vector<1x1x32xf32>
      %211 = vector.shape_cast %210 : vector<1x1x32xf32> to vector<1x32xf32>
      %212 = vector.broadcast %211 : vector<1x32xf32> to vector<16x32xf32>
      %213 = arith.addf %209, %212 : vector<16x32xf32>
      %c0_89 = arith.constant 0 : index
      %c0_90 = arith.constant 0 : index
      %c0_91 = arith.constant 0 : index
      %214 = vector.load %arg5[%c0_89, %c0_90, %c0_91] : memref<1x16x32xbf16, #tpu.memory_space<vmem>>, vector<1x16x32xbf16>
      %215 = vector.shape_cast %214 : vector<1x16x32xbf16> to vector<16x32xbf16>
      %216 = arith.extf %215 : vector<16x32xbf16> to vector<16x32xf32>
      %217 = arith.addf %213, %216 : vector<16x32xf32>
      %c0_92 = arith.constant 0 : index
      %c0_93 = arith.constant 0 : index
      %c0_94 = arith.constant 0 : index
      %218 = vector.load %arg4[%c0_92, %c0_93, %c0_94] : memref<1x16x32xf32, #tpu.memory_space<vmem>>, vector<1x16x32xf32>
      %219 = vector.shape_cast %218 : vector<1x16x32xf32> to vector<16x32xf32>
      %220 = arith.truncf %219 : vector<16x32xf32> to vector<16x32xbf16>
      %c0_95 = arith.constant 0 : index
      %c0_96 = arith.constant 0 : index
      %c0_97 = arith.constant 0 : index
      %221 = vector.load %arg9[%c0_95, %c0_96, %c0_97] : memref<1x32x128xbf16, #tpu.memory_space<vmem>>, vector<1x32x128xbf16>
      %222 = vector.shape_cast %221 : vector<1x32x128xbf16> to vector<32x128xbf16>
      %cst_98 = arith.constant dense<0.000000e+00> : vector<16x128xf32>
      %223 = tpu.matmul %220, %222, %cst_98 {dimension_numbers = #tpu.dot_dimension_numbers<[1], [0], [0], [1], [0, 0, 1, 1], [], []>} : vector<16x32xbf16>, vector<32x128xbf16>, vector<16x128xf32> -> vector<16x128xf32>
      %c0_99 = arith.constant 0 : index
      %c0_100 = arith.constant 0 : index
      %c0_101 = arith.constant 0 : index
      %224 = vector.load %arg10[%c0_99, %c0_100, %c0_101] : memref<1x1x128xf32, #tpu.memory_space<vmem>>, vector<1x1x128xf32>
      %225 = vector.shape_cast %224 : vector<1x1x128xf32> to vector<1x128xf32>
      %226 = vector.broadcast %225 : vector<1x128xf32> to vector<16x128xf32>
      %227 = arith.addf %223, %226 : vector<16x128xf32>
      %228 = arith.negf %227 : vector<16x128xf32>
      %229 = math.exp %228 : vector<16x128xf32>
      %cst_102 = arith.constant 1.000000e+00 : f32
      %230 = vector.broadcast %cst_102 : f32 to vector<16x128xf32>
      %231 = arith.addf %230, %229 : vector<16x128xf32>
      %232 = arith.divf %230, %231 : vector<16x128xf32>
      %233 = arith.mulf %227, %232 : vector<16x128xf32>
      %234 = arith.truncf %233 : vector<16x128xf32> to vector<16x128xbf16>
      %c0_103 = arith.constant 0 : index
      %c0_104 = arith.constant 0 : index
      %c0_105 = arith.constant 0 : index
      %235 = vector.load %arg11[%c0_103, %c0_104, %c0_105] : memref<1x128x32xbf16, #tpu.memory_space<vmem>>, vector<1x128x32xbf16>
      %236 = vector.shape_cast %235 : vector<1x128x32xbf16> to vector<128x32xbf16>
      %cst_106 = arith.constant dense<0.000000e+00> : vector<16x32xf32>
      %237 = tpu.matmul %234, %236, %cst_106 {dimension_numbers = #tpu.dot_dimension_numbers<[1], [0], [0], [1], [0, 0, 1, 1], [], []>} : vector<16x128xbf16>, vector<128x32xbf16>, vector<16x32xf32> -> vector<16x32xf32>
      %c0_107 = arith.constant 0 : index
      %c0_108 = arith.constant 0 : index
      %c0_109 = arith.constant 0 : index
      %238 = vector.load %arg12[%c0_107, %c0_108, %c0_109] : memref<1x1x32xf32, #tpu.memory_space<vmem>>, vector<1x1x32xf32>
      %239 = vector.shape_cast %238 : vector<1x1x32xf32> to vector<1x32xf32>
      %240 = vector.broadcast %239 : vector<1x32xf32> to vector<16x32xf32>
      %241 = arith.addf %237, %240 : vector<16x32xf32>
      %242 = arith.addf %217, %241 : vector<16x32xf32>
      %c0_110 = arith.constant 0 : index
      %c0_111 = arith.constant 0 : index
      %243 = vector.load %arg30[%c0_110, %c0_111] : memref<16x32xf32, #tpu.memory_space<vmem>>, vector<16x32xf32>
      tpu.vector_store %arg30[%c0_110, %c0_111], %242 {strides = array<i32>} : memref<16x32xf32, #tpu.memory_space<vmem>>, vector<16x32xf32>,
    } else {
    }
    %c0_3 = arith.constant 0 : index
    %c0_4 = arith.constant 0 : index
    %5 = vector.load %arg30[%c0_3, %c0_4] : memref<16x32xf32, #tpu.memory_space<vmem>>, vector<16x32xf32>
    %c0_5 = arith.constant 0 : index
    %c0_6 = arith.constant 0 : index
    %c0_7 = arith.constant 0 : index
    %6 = vector.load %arg13[%c0_5, %c0_6, %c0_7] : memref<1x1x32xf32, #tpu.memory_space<vmem>>, vector<1x1x32xf32>
    %7 = vector.shape_cast %6 : vector<1x1x32xf32> to vector<1x32xf32>
    %c0_8 = arith.constant 0 : index
    %c0_9 = arith.constant 0 : index
    %c0_10 = arith.constant 0 : index
    %8 = vector.load %arg14[%c0_8, %c0_9, %c0_10] : memref<1x1x32xf32, #tpu.memory_space<vmem>>, vector<1x1x32xf32>
    %9 = vector.shape_cast %8 : vector<1x1x32xf32> to vector<1x32xf32>
    %cst = arith.constant dense<0.000000e+00> : vector<16xf32>
    %10 = vector.multi_reduction <add>, %5, %cst [1] : vector<16x32xf32> to vector<16xf32>
    %11 = vector.shape_cast %10 : vector<16xf32> to vector<16x1xf32>
    %12 = vector.broadcast %1 : vector<1x1xf32> to vector<16x1xf32>
    %13 = arith.mulf %11, %12 : vector<16x1xf32>
    %14 = arith.mulf %5, %5 : vector<16x32xf32>
    %cst_11 = arith.constant dense<0.000000e+00> : vector<16xf32>
    %15 = vector.multi_reduction <add>, %14, %cst_11 [1] : vector<16x32xf32> to vector<16xf32>
    %16 = vector.shape_cast %15 : vector<16xf32> to vector<16x1xf32>
    %17 = vector.broadcast %1 : vector<1x1xf32> to vector<16x1xf32>
    %18 = arith.mulf %16, %17 : vector<16x1xf32>
    %19 = arith.mulf %13, %13 : vector<16x1xf32>
    %20 = arith.subf %18, %19 : vector<16x1xf32>
    %21 = vector.broadcast %13 : vector<16x1xf32> to vector<16x32xf32>
    %22 = arith.subf %5, %21 : vector<16x32xf32>
    %cst_12 = arith.constant 9.99999974E-6 : f32
    %23 = vector.broadcast %cst_12 : f32 to vector<16x1xf32>
    %24 = arith.addf %20, %23 : vector<16x1xf32>
    %25 = math.rsqrt %24 : vector<16x1xf32>
    %26 = vector.broadcast %25 : vector<16x1xf32> to vector<16x32xf32>
    %27 = arith.mulf %22, %26 : vector<16x32xf32>
    %28 = vector.broadcast %7 : vector<1x32xf32> to vector<16x32xf32>
    %29 = arith.mulf %27, %28 : vector<16x32xf32>
    %30 = vector.broadcast %9 : vector<1x32xf32> to vector<16x32xf32>
    %31 = arith.addf %29, %30 : vector<16x32xf32>
    %32 = arith.truncf %31 : vector<16x32xf32> to vector<16x32xbf16>
    %c0_13 = arith.constant 0 : index
    %c0_14 = arith.constant 0 : index
    %c0_15 = arith.constant 0 : index
    %33 = vector.load %arg15[%c0_13, %c0_14, %c0_15] : memref<1x32x96xbf16, #tpu.memory_space<vmem>>, vector<1x32x96xbf16>
    %34 = vector.shape_cast %33 : vector<1x32x96xbf16> to vector<32x96xbf16>
    %cst_16 = arith.constant dense<0.000000e+00> : vector<16x96xf32>
    %35 = tpu.matmul %32, %34, %cst_16 {dimension_numbers = #tpu.dot_dimension_numbers<[1], [0], [0], [1], [0, 0, 1, 1], [], []>} : vector<16x32xbf16>, vector<32x96xbf16>, vector<16x96xf32> -> vector<16x96xf32>
    %c0_17 = arith.constant 0 : index
    %c0_18 = arith.constant 0 : index
    %c0_19 = arith.constant 0 : index
    %36 = vector.load %arg16[%c0_17, %c0_18, %c0_19] : memref<1x1x96xf32, #tpu.memory_space<vmem>>, vector<1x1x96xf32>
    %37 = vector.shape_cast %36 : vector<1x1x96xf32> to vector<1x96xf32>
    %38 = vector.broadcast %37 : vector<1x96xf32> to vector<16x96xf32>
    %39 = arith.addf %35, %38 : vector<16x96xf32>
    %c0_20 = arith.constant 0 : index
    %c0_21 = arith.constant 0 : index
    %c0_22 = arith.constant 0 : index
    %40 = vector.load %arg6[%c0_20, %c0_21, %c0_22] : memref<1x16x16xf32, #tpu.memory_space<vmem>>, vector<1x16x16xf32>
    %41 = vector.shape_cast %40 : vector<1x16x16xf32> to vector<16x16xf32>
    %c0_23 = arith.constant 0 : index
    %c0_24 = arith.constant 0 : index
    %c0_25 = arith.constant 0 : index
    %42 = vector.load %arg17[%c0_23, %c0_24, %c0_25] : memref<1x32x32xbf16, #tpu.memory_space<vmem>>, vector<1x32x32xbf16>
    %43 = vector.shape_cast %42 : vector<1x32x32xbf16> to vector<32x32xbf16>
    %44 = vector.extract_strided_slice %39 {offsets = [0, 0], sizes = [16, 8], strides = [1, 1]} : vector<16x96xf32> to vector<16x8xf32>
    %45 = vector.extract_strided_slice %39 {offsets = [0, 32], sizes = [16, 8], strides = [1, 1]} : vector<16x96xf32> to vector<16x8xf32>
    %46 = vector.extract_strided_slice %39 {offsets = [0, 64], sizes = [16, 8], strides = [1, 1]} : vector<16x96xf32> to vector<16x8xf32>
    %47 = arith.truncf %44 : vector<16x8xf32> to vector<16x8xbf16>
    %48 = arith.truncf %45 : vector<16x8xf32> to vector<16x8xbf16>
    %cst_26 = arith.constant dense<0.000000e+00> : vector<16x16xf32>
    %49 = tpu.matmul %47, %48, %cst_26 {dimension_numbers = #tpu.dot_dimension_numbers<[1], [1], [0], [0], [0, 0, 1, 0], [], []>} : vector<16x8xbf16>, vector<16x8xbf16>, vector<16x16xf32> -> vector<16x16xf32>
    %50 = arith.addf %49, %41 : vector<16x16xf32>
    %cst_27 = arith.constant dense<0xFF800000> : vector<16xf32>
    %51 = vector.multi_reduction <maximumf>, %50, %cst_27 [1] : vector<16x16xf32> to vector<16xf32>
    %52 = vector.shape_cast %51 : vector<16xf32> to vector<16x1xf32>
    %53 = vector.broadcast %52 : vector<16x1xf32> to vector<16x16xf32>
    %54 = arith.subf %50, %53 : vector<16x16xf32>
    %55 = math.exp %54 : vector<16x16xf32>
    %cst_28 = arith.constant dense<0.000000e+00> : vector<16xf32>
    %56 = vector.multi_reduction <add>, %55, %cst_28 [1] : vector<16x16xf32> to vector<16xf32>
    %57 = vector.shape_cast %56 : vector<16xf32> to vector<16x1xf32>
    %58 = tpu.reciprocal %57 {approx = true} : vector<16x1xf32> -> vector<16x1xf32>
    %59 = vector.broadcast %58 : vector<16x1xf32> to vector<16x16xf32>
    %60 = arith.mulf %55, %59 : vector<16x16xf32>
    %61 = arith.truncf %60 : vector<16x16xf32> to vector<16x16xbf16>
    %62 = arith.truncf %46 : vector<16x8xf32> to vector<16x8xbf16>
    %cst_29 = arith.constant dense<0.000000e+00> : vector<16x8xf32>
    %63 = tpu.matmul %61, %62, %cst_29 {dimension_numbers = #tpu.dot_dimension_numbers<[1], [0], [0], [1], [0, 0, 1, 1], [], []>} : vector<16x16xbf16>, vector<16x8xbf16>, vector<16x8xf32> -> vector<16x8xf32>
    %64 = arith.truncf %63 : vector<16x8xf32> to vector<16x8xbf16>
    %65 = vector.extract_strided_slice %43 {offsets = [0, 0], sizes = [8, 32], strides = [1, 1]} : vector<32x32xbf16> to vector<8x32xbf16>
    %cst_30 = arith.constant dense<0.000000e+00> : vector<16x32xf32>
    %66 = tpu.matmul %64, %65, %cst_30 {dimension_numbers = #tpu.dot_dimension_numbers<[1], [0], [0], [1], [0, 0, 1, 1], [], []>} : vector<16x8xbf16>, vector<8x32xbf16>, vector<16x32xf32> -> vector<16x32xf32>
    %67 = vector.extract_strided_slice %39 {offsets = [0, 8], sizes = [16, 8], strides = [1, 1]} : vector<16x96xf32> to vector<16x8xf32>
    %68 = vector.extract_strided_slice %39 {offsets = [0, 40], sizes = [16, 8], strides = [1, 1]} : vector<16x96xf32> to vector<16x8xf32>
    %69 = vector.extract_strided_slice %39 {offsets = [0, 72], sizes = [16, 8], strides = [1, 1]} : vector<16x96xf32> to vector<16x8xf32>
    %70 = arith.truncf %67 : vector<16x8xf32> to vector<16x8xbf16>
    %71 = arith.truncf %68 : vector<16x8xf32> to vector<16x8xbf16>
    %cst_31 = arith.constant dense<0.000000e+00> : vector<16x16xf32>
    %72 = tpu.matmul %70, %71, %cst_31 {dimension_numbers = #tpu.dot_dimension_numbers<[1], [1], [0], [0], [0, 0, 1, 0], [], []>} : vector<16x8xbf16>, vector<16x8xbf16>, vector<16x16xf32> -> vector<16x16xf32>
    %73 = arith.addf %72, %41 : vector<16x16xf32>
    %cst_32 = arith.constant dense<0xFF800000> : vector<16xf32>
    %74 = vector.multi_reduction <maximumf>, %73, %cst_32 [1] : vector<16x16xf32> to vector<16xf32>
    %75 = vector.shape_cast %74 : vector<16xf32> to vector<16x1xf32>
    %76 = vector.broadcast %75 : vector<16x1xf32> to vector<16x16xf32>
    %77 = arith.subf %73, %76 : vector<16x16xf32>
    %78 = math.exp %77 : vector<16x16xf32>
    %cst_33 = arith.constant dense<0.000000e+00> : vector<16xf32>
    %79 = vector.multi_reduction <add>, %78, %cst_33 [1] : vector<16x16xf32> to vector<16xf32>
    %80 = vector.shape_cast %79 : vector<16xf32> to vector<16x1xf32>
    %81 = tpu.reciprocal %80 {approx = true} : vector<16x1xf32> -> vector<16x1xf32>
    %82 = vector.broadcast %81 : vector<16x1xf32> to vector<16x16xf32>
    %83 = arith.mulf %78, %82 : vector<16x16xf32>
    %84 = arith.truncf %83 : vector<16x16xf32> to vector<16x16xbf16>
    %85 = arith.truncf %69 : vector<16x8xf32> to vector<16x8xbf16>
    %cst_34 = arith.constant dense<0.000000e+00> : vector<16x8xf32>
    %86 = tpu.matmul %84, %85, %cst_34 {dimension_numbers = #tpu.dot_dimension_numbers<[1], [0], [0], [1], [0, 0, 1, 1], [], []>} : vector<16x16xbf16>, vector<16x8xbf16>, vector<16x8xf32> -> vector<16x8xf32>
    %87 = arith.truncf %86 : vector<16x8xf32> to vector<16x8xbf16>
    %88 = vector.extract_strided_slice %43 {offsets = [8, 0], sizes = [8, 32], strides = [1, 1]} : vector<32x32xbf16> to vector<8x32xbf16>
    %cst_35 = arith.constant dense<0.000000e+00> : vector<16x32xf32>
    %89 = tpu.matmul %87, %88, %cst_35 {dimension_numbers = #tpu.dot_dimension_numbers<[1], [0], [0], [1], [0, 0, 1, 1], [], []>} : vector<16x8xbf16>, vector<8x32xbf16>, vector<16x32xf32> -> vector<16x32xf32>
    %90 = arith.addf %66, %89 : vector<16x32xf32>
    %91 = vector.extract_strided_slice %39 {offsets = [0, 16], sizes = [16, 8], strides = [1, 1]} : vector<16x96xf32> to vector<16x8xf32>
    %92 = vector.extract_strided_slice %39 {offsets = [0, 48], sizes = [16, 8], strides = [1, 1]} : vector<16x96xf32> to vector<16x8xf32>
    %93 = vector.extract_strided_slice %39 {offsets = [0, 80], sizes = [16, 8], strides = [1, 1]} : vector<16x96xf32> to vector<16x8xf32>
    %94 = arith.truncf %91 : vector<16x8xf32> to vector<16x8xbf16>
    %95 = arith.truncf %92 : vector<16x8xf32> to vector<16x8xbf16>
    %cst_36 = arith.constant dense<0.000000e+00> : vector<16x16xf32>
    %96 = tpu.matmul %94, %95, %cst_36 {dimension_numbers = #tpu.dot_dimension_numbers<[1], [1], [0], [0], [0, 0, 1, 0], [], []>} : vector<16x8xbf16>, vector<16x8xbf16>, vector<16x16xf32> -> vector<16x16xf32>
    %97 = arith.addf %96, %41 : vector<16x16xf32>
    %cst_37 = arith.constant dense<0xFF800000> : vector<16xf32>
    %98 = vector.multi_reduction <maximumf>, %97, %cst_37 [1] : vector<16x16xf32> to vector<16xf32>
    %99 = vector.shape_cast %98 : vector<16xf32> to vector<16x1xf32>
    %100 = vector.broadcast %99 : vector<16x1xf32> to vector<16x16xf32>
    %101 = arith.subf %97, %100 : vector<16x16xf32>
    %102 = math.exp %101 : vector<16x16xf32>
    %cst_38 = arith.constant dense<0.000000e+00> : vector<16xf32>
    %103 = vector.multi_reduction <add>, %102, %cst_38 [1] : vector<16x16xf32> to vector<16xf32>
    %104 = vector.shape_cast %103 : vector<16xf32> to vector<16x1xf32>
    %105 = tpu.reciprocal %104 {approx = true} : vector<16x1xf32> -> vector<16x1xf32>
    %106 = vector.broadcast %105 : vector<16x1xf32> to vector<16x16xf32>
    %107 = arith.mulf %102, %106 : vector<16x16xf32>
    %108 = arith.truncf %107 : vector<16x16xf32> to vector<16x16xbf16>
    %109 = arith.truncf %93 : vector<16x8xf32> to vector<16x8xbf16>
    %cst_39 = arith.constant dense<0.000000e+00> : vector<16x8xf32>
    %110 = tpu.matmul %108, %109, %cst_39 {dimension_numbers = #tpu.dot_dimension_numbers<[1], [0], [0], [1], [0, 0, 1, 1], [], []>} : vector<16x16xbf16>, vector<16x8xbf16>, vector<16x8xf32> -> vector<16x8xf32>
    %111 = arith.truncf %110 : vector<16x8xf32> to vector<16x8xbf16>
    %112 = vector.extract_strided_slice %43 {offsets = [16, 0], sizes = [8, 32], strides = [1, 1]} : vector<32x32xbf16> to vector<8x32xbf16>
    %cst_40 = arith.constant dense<0.000000e+00> : vector<16x32xf32>
    %113 = tpu.matmul %111, %112, %cst_40 {dimension_numbers = #tpu.dot_dimension_numbers<[1], [0], [0], [1], [0, 0, 1, 1], [], []>} : vector<16x8xbf16>, vector<8x32xbf16>, vector<16x32xf32> -> vector<16x32xf32>
    %114 = arith.addf %90, %113 : vector<16x32xf32>
    %115 = vector.extract_strided_slice %39 {offsets = [0, 24], sizes = [16, 8], strides = [1, 1]} : vector<16x96xf32> to vector<16x8xf32>
    %116 = vector.extract_strided_slice %39 {offsets = [0, 56], sizes = [16, 8], strides = [1, 1]} : vector<16x96xf32> to vector<16x8xf32>
    %117 = vector.extract_strided_slice %39 {offsets = [0, 88], sizes = [16, 8], strides = [1, 1]} : vector<16x96xf32> to vector<16x8xf32>
    %118 = arith.truncf %115 : vector<16x8xf32> to vector<16x8xbf16>
    %119 = arith.truncf %116 : vector<16x8xf32> to vector<16x8xbf16>
    %cst_41 = arith.constant dense<0.000000e+00> : vector<16x16xf32>
    %120 = tpu.matmul %118, %119, %cst_41 {dimension_numbers = #tpu.dot_dimension_numbers<[1], [1], [0], [0], [0, 0, 1, 0], [], []>} : vector<16x8xbf16>, vector<16x8xbf16>, vector<16x16xf32> -> vector<16x16xf32>
    %121 = arith.addf %120, %41 : vector<16x16xf32>
    %cst_42 = arith.constant dense<0xFF800000> : vector<16xf32>
    %122 = vector.multi_reduction <maximumf>, %121, %cst_42 [1] : vector<16x16xf32> to vector<16xf32>
    %123 = vector.shape_cast %122 : vector<16xf32> to vector<16x1xf32>
    %124 = vector.broadcast %123 : vector<16x1xf32> to vector<16x16xf32>
    %125 = arith.subf %121, %124 : vector<16x16xf32>
    %126 = math.exp %125 : vector<16x16xf32>
    %cst_43 = arith.constant dense<0.000000e+00> : vector<16xf32>
    %127 = vector.multi_reduction <add>, %126, %cst_43 [1] : vector<16x16xf32> to vector<16xf32>
    %128 = vector.shape_cast %127 : vector<16xf32> to vector<16x1xf32>
    %129 = tpu.reciprocal %128 {approx = true} : vector<16x1xf32> -> vector<16x1xf32>
    %130 = vector.broadcast %129 : vector<16x1xf32> to vector<16x16xf32>
    %131 = arith.mulf %126, %130 : vector<16x16xf32>
    %132 = arith.truncf %131 : vector<16x16xf32> to vector<16x16xbf16>
    %133 = arith.truncf %117 : vector<16x8xf32> to vector<16x8xbf16>
    %cst_44 = arith.constant dense<0.000000e+00> : vector<16x8xf32>
    %134 = tpu.matmul %132, %133, %cst_44 {dimension_numbers = #tpu.dot_dimension_numbers<[1], [0], [0], [1], [0, 0, 1, 1], [], []>} : vector<16x16xbf16>, vector<16x8xbf16>, vector<16x8xf32> -> vector<16x8xf32>
    %135 = arith.truncf %134 : vector<16x8xf32> to vector<16x8xbf16>
    %136 = vector.extract_strided_slice %43 {offsets = [24, 0], sizes = [8, 32], strides = [1, 1]} : vector<32x32xbf16> to vector<8x32xbf16>
    %cst_45 = arith.constant dense<0.000000e+00> : vector<16x32xf32>
    %137 = tpu.matmul %135, %136, %cst_45 {dimension_numbers = #tpu.dot_dimension_numbers<[1], [0], [0], [1], [0, 0, 1, 1], [], []>} : vector<16x8xbf16>, vector<8x32xbf16>, vector<16x32xf32> -> vector<16x32xf32>
    %138 = arith.addf %114, %137 : vector<16x32xf32>
    %139 = arith.addf %5, %138 : vector<16x32xf32>
    %c0_46 = arith.constant 0 : index
    %c0_47 = arith.constant 0 : index
    %c0_48 = arith.constant 0 : index
    %140 = vector.load %arg18[%c0_46, %c0_47, %c0_48] : memref<1x1x32xf32, #tpu.memory_space<vmem>>, vector<1x1x32xf32>
    %141 = vector.shape_cast %140 : vector<1x1x32xf32> to vector<1x32xf32>
    %142 = vector.broadcast %141 : vector<1x32xf32> to vector<16x32xf32>
    %143 = arith.addf %139, %142 : vector<16x32xf32>
    %c0_49 = arith.constant 0 : index
    %c0_50 = arith.constant 0 : index
    %c0_51 = arith.constant 0 : index
    %144 = vector.load %arg19[%c0_49, %c0_50, %c0_51] : memref<1x1x32xf32, #tpu.memory_space<vmem>>, vector<1x1x32xf32>
    %145 = vector.shape_cast %144 : vector<1x1x32xf32> to vector<1x32xf32>
    %c0_52 = arith.constant 0 : index
    %c0_53 = arith.constant 0 : index
    %c0_54 = arith.constant 0 : index
    %146 = vector.load %arg20[%c0_52, %c0_53, %c0_54] : memref<1x1x32xf32, #tpu.memory_space<vmem>>, vector<1x1x32xf32>
    %147 = vector.shape_cast %146 : vector<1x1x32xf32> to vector<1x32xf32>
    %cst_55 = arith.constant dense<0.000000e+00> : vector<16xf32>
    %148 = vector.multi_reduction <add>, %143, %cst_55 [1] : vector<16x32xf32> to vector<16xf32>
    %149 = vector.shape_cast %148 : vector<16xf32> to vector<16x1xf32>
    %150 = vector.broadcast %1 : vector<1x1xf32> to vector<16x1xf32>
    %151 = arith.mulf %149, %150 : vector<16x1xf32>
    %152 = arith.mulf %143, %143 : vector<16x32xf32>
    %cst_56 = arith.constant dense<0.000000e+00> : vector<16xf32>
    %153 = vector.multi_reduction <add>, %152, %cst_56 [1] : vector<16x32xf32> to vector<16xf32>
    %154 = vector.shape_cast %153 : vector<16xf32> to vector<16x1xf32>
    %155 = vector.broadcast %1 : vector<1x1xf32> to vector<16x1xf32>
    %156 = arith.mulf %154, %155 : vector<16x1xf32>
    %157 = arith.mulf %151, %151 : vector<16x1xf32>
    %158 = arith.subf %156, %157 : vector<16x1xf32>
    %159 = vector.broadcast %151 : vector<16x1xf32> to vector<16x32xf32>
    %160 = arith.subf %143, %159 : vector<16x32xf32>
    %cst_57 = arith.constant 9.99999974E-6 : f32
    %161 = vector.broadcast %cst_57 : f32 to vector<16x1xf32>
    %162 = arith.addf %158, %161 : vector<16x1xf32>
    %163 = math.rsqrt %162 : vector<16x1xf32>
    %164 = vector.broadcast %163 : vector<16x1xf32> to vector<16x32xf32>
    %165 = arith.mulf %160, %164 : vector<16x32xf32>
    %166 = vector.broadcast %145 : vector<1x32xf32> to vector<16x32xf32>
    %167 = arith.mulf %165, %166 : vector<16x32xf32>
    %168 = vector.broadcast %147 : vector<1x32xf32> to vector<16x32xf32>
    %169 = arith.addf %167, %168 : vector<16x32xf32>
    %170 = arith.truncf %169 : vector<16x32xf32> to vector<16x32xbf16>
    %c0_58 = arith.constant 0 : index
    %c0_59 = arith.constant 0 : index
    %c0_60 = arith.constant 0 : index
    %171 = vector.load %arg21[%c0_58, %c0_59, %c0_60] : memref<1x32x64xbf16, #tpu.memory_space<vmem>>, vector<1x32x64xbf16>
    %172 = vector.shape_cast %171 : vector<1x32x64xbf16> to vector<32x64xbf16>
    %cst_61 = arith.constant dense<0.000000e+00> : vector<16x64xf32>
    %173 = tpu.matmul %170, %172, %cst_61 {dimension_numbers = #tpu.dot_dimension_numbers<[1], [0], [0], [1], [0, 0, 1, 1], [], []>} : vector<16x32xbf16>, vector<32x64xbf16>, vector<16x64xf32> -> vector<16x64xf32>
    %c0_62 = arith.constant 0 : index
    %c0_63 = arith.constant 0 : index
    %c0_64 = arith.constant 0 : index
    %174 = vector.load %arg22[%c0_62, %c0_63, %c0_64] : memref<1x1x64xf32, #tpu.memory_space<vmem>>, vector<1x1x64xf32>
    %175 = vector.shape_cast %174 : vector<1x1x64xf32> to vector<1x64xf32>
    %176 = vector.broadcast %175 : vector<1x64xf32> to vector<16x64xf32>
    %177 = arith.addf %173, %176 : vector<16x64xf32>
    %178 = arith.mulf %177, %177 : vector<16x64xf32>
    %179 = arith.mulf %177, %178 : vector<16x64xf32>
    %cst_65 = arith.constant 4.471500e-02 : f32
    %180 = vector.broadcast %cst_65 : f32 to vector<16x64xf32>
    %181 = arith.mulf %180, %179 : vector<16x64xf32>
    %182 = arith.addf %177, %181 : vector<16x64xf32>
    %cst_66 = arith.constant 0.797884583 : f32
    %183 = vector.broadcast %cst_66 : f32 to vector<16x64xf32>
    %184 = arith.mulf %183, %182 : vector<16x64xf32>
    %185 = math.tanh %184 : vector<16x64xf32>
    %cst_67 = arith.constant 1.000000e+00 : f32
    %186 = vector.broadcast %cst_67 : f32 to vector<16x64xf32>
    %187 = arith.addf %186, %185 : vector<16x64xf32>
    %cst_68 = arith.constant 5.000000e-01 : f32
    %188 = vector.broadcast %cst_68 : f32 to vector<16x64xf32>
    %189 = arith.mulf %188, %187 : vector<16x64xf32>
    %190 = arith.mulf %177, %189 : vector<16x64xf32>
    %191 = arith.truncf %190 : vector<16x64xf32> to vector<16x64xbf16>
    %c0_69 = arith.constant 0 : index
    %c0_70 = arith.constant 0 : index
    %c0_71 = arith.constant 0 : index
    %192 = vector.load %arg23[%c0_69, %c0_70, %c0_71] : memref<1x64x32xbf16, #tpu.memory_space<vmem>>, vector<1x64x32xbf16>
    %193 = vector.shape_cast %192 : vector<1x64x32xbf16> to vector<64x32xbf16>
    %cst_72 = arith.constant dense<0.000000e+00> : vector<16x32xf32>
    %194 = tpu.matmul %191, %193, %cst_72 {dimension_numbers = #tpu.dot_dimension_numbers<[1], [0], [0], [1], [0, 0, 1, 1], [], []>} : vector<16x64xbf16>, vector<64x32xbf16>, vector<16x32xf32> -> vector<16x32xf32>
    %c0_73 = arith.constant 0 : index
    %c0_74 = arith.constant 0 : index
    %c0_75 = arith.constant 0 : index
    %195 = vector.load %arg24[%c0_73, %c0_74, %c0_75] : memref<1x1x32xf32, #tpu.memory_space<vmem>>, vector<1x1x32xf32>
    %196 = vector.shape_cast %195 : vector<1x1x32xf32> to vector<1x32xf32>
    %197 = vector.broadcast %196 : vector<1x32xf32> to vector<16x32xf32>
    %198 = arith.addf %194, %197 : vector<16x32xf32>
    %199 = arith.addf %143, %198 : vector<16x32xf32>
    %c0_76 = arith.constant 0 : index
    %c0_77 = arith.constant 0 : index
    %200 = vector.load %arg30[%c0_76, %c0_77] : memref<16x32xf32, #tpu.memory_space<vmem>>, vector<16x32xf32>
    tpu.vector_store %arg30[%c0_76, %c0_77], %199 {strides = array<i32>} : memref<16x32xf32, #tpu.memory_space<vmem>>, vector<16x32xf32>,
    %c1_i32 = arith.constant 1 : i32
    %201 = arith.cmpi eq, %arg1, %c1_i32 : i32
    %202 = arith.extui %201 : i1 to i32
    %c0_i32_78 = arith.constant 0 : i32
    %203 = arith.cmpi ne, %202, %c0_i32_78 : i32
    scf.if %203 {
      %c0_79 = arith.constant 0 : index
      %c0_80 = arith.constant 0 : index
      %204 = vector.load %arg30[%c0_79, %c0_80] : memref<16x32xf32, #tpu.memory_space<vmem>>, vector<16x32xf32>
      %c0_81 = arith.constant 0 : index
      %c0_82 = arith.constant 0 : index
      %c0_83 = arith.constant 0 : index
      %205 = vector.load %arg25[%c0_81, %c0_82, %c0_83] : memref<1x1x32xf32, #tpu.memory_space<vmem>>, vector<1x1x32xf32>
      %206 = vector.shape_cast %205 : vector<1x1x32xf32> to vector<1x32xf32>
      %c0_84 = arith.constant 0 : index
      %c0_85 = arith.constant 0 : index
      %c0_86 = arith.constant 0 : index
      %207 = vector.load %arg26[%c0_84, %c0_85, %c0_86] : memref<1x1x32xf32, #tpu.memory_space<vmem>>, vector<1x1x32xf32>
      %208 = vector.shape_cast %207 : vector<1x1x32xf32> to vector<1x32xf32>
      %cst_87 = arith.constant dense<0.000000e+00> : vector<16xf32>
      %209 = vector.multi_reduction <add>, %204, %cst_87 [1] : vector<16x32xf32> to vector<16xf32>
      %210 = vector.shape_cast %209 : vector<16xf32> to vector<16x1xf32>
      %211 = vector.broadcast %1 : vector<1x1xf32> to vector<16x1xf32>
      %212 = arith.mulf %210, %211 : vector<16x1xf32>
      %213 = arith.mulf %204, %204 : vector<16x32xf32>
      %cst_88 = arith.constant dense<0.000000e+00> : vector<16xf32>
      %214 = vector.multi_reduction <add>, %213, %cst_88 [1] : vector<16x32xf32> to vector<16xf32>
      %215 = vector.shape_cast %214 : vector<16xf32> to vector<16x1xf32>
      %216 = vector.broadcast %1 : vector<1x1xf32> to vector<16x1xf32>
      %217 = arith.mulf %215, %216 : vector<16x1xf32>
      %218 = arith.mulf %212, %212 : vector<16x1xf32>
      %219 = arith.subf %217, %218 : vector<16x1xf32>
      %220 = vector.broadcast %212 : vector<16x1xf32> to vector<16x32xf32>
      %221 = arith.subf %204, %220 : vector<16x32xf32>
      %cst_89 = arith.constant 9.99999974E-6 : f32
      %222 = vector.broadcast %cst_89 : f32 to vector<16x1xf32>
      %223 = arith.addf %219, %222 : vector<16x1xf32>
      %224 = math.rsqrt %223 : vector<16x1xf32>
      %225 = vector.broadcast %224 : vector<16x1xf32> to vector<16x32xf32>
      %226 = arith.mulf %221, %225 : vector<16x32xf32>
      %227 = vector.broadcast %206 : vector<1x32xf32> to vector<16x32xf32>
      %228 = arith.mulf %226, %227 : vector<16x32xf32>
      %229 = vector.broadcast %208 : vector<1x32xf32> to vector<16x32xf32>
      %230 = arith.addf %228, %229 : vector<16x32xf32>
      %231 = arith.truncf %230 : vector<16x32xf32> to vector<16x32xbf16>
      %c0_90 = arith.constant 0 : index
      %c0_91 = arith.constant 0 : index
      %c0_92 = arith.constant 0 : index
      %232 = vector.load %arg27[%c0_90, %c0_91, %c0_92] : memref<1x32x24xbf16, #tpu.memory_space<vmem>>, vector<1x32x24xbf16>
      %233 = vector.shape_cast %232 : vector<1x32x24xbf16> to vector<32x24xbf16>
      %cst_93 = arith.constant dense<0.000000e+00> : vector<16x24xf32>
      %234 = tpu.matmul %231, %233, %cst_93 {dimension_numbers = #tpu.dot_dimension_numbers<[1], [0], [0], [1], [0, 0, 1, 1], [], []>} : vector<16x32xbf16>, vector<32x24xbf16>, vector<16x24xf32> -> vector<16x24xf32>
      %c0_94 = arith.constant 0 : index
      %c0_95 = arith.constant 0 : index
      %c0_96 = arith.constant 0 : index
      %235 = vector.load %arg28[%c0_94, %c0_95, %c0_96] : memref<1x1x24xf32, #tpu.memory_space<vmem>>, vector<1x1x24xf32>
      %236 = vector.shape_cast %235 : vector<1x1x24xf32> to vector<1x24xf32>
      %237 = vector.broadcast %236 : vector<1x24xf32> to vector<16x24xf32>
      %238 = arith.addf %234, %237 : vector<16x24xf32>
      %c0_97 = arith.constant 0 : index
      %c0_98 = arith.constant 0 : index
      %c0_99 = arith.constant 0 : index
      %239 = vector.load %arg29[%c0_97, %c0_98, %c0_99] : memref<1x16x24xf32, #tpu.memory_space<vmem>>, vector<1x16x24xf32>
      %240 = vector.shape_cast %239 : vector<1x16x24xf32> to vector<16x24xf32>
      %241 = vector.shape_cast %238 : vector<16x24xf32> to vector<1x16x24xf32>
      tpu.vector_store %arg29[%c0_97, %c0_98, %c0_99], %241 {strides = array<i32>} : memref<1x16x24xf32, #tpu.memory_space<vmem>>, vector<1x16x24xf32>,
    } else {
    }
    return
  }
  func.func @transform_0(%arg0: i32, %arg1: i32) -> (i32, i32, i32) {
    %c0_i32 = arith.constant 0 : i32
    %c0_i32_0 = arith.constant 0 : i32
    %c0_i32_1 = arith.constant 0 : i32
    return %arg0, %c0_i32, %c0_i32_0 : i32, i32, i32
  }
  func.func @transform_1(%arg0: i32, %arg1: i32) -> (i32, i32, i32) {
    %c0_i32 = arith.constant 0 : i32
    %c0_i32_0 = arith.constant 0 : i32
    %c0_i32_1 = arith.constant 0 : i32
    return %arg0, %c0_i32, %c0_i32_0 : i32, i32, i32
  }
  func.func @transform_2(%arg0: i32, %arg1: i32) -> (i32, i32, i32) {
    %c0_i32 = arith.constant 0 : i32
    %c0_i32_0 = arith.constant 0 : i32
    %c0_i32_1 = arith.constant 0 : i32
    return %arg0, %c0_i32, %c0_i32_0 : i32, i32, i32
  }
  func.func @transform_3(%arg0: i32, %arg1: i32) -> (i32, i32, i32) {
    %c0_i32 = arith.constant 0 : i32
    %c0_i32_0 = arith.constant 0 : i32
    %c0_i32_1 = arith.constant 0 : i32
    return %arg0, %c0_i32, %c0_i32_0 : i32, i32, i32
  }
  func.func @transform_4(%arg0: i32, %arg1: i32) -> (i32, i32, i32) {
    %c0_i32 = arith.constant 0 : i32
    %c0_i32_0 = arith.constant 0 : i32
    %c0_i32_1 = arith.constant 0 : i32
    return %arg0, %c0_i32, %c0_i32_0 : i32, i32, i32
  }
  func.func @transform_5(%arg0: i32, %arg1: i32) -> (i32, i32, i32) {
    %c0_i32 = arith.constant 0 : i32
    %c0_i32_0 = arith.constant 0 : i32
    %c0_i32_1 = arith.constant 0 : i32
    return %arg0, %c0_i32, %c0_i32_0 : i32, i32, i32
  }
  func.func @transform_6(%arg0: i32, %arg1: i32) -> (i32, i32, i32) {
    %c0_i32 = arith.constant 0 : i32
    %c0_i32_0 = arith.constant 0 : i32
    %c0_i32_1 = arith.constant 0 : i32
    return %arg0, %c0_i32, %c0_i32_0 : i32, i32, i32
  }
  func.func @transform_7(%arg0: i32, %arg1: i32) -> (i32, i32, i32) {
    %c0_i32 = arith.constant 0 : i32
    %c0_i32_0 = arith.constant 0 : i32
    %c0_i32_1 = arith.constant 0 : i32
    return %arg0, %c0_i32, %c0_i32_0 : i32, i32, i32
  }
  func.func @transform_8(%arg0: i32, %arg1: i32) -> (i32, i32, i32) {
    %c0_i32 = arith.constant 0 : i32
    %c0_i32_0 = arith.constant 0 : i32
    %c0_i32_1 = arith.constant 0 : i32
    return %arg0, %c0_i32, %c0_i32_0 : i32, i32, i32
  }
  func.func @transform_9(%arg0: i32, %arg1: i32) -> (i32, i32, i32) {
    %c0_i32 = arith.constant 0 : i32
    %c0_i32_0 = arith.constant 0 : i32
    %c0_i32_1 = arith.constant 0 : i32
    return %arg0, %c0_i32, %c0_i32_0 : i32, i32, i32
  }
  func.func @transform_10(%arg0: i32, %arg1: i32) -> (i32, i32, i32) {
    %c0_i32 = arith.constant 0 : i32
    %c0_i32_0 = arith.constant 0 : i32
    %c0_i32_1 = arith.constant 0 : i32
    return %arg0, %c0_i32, %c0_i32_0 : i32, i32, i32
  }
  func.func @transform_11(%arg0: i32, %arg1: i32) -> (i32, i32, i32) {
    %c2_i32 = arith.constant 2 : i32
    %0 = arith.muli %arg0, %c2_i32 : i32
    %1 = arith.addi %0, %arg1 : i32
    %c0_i32 = arith.constant 0 : i32
    %c0_i32_0 = arith.constant 0 : i32
    %c0_i32_1 = arith.constant 0 : i32
    return %1, %c0_i32, %c0_i32_0 : i32, i32, i32
  }
  func.func @transform_12(%arg0: i32, %arg1: i32) -> (i32, i32, i32) {
    %c2_i32 = arith.constant 2 : i32
    %0 = arith.muli %arg0, %c2_i32 : i32
    %1 = arith.addi %0, %arg1 : i32
    %c0_i32 = arith.constant 0 : i32
    %c0_i32_0 = arith.constant 0 : i32
    %c0_i32_1 = arith.constant 0 : i32
    return %1, %c0_i32, %c0_i32_0 : i32, i32, i32
  }
  func.func @transform_13(%arg0: i32, %arg1: i32) -> (i32, i32, i32) {
    %c2_i32 = arith.constant 2 : i32
    %0 = arith.muli %arg0, %c2_i32 : i32
    %1 = arith.addi %0, %arg1 : i32
    %c0_i32 = arith.constant 0 : i32
    %c0_i32_0 = arith.constant 0 : i32
    %c0_i32_1 = arith.constant 0 : i32
    return %1, %c0_i32, %c0_i32_0 : i32, i32, i32
  }
  func.func @transform_14(%arg0: i32, %arg1: i32) -> (i32, i32, i32) {
    %c2_i32 = arith.constant 2 : i32
    %0 = arith.muli %arg0, %c2_i32 : i32
    %1 = arith.addi %0, %arg1 : i32
    %c0_i32 = arith.constant 0 : i32
    %c0_i32_0 = arith.constant 0 : i32
    %c0_i32_1 = arith.constant 0 : i32
    return %1, %c0_i32, %c0_i32_0 : i32, i32, i32
  }
  func.func @transform_15(%arg0: i32, %arg1: i32) -> (i32, i32, i32) {
    %c2_i32 = arith.constant 2 : i32
    %0 = arith.muli %arg0, %c2_i32 : i32
    %1 = arith.addi %0, %arg1 : i32
    %c0_i32 = arith.constant 0 : i32
    %c0_i32_0 = arith.constant 0 : i32
    %c0_i32_1 = arith.constant 0 : i32
    return %1, %c0_i32, %c0_i32_0 : i32, i32, i32
  }
  func.func @transform_16(%arg0: i32, %arg1: i32) -> (i32, i32, i32) {
    %c2_i32 = arith.constant 2 : i32
    %0 = arith.muli %arg0, %c2_i32 : i32
    %1 = arith.addi %0, %arg1 : i32
    %c0_i32 = arith.constant 0 : i32
    %c0_i32_0 = arith.constant 0 : i32
    %c0_i32_1 = arith.constant 0 : i32
    return %1, %c0_i32, %c0_i32_0 : i32, i32, i32
  }
  func.func @transform_17(%arg0: i32, %arg1: i32) -> (i32, i32, i32) {
    %c2_i32 = arith.constant 2 : i32
    %0 = arith.muli %arg0, %c2_i32 : i32
    %1 = arith.addi %0, %arg1 : i32
    %c0_i32 = arith.constant 0 : i32
    %c0_i32_0 = arith.constant 0 : i32
    %c0_i32_1 = arith.constant 0 : i32
    return %1, %c0_i32, %c0_i32_0 : i32, i32, i32
  }
  func.func @transform_18(%arg0: i32, %arg1: i32) -> (i32, i32, i32) {
    %c2_i32 = arith.constant 2 : i32
    %0 = arith.muli %arg0, %c2_i32 : i32
    %1 = arith.addi %0, %arg1 : i32
    %c0_i32 = arith.constant 0 : i32
    %c0_i32_0 = arith.constant 0 : i32
    %c0_i32_1 = arith.constant 0 : i32
    return %1, %c0_i32, %c0_i32_0 : i32, i32, i32
  }
  func.func @transform_19(%arg0: i32, %arg1: i32) -> (i32, i32, i32) {
    %c2_i32 = arith.constant 2 : i32
    %0 = arith.muli %arg0, %c2_i32 : i32
    %1 = arith.addi %0, %arg1 : i32
    %c0_i32 = arith.constant 0 : i32
    %c0_i32_0 = arith.constant 0 : i32
    %c0_i32_1 = arith.constant 0 : i32
    return %1, %c0_i32, %c0_i32_0 : i32, i32, i32
  }
  func.func @transform_20(%arg0: i32, %arg1: i32) -> (i32, i32, i32) {
    %c2_i32 = arith.constant 2 : i32
    %0 = arith.muli %arg0, %c2_i32 : i32
    %1 = arith.addi %0, %arg1 : i32
    %c0_i32 = arith.constant 0 : i32
    %c0_i32_0 = arith.constant 0 : i32
    %c0_i32_1 = arith.constant 0 : i32
    return %1, %c0_i32, %c0_i32_0 : i32, i32, i32
  }
  func.func @transform_21(%arg0: i32, %arg1: i32) -> (i32, i32, i32) {
    %c2_i32 = arith.constant 2 : i32
    %0 = arith.muli %arg0, %c2_i32 : i32
    %1 = arith.addi %0, %arg1 : i32
    %c0_i32 = arith.constant 0 : i32
    %c0_i32_0 = arith.constant 0 : i32
    %c0_i32_1 = arith.constant 0 : i32
    return %1, %c0_i32, %c0_i32_0 : i32, i32, i32
  }
  func.func @transform_22(%arg0: i32, %arg1: i32) -> (i32, i32, i32) {
    %c2_i32 = arith.constant 2 : i32
    %0 = arith.muli %arg0, %c2_i32 : i32
    %1 = arith.addi %0, %arg1 : i32
    %c0_i32 = arith.constant 0 : i32
    %c0_i32_0 = arith.constant 0 : i32
    %c0_i32_1 = arith.constant 0 : i32
    return %1, %c0_i32, %c0_i32_0 : i32, i32, i32
  }
  func.func @transform_23(%arg0: i32, %arg1: i32) -> (i32, i32, i32) {
    %c0_i32 = arith.constant 0 : i32
    %c0_i32_0 = arith.constant 0 : i32
    %c0_i32_1 = arith.constant 0 : i32
    return %arg0, %c0_i32, %c0_i32_0 : i32, i32, i32
  }
  func.func @transform_24(%arg0: i32, %arg1: i32) -> (i32, i32, i32) {
    %c0_i32 = arith.constant 0 : i32
    %c0_i32_0 = arith.constant 0 : i32
    %c0_i32_1 = arith.constant 0 : i32
    return %arg0, %c0_i32, %c0_i32_0 : i32, i32, i32
  }
  func.func @transform_25(%arg0: i32, %arg1: i32) -> (i32, i32, i32) {
    %c0_i32 = arith.constant 0 : i32
    %c0_i32_0 = arith.constant 0 : i32
    %c0_i32_1 = arith.constant 0 : i32
    return %arg0, %c0_i32, %c0_i32_0 : i32, i32, i32
  }
  func.func @transform_26(%arg0: i32, %arg1: i32) -> (i32, i32, i32) {
    %c0_i32 = arith.constant 0 : i32
    %c0_i32_0 = arith.constant 0 : i32
    %c0_i32_1 = arith.constant 0 : i32
    return %arg0, %c0_i32, %c0_i32_0 : i32, i32, i32
  }
  func.func @transform_27(%arg0: i32, %arg1: i32) -> (i32, i32, i32) {
    %c0_i32 = arith.constant 0 : i32
    %c0_i32_0 = arith.constant 0 : i32
    %c0_i32_1 = arith.constant 0 : i32
    return %arg0, %c0_i32, %c0_i32_0 : i32, i32, i32
  }
}

</mosaic_0001>

<llo_original>
// kernel: motion_transformer_forward.1
$region0: #{motion_transformer_forward.1}
  #allocation0 [shape = 'u32[]', space=smem, size = 0x4, offset = 0x4, fixed_abs, tag = 'smem constant byte address 0x4 - core index']
  #allocation1 [shape = 'u32[72,128]{1,0:T(1,128)}', space=vmem, size = 0x9000, scoped, tag = 'internal scratch']
  #allocation2 [shape = 'f32[16,32]{1,0:T(8,128)}', space=vmem, size = 0x2000, scoped, tag = 'scratch operand']
  %s0 = inlined_call_operand.vmem [shape: f32[2,1,1], index: 0, kind: input, shape index: {}]
  %s1 = inlined_call_operand.vmem [shape: f32[2,16,24], index: 1, kind: input, shape index: {}]
  %s2 = inlined_call_operand.vmem [shape: f32[2,16,32], index: 2, kind: input, shape index: {}]
  %s3 = inlined_call_operand.vmem [shape: bf16[2,16,32], index: 3, kind: input, shape index: {}]
  %s4 = inlined_call_operand.vmem [shape: f32[2,16,16], index: 4, kind: input, shape index: {}]
  %s5 = inlined_call_operand.vmem [shape: bf16[2,24,32], index: 5, kind: input, shape index: {}]
  %s6 = inlined_call_operand.vmem [shape: f32[2,1,32], index: 6, kind: input, shape index: {}]
  %s7 = inlined_call_operand.vmem [shape: bf16[2,32,128], index: 7, kind: input, shape index: {}]
  %s8 = inlined_call_operand.vmem [shape: f32[2,1,128], index: 8, kind: input, shape index: {}]
  %s9 = inlined_call_operand.vmem [shape: bf16[2,128,32], index: 9, kind: input, shape index: {}]
  %s10 = inlined_call_operand.vmem [shape: f32[2,1,32], index: 10, kind: input, shape index: {}]
  %s11 = inlined_call_operand.vmem [shape: f32[4,1,32], index: 11, kind: input, shape index: {}]
  %s12 = inlined_call_operand.vmem [shape: f32[4,1,32], index: 12, kind: input, shape index: {}]
  %s13 = inlined_call_operand.vmem [shape: bf16[4,32,96], index: 13, kind: input, shape index: {}]
  %s14 = inlined_call_operand.vmem [shape: f32[4,1,96], index: 14, kind: input, shape index: {}]
  %s15 = inlined_call_operand.vmem [shape: bf16[4,32,32], index: 15, kind: input, shape index: {}]
  %s16 = inlined_call_operand.vmem [shape: f32[4,1,32], index: 16, kind: input, shape index: {}]
  %s17 = inlined_call_operand.vmem [shape: f32[4,1,32], index: 17, kind: input, shape index: {}]
  %s18 = inlined_call_operand.vmem [shape: f32[4,1,32], index: 18, kind: input, shape index: {}]
  %s19 = inlined_call_operand.vmem [shape: bf16[4,32,64], index: 19, kind: input, shape index: {}]
  %s20 = inlined_call_operand.vmem [shape: f32[4,1,64], index: 20, kind: input, shape index: {}]
  %s21 = inlined_call_operand.vmem [shape: bf16[4,64,32], index: 21, kind: input, shape index: {}]
  %s22 = inlined_call_operand.vmem [shape: f32[4,1,32], index: 22, kind: input, shape index: {}]
  %s23 = inlined_call_operand.vmem [shape: f32[2,1,32], index: 23, kind: input, shape index: {}]
  %s24 = inlined_call_operand.vmem [shape: f32[2,1,32], index: 24, kind: input, shape index: {}]
  %s25 = inlined_call_operand.vmem [shape: bf16[2,32,24], index: 25, kind: input, shape index: {}]
  %s26 = inlined_call_operand.vmem [shape: f32[2,1,24], index: 26, kind: input, shape index: {}]
  %s27 = inlined_call_operand.vmem [shape: f32[2,16,24], index: 27, kind: output, shape index: {}]
  %s28 = sld [smem:[#allocation0]]
  $region149: #{motion_transformer_forward.1} parent=0
    _
  %s30 = ssub.s32 1, %s28
  %s31 = scalar_select 0, %s30, %s28
  loop: start=0, step=1, limit=6
  $region2: #{motion_transformer_forward.1} parent=0 // loop_pre_header
    _
  $region3: #{motion_transformer_forward.1} parent=0 // loop_header
    %s33 = sphi 0, %s37
    %p34 = scmp.ge.s32.totalorder %s33, 6
    %s40 = sphi 0, %s52
    %s41 = sphi 0, %s48
    %s42 = sphi 0, %s40
    %s43 = sphi 0, %s41
    %s44 = sphi 0, %s42
    %s45 = sphi 0, %s43
    %s55 = sphi 0, %s57
    %s58 = sphi 0, %s55
    %s59 = sphi 0, %s58
    %s75 = sphi 0, %s59
    %s81 = sphi 0, %s83
    %s84 = sphi 0, %s81
    %s85 = sphi 0, %s84
    %s101 = sphi 0, %s85
    %s107 = sphi 0, %s109
    %s110 = sphi 0, %s107
    %s111 = sphi 0, %s110
    %s127 = sphi 0, %s111
    %s133 = sphi 0, %s135
    %s136 = sphi 0, %s133
    %s137 = sphi 0, %s136
    %s153 = sphi 0, %s137
    %s159 = sphi 0, %s161
    %s162 = sphi 0, %s159
    %s163 = sphi 0, %s162
    %s179 = sphi 0, %s163
    %s185 = sphi 0, %s187
    %s188 = sphi 0, %s185
    %s189 = sphi 0, %s188
    %s205 = sphi 0, %s189
    %s211 = sphi 0, %s213
    %s214 = sphi 0, %s211
    %s215 = sphi 0, %s214
    %s231 = sphi 0, %s215
    %s237 = sphi 0, %s239
    %s240 = sphi 0, %s237
    %s241 = sphi 0, %s240
    %s257 = sphi 0, %s241
    %s263 = sphi 0, %s265
    %s266 = sphi 0, %s263
    %s267 = sphi 0, %s266
    %s283 = sphi 0, %s267
    %s289 = sphi 0, %s291
    %s292 = sphi 0, %s289
    %s293 = sphi 0, %s292
    %s309 = sphi 0, %s293
    %s315 = sphi 0, %s317
    %s318 = sphi 0, %s315
    %s319 = sphi 0, %s318
    %s335 = sphi 0, %s319
    %s345 = sphi 0, %s347
    %s348 = sphi 0, %s345
    %s349 = sphi 0, %s348
    %s365 = sphi 0, %s349
    %s375 = sphi 0, %s377
    %s378 = sphi 0, %s375
    %s379 = sphi 0, %s378
    %s395 = sphi 0, %s379
    %s405 = sphi 0, %s407
    %s408 = sphi 0, %s405
    %s409 = sphi 0, %s408
    %s425 = sphi 0, %s409
    %s435 = sphi 0, %s437
    %s438 = sphi 0, %s435
    %s439 = sphi 0, %s438
    %s455 = sphi 0, %s439
    %s465 = sphi 0, %s467
    %s468 = sphi 0, %s465
    %s469 = sphi 0, %s468
    %s485 = sphi 0, %s469
    %s495 = sphi 0, %s497
    %s498 = sphi 0, %s495
    %s499 = sphi 0, %s498
    %s515 = sphi 0, %s499
    %s525 = sphi 0, %s527
    %s528 = sphi 0, %s525
    %s529 = sphi 0, %s528
    %s545 = sphi 0, %s529
    %s555 = sphi 0, %s557
    %s558 = sphi 0, %s555
    %s559 = sphi 0, %s558
    %s575 = sphi 0, %s559
    %s585 = sphi 0, %s587
    %s588 = sphi 0, %s585
    %s589 = sphi 0, %s588
    %s605 = sphi 0, %s589
    %s615 = sphi 0, %s617
    %s618 = sphi 0, %s615
    %s619 = sphi 0, %s618
    %s635 = sphi 0, %s619
    %s645 = sphi 0, %s647
    %s648 = sphi 0, %s645
    %s649 = sphi 0, %s648
    %s665 = sphi 0, %s649
    %s675 = sphi 0, %s677
    %s678 = sphi 0, %s675
    %s679 = sphi 0, %s678
    %s695 = sphi 0, %s679
    %s701 = sphi 0, %s703
    %s704 = sphi 0, %s701
    %s705 = sphi 0, %s704
    %s721 = sphi 0, %s705
    %s727 = sphi 0, %s729
    %s730 = sphi 0, %s727
    %s731 = sphi 0, %s730
    %s747 = sphi 0, %s731
    %s753 = sphi 0, %s755
    %s756 = sphi 0, %s753
    %s757 = sphi 0, %s756
    %s773 = sphi 0, %s757
    %s779 = sphi 0, %s781
    %s782 = sphi 0, %s779
    %s783 = sphi 0, %s782
    %s799 = sphi 0, %s783
    %s805 = sphi 0, %s807
    %s808 = sphi 0, %s805
    %s809 = sphi 0, %s808
    %s825 = sphi 0, %s809
  $region4: #{motion_transformer_forward.1} parent=0 // loop_header_branch
    %36 = sbr.rel (%p34) target = $region8
  $region5: #{motion_transformer_forward.1} parent=0 // loop_body
    %s38 = ssub.s32 %s33, 1
    %s39 = ssub.s32 %s33, 2
    %s46 = sadd.s32 1, %s41
    %p47 = scmp.ge.s32.totalorder %s46, 2
    %s48 = scalar_select %p47, 0, %s46
    %s49 = sadd.s32 1, %s40
    %s50 = scalar_select %p47, %s49, %s40
    %p51 = scmp.ge.s32.totalorder %s50, 2
    %s52 = scalar_select %p51, 0, %s50
    %s53 = ssub.s32 %s40, %s52
    %p54 = scmp.eq.s32.totalorder %s53, 0
    %s56 = sadd.s32 %s55, 1
    %s57 = scalar_select %p54, %s55, %s56
    %p60 = pneg %p54
    %p61 = scmp.eq.s32.totalorder %s33, 3
    %p62 = por %p60, %p61
    %p63 = scmp.ne.s32.totalorder %s55, %s58
    %p64 = scmp.eq.s32.totalorder %s33, 0
    %p65 = por %p63, %p64
    %p66 = scmp.ne.s32.totalorder %s55, %s58
    %p67 = scmp.eq.s32.totalorder %s38, 3
    %p68 = por %p66, %p67
    %p69 = scmp.ne.s32.totalorder %s58, %s59
    %p70 = scmp.eq.s32.totalorder %s38, 0
    %p71 = por %p69, %p70
    %p72 = scmp.ne.s32.totalorder %s58, %s59
    %p73 = scmp.eq.s32.totalorder %s39, 3
    %p74 = por %p72, %p73
    %p76 = scmp.ne.s32.totalorder %s59, %s75
    %p77 = scmp.eq.s32.totalorder %s39, 0
    %p78 = por %p76, %p77
    %s79 = ssub.s32 %s40, %s52
    %p80 = scmp.eq.s32.totalorder %s79, 0
    %s82 = sadd.s32 %s81, 1
    %s83 = scalar_select %p80, %s81, %s82
    %p86 = pneg %p80
    %p87 = scmp.eq.s32.totalorder %s33, 3
    %p88 = por %p86, %p87
    %p89 = scmp.ne.s32.totalorder %s81, %s84
    %p90 = scmp.eq.s32.totalorder %s33, 0
    %p91 = por %p89, %p90
    %p92 = scmp.ne.s32.totalorder %s81, %s84
    %p93 = scmp.eq.s32.totalorder %s38, 3
    %p94 = por %p92, %p93
    %p95 = scmp.ne.s32.totalorder %s84, %s85
    %p96 = scmp.eq.s32.totalorder %s38, 0
    %p97 = por %p95, %p96
    %p98 = scmp.ne.s32.totalorder %s84, %s85
    %p99 = scmp.eq.s32.totalorder %s39, 3
    %p100 = por %p98, %p99
    %p102 = scmp.ne.s32.totalorder %s85, %s101
    %p103 = scmp.eq.s32.totalorder %s39, 0
    %p104 = por %p102, %p103
    %s105 = ssub.s32 %s40, %s52
    %p106 = scmp.eq.s32.totalorder %s105, 0
    %s108 = sadd.s32 %s107, 1
    %s109 = scalar_select %p106, %s107, %s108
    %p112 = pneg %p106
    %p113 = scmp.eq.s32.totalorder %s33, 3
    %p114 = por %p112, %p113
    %p115 = scmp.ne.s32.totalorder %s107, %s110
    %p116 = scmp.eq.s32.totalorder %s33, 0
    %p117 = por %p115, %p116
    %p118 = scmp.ne.s32.totalorder %s107, %s110
    %p119 = scmp.eq.s32.totalorder %s38, 3
    %p120 = por %p118, %p119
    %p121 = scmp.ne.s32.totalorder %s110, %s111
    %p122 = scmp.eq.s32.totalorder %s38, 0
    %p123 = por %p121, %p122
    %p124 = scmp.ne.s32.totalorder %s110, %s111
    %p125 = scmp.eq.s32.totalorder %s39, 3
    %p126 = por %p124, %p125
    %p128 = scmp.ne.s32.totalorder %s111, %s127
    %p129 = scmp.eq.s32.totalorder %s39, 0
    %p130 = por %p128, %p129
    %s131 = ssub.s32 %s40, %s52
    %p132 = scmp.eq.s32.totalorder %s131, 0
    %s134 = sadd.s32 %s133, 1
    %s135 = scalar_select %p132, %s133, %s134
    %p138 = pneg %p132
    %p139 = scmp.eq.s32.totalorder %s33, 3
    %p140 = por %p138, %p139
    %p141 = scmp.ne.s32.totalorder %s133, %s136
    %p142 = scmp.eq.s32.totalorder %s33, 0
    %p143 = por %p141, %p142
    %p144 = scmp.ne.s32.totalorder %s133, %s136
    %p145 = scmp.eq.s32.totalorder %s38, 3
    %p146 = por %p144, %p145
    %p147 = scmp.ne.s32.totalorder %s136, %s137
    %p148 = scmp.eq.s32.totalorder %s38, 0
    %p149 = por %p147, %p148
    %p150 = scmp.ne.s32.totalorder %s136, %s137
    %p151 = scmp.eq.s32.totalorder %s39, 3
    %p152 = por %p150, %p151
    %p154 = scmp.ne.s32.totalorder %s137, %s153
    %p155 = scmp.eq.s32.totalorder %s39, 0
    %p156 = por %p154, %p155
    %s157 = ssub.s32 %s40, %s52
    %p158 = scmp.eq.s32.totalorder %s157, 0
    %s160 = sadd.s32 %s159, 1
    %s161 = scalar_select %p158, %s159, %s160
    %p164 = pneg %p158
    %p165 = scmp.eq.s32.totalorder %s33, 3
    %p166 = por %p164, %p165
    %p167 = scmp.ne.s32.totalorder %s159, %s162
    %p168 = scmp.eq.s32.totalorder %s33, 0
    %p169 = por %p167, %p168
    %p170 = scmp.ne.s32.totalorder %s159, %s162
    %p171 = scmp.eq.s32.totalorder %s38, 3
    %p172 = por %p170, %p171
    %p173 = scmp.ne.s32.totalorder %s162, %s163
    %p174 = scmp.eq.s32.totalorder %s38, 0
    %p175 = por %p173, %p174
    %p176 = scmp.ne.s32.totalorder %s162, %s163
    %p177 = scmp.eq.s32.totalorder %s39, 3
    %p178 = por %p176, %p177
    %p180 = scmp.ne.s32.totalorder %s163, %s179
    %p181 = scmp.eq.s32.totalorder %s39, 0
    %p182 = por %p180, %p181
    %s183 = ssub.s32 %s40, %s52
    %p184 = scmp.eq.s32.totalorder %s183, 0
    %s186 = sadd.s32 %s185, 1
    %s187 = scalar_select %p184, %s185, %s186
    %p190 = pneg %p184
    %p191 = scmp.eq.s32.totalorder %s33, 3
    %p192 = por %p190, %p191
    %p193 = scmp.ne.s32.totalorder %s185, %s188
    %p194 = scmp.eq.s32.totalorder %s33, 0
    %p195 = por %p193, %p194
    %p196 = scmp.ne.s32.totalorder %s185, %s188
    %p197 = scmp.eq.s32.totalorder %s38, 3
    %p198 = por %p196, %p197
    %p199 = scmp.ne.s32.totalorder %s188, %s189
    %p200 = scmp.eq.s32.totalorder %s38, 0
    %p201 = por %p199, %p200
    %p202 = scmp.ne.s32.totalorder %s188, %s189
    %p203 = scmp.eq.s32.totalorder %s39, 3
    %p204 = por %p202, %p203
    %p206 = scmp.ne.s32.totalorder %s189, %s205
    %p207 = scmp.eq.s32.totalorder %s39, 0
    %p208 = por %p206, %p207
    %s209 = ssub.s32 %s40, %s52
    %p210 = scmp.eq.s32.totalorder %s209, 0
    %s212 = sadd.s32 %s211, 1
    %s213 = scalar_select %p210, %s211, %s212
    %p216 = pneg %p210
    %p217 = scmp.eq.s32.totalorder %s33, 3
    %p218 = por %p216, %p217
    %p219 = scmp.ne.s32.totalorder %s211, %s214
    %p220 = scmp.eq.s32.totalorder %s33, 0
    %p221 = por %p219, %p220
    %p222 = scmp.ne.s32.totalorder %s211, %s214
    %p223 = scmp.eq.s32.totalorder %s38, 3
    %p224 = por %p222, %p223
    %p225 = scmp.ne.s32.totalorder %s214, %s215
    %p226 = scmp.eq.s32.totalorder %s38, 0
    %p227 = por %p225, %p226
    %p228 = scmp.ne.s32.totalorder %s214, %s215
    %p229 = scmp.eq.s32.totalorder %s39, 3
    %p230 = por %p228, %p229
    %p232 = scmp.ne.s32.totalorder %s215, %s231
    %p233 = scmp.eq.s32.totalorder %s39, 0
    %p234 = por %p232, %p233
    %s235 = ssub.s32 %s40, %s52
    %p236 = scmp.eq.s32.totalorder %s235, 0
    %s238 = sadd.s32 %s237, 1
    %s239 = scalar_select %p236, %s237, %s238
    %p242 = pneg %p236
    %p243 = scmp.eq.s32.totalorder %s33, 3
    %p244 = por %p242, %p243
    %p245 = scmp.ne.s32.totalorder %s237, %s240
    %p246 = scmp.eq.s32.totalorder %s33, 0
    %p247 = por %p245, %p246
    %p248 = scmp.ne.s32.totalorder %s237, %s240
    %p249 = scmp.eq.s32.totalorder %s38, 3
    %p250 = por %p248, %p249
    %p251 = scmp.ne.s32.totalorder %s240, %s241
    %p252 = scmp.eq.s32.totalorder %s38, 0
    %p253 = por %p251, %p252
    %p254 = scmp.ne.s32.totalorder %s240, %s241
    %p255 = scmp.eq.s32.totalorder %s39, 3
    %p256 = por %p254, %p255
    %p258 = scmp.ne.s32.totalorder %s241, %s257
    %p259 = scmp.eq.s32.totalorder %s39, 0
    %p260 = por %p258, %p259
    %s261 = ssub.s32 %s40, %s52
    %p262 = scmp.eq.s32.totalorder %s261, 0
    %s264 = sadd.s32 %s263, 1
    %s265 = scalar_select %p262, %s263, %s264
    %p268 = pneg %p262
    %p269 = scmp.eq.s32.totalorder %s33, 3
    %p270 = por %p268, %p269
    %p271 = scmp.ne.s32.totalorder %s263, %s266
    %p272 = scmp.eq.s32.totalorder %s33, 0
    %p273 = por %p271, %p272
    %p274 = scmp.ne.s32.totalorder %s263, %s266
    %p275 = scmp.eq.s32.totalorder %s38, 3
    %p276 = por %p274, %p275
    %p277 = scmp.ne.s32.totalorder %s266, %s267
    %p278 = scmp.eq.s32.totalorder %s38, 0
    %p279 = por %p277, %p278
    %p280 = scmp.ne.s32.totalorder %s266, %s267
    %p281 = scmp.eq.s32.totalorder %s39, 3
    %p282 = por %p280, %p281
    %p284 = scmp.ne.s32.totalorder %s267, %s283
    %p285 = scmp.eq.s32.totalorder %s39, 0
    %p286 = por %p284, %p285
    %s287 = ssub.s32 %s40, %s52
    %p288 = scmp.eq.s32.totalorder %s287, 0
    %s290 = sadd.s32 %s289, 1
    %s291 = scalar_select %p288, %s289, %s290
    %p294 = pneg %p288
    %p295 = scmp.eq.s32.totalorder %s33, 3
    %p296 = por %p294, %p295
    %p297 = scmp.ne.s32.totalorder %s289, %s292
    %p298 = scmp.eq.s32.totalorder %s33, 0
    %p299 = por %p297, %p298
    %p300 = scmp.ne.s32.totalorder %s289, %s292
    %p301 = scmp.eq.s32.totalorder %s38, 3
    %p302 = por %p300, %p301
    %p303 = scmp.ne.s32.totalorder %s292, %s293
    %p304 = scmp.eq.s32.totalorder %s38, 0
    %p305 = por %p303, %p304
    %p306 = scmp.ne.s32.totalorder %s292, %s293
    %p307 = scmp.eq.s32.totalorder %s39, 3
    %p308 = por %p306, %p307
    %p310 = scmp.ne.s32.totalorder %s293, %s309
    %p311 = scmp.eq.s32.totalorder %s39, 0
    %p312 = por %p310, %p311
    %s313 = ssub.s32 %s40, %s52
    %p314 = scmp.eq.s32.totalorder %s313, 0
    %s316 = sadd.s32 %s315, 1
    %s317 = scalar_select %p314, %s315, %s316
    %p320 = pneg %p314
    %p321 = scmp.eq.s32.totalorder %s33, 3
    %p322 = por %p320, %p321
    %p323 = scmp.ne.s32.totalorder %s315, %s318
    %p324 = scmp.eq.s32.totalorder %s33, 0
    %p325 = por %p323, %p324
    %p326 = scmp.ne.s32.totalorder %s315, %s318
    %p327 = scmp.eq.s32.totalorder %s38, 3
    %p328 = por %p326, %p327
    %p329 = scmp.ne.s32.totalorder %s318, %s319
    %p330 = scmp.eq.s32.totalorder %s38, 0
    %p331 = por %p329, %p330
    %p332 = scmp.ne.s32.totalorder %s318, %s319
    %p333 = scmp.eq.s32.totalorder %s39, 3
    %p334 = por %p332, %p333
    %p336 = scmp.ne.s32.totalorder %s319, %s335
    %p337 = scmp.eq.s32.totalorder %s39, 0
    %p338 = por %p336, %p337
    %s339 = smul.u32 %s40, 2
    %s340 = sadd.s32 %s339, %s41
    %s341 = smul.u32 %s52, 2
    %s342 = sadd.s32 %s341, %s48
    %s343 = ssub.s32 %s340, %s342
    %p344 = scmp.eq.s32.totalorder %s343, 0
    %s346 = sadd.s32 %s345, 1
    %s347 = scalar_select %p344, %s345, %s346
    %p350 = pneg %p344
    %p351 = scmp.eq.s32.totalorder %s33, 3
    %p352 = por %p350, %p351
    %p353 = scmp.ne.s32.totalorder %s345, %s348
    %p354 = scmp.eq.s32.totalorder %s33, 0
    %p355 = por %p353, %p354
    %p356 = scmp.ne.s32.totalorder %s345, %s348
    %p357 = scmp.eq.s32.totalorder %s38, 3
    %p358 = por %p356, %p357
    %p359 = scmp.ne.s32.totalorder %s348, %s349
    %p360 = scmp.eq.s32.totalorder %s38, 0
    %p361 = por %p359, %p360
    %p362 = scmp.ne.s32.totalorder %s348, %s349
    %p363 = scmp.eq.s32.totalorder %s39, 3
    %p364 = por %p362, %p363
    %p366 = scmp.ne.s32.totalorder %s349, %s365
    %p367 = scmp.eq.s32.totalorder %s39, 0
    %p368 = por %p366, %p367
    %s369 = smul.u32 %s40, 2
    %s370 = sadd.s32 %s369, %s41
    %s371 = smul.u32 %s52, 2
    %s372 = sadd.s32 %s371, %s48
    %s373 = ssub.s32 %s370, %s372
    %p374 = scmp.eq.s32.totalorder %s373, 0
    %s376 = sadd.s32 %s375, 1
    %s377 = scalar_select %p374, %s375, %s376
    %p380 = pneg %p374
    %p381 = scmp.eq.s32.totalorder %s33, 3
    %p382 = por %p380, %p381
    %p383 = scmp.ne.s32.totalorder %s375, %s378
    %p384 = scmp.eq.s32.totalorder %s33, 0
    %p385 = por %p383, %p384
    %p386 = scmp.ne.s32.totalorder %s375, %s378
    %p387 = scmp.eq.s32.totalorder %s38, 3
    %p388 = por %p386, %p387
    %p389 = scmp.ne.s32.totalorder %s378, %s379
    %p390 = scmp.eq.s32.totalorder %s38, 0
    %p391 = por %p389, %p390
    %p392 = scmp.ne.s32.totalorder %s378, %s379
    %p393 = scmp.eq.s32.totalorder %s39, 3
    %p394 = por %p392, %p393
    %p396 = scmp.ne.s32.totalorder %s379, %s395
    %p397 = scmp.eq.s32.totalorder %s39, 0
    %p398 = por %p396, %p397
    %s399 = smul.u32 %s40, 2
    %s400 = sadd.s32 %s399, %s41
    %s401 = smul.u32 %s52, 2
    %s402 = sadd.s32 %s401, %s48
    %s403 = ssub.s32 %s400, %s402
    %p404 = scmp.eq.s32.totalorder %s403, 0
    %s406 = sadd.s32 %s405, 1
    %s407 = scalar_select %p404, %s405, %s406
    %p410 = pneg %p404
    %p411 = scmp.eq.s32.totalorder %s33, 3
    %p412 = por %p410, %p411
    %p413 = scmp.ne.s32.totalorder %s405, %s408
    %p414 = scmp.eq.s32.totalorder %s33, 0
    %p415 = por %p413, %p414
    %p416 = scmp.ne.s32.totalorder %s405, %s408
    %p417 = scmp.eq.s32.totalorder %s38, 3
    %p418 = por %p416, %p417
    %p419 = scmp.ne.s32.totalorder %s408, %s409
    %p420 = scmp.eq.s32.totalorder %s38, 0
    %p421 = por %p419, %p420
    %p422 = scmp.ne.s32.totalorder %s408, %s409
    %p423 = scmp.eq.s32.totalorder %s39, 3
    %p424 = por %p422, %p423
    %p426 = scmp.ne.s32.totalorder %s409, %s425
    %p427 = scmp.eq.s32.totalorder %s39, 0
    %p428 = por %p426, %p427
    %s429 = smul.u32 %s40, 2
    %s430 = sadd.s32 %s429, %s41
    %s431 = smul.u32 %s52, 2
    %s432 = sadd.s32 %s431, %s48
    %s433 = ssub.s32 %s430, %s432
    %p434 = scmp.eq.s32.totalorder %s433, 0
    %s436 = sadd.s32 %s435, 1
    %s437 = scalar_select %p434, %s435, %s436
    %p440 = pneg %p434
    %p441 = scmp.eq.s32.totalorder %s33, 3
    %p442 = por %p440, %p441
    %p443 = scmp.ne.s32.totalorder %s435, %s438
    %p444 = scmp.eq.s32.totalorder %s33, 0
    %p445 = por %p443, %p444
    %p446 = scmp.ne.s32.totalorder %s435, %s438
    %p447 = scmp.eq.s32.totalorder %s38, 3
    %p448 = por %p446, %p447
    %p449 = scmp.ne.s32.totalorder %s438, %s439
    %p450 = scmp.eq.s32.totalorder %s38, 0
    %p451 = por %p449, %p450
    %p452 = scmp.ne.s32.totalorder %s438, %s439
    %p453 = scmp.eq.s32.totalorder %s39, 3
    %p454 = por %p452, %p453
    %p456 = scmp.ne.s32.totalorder %s439, %s455
    %p457 = scmp.eq.s32.totalorder %s39, 0
    %p458 = por %p456, %p457
    %s459 = smul.u32 %s40, 2
    %s460 = sadd.s32 %s459, %s41
    %s461 = smul.u32 %s52, 2
    %s462 = sadd.s32 %s461, %s48
    %s463 = ssub.s32 %s460, %s462
    %p464 = scmp.eq.s32.totalorder %s463, 0
    %s466 = sadd.s32 %s465, 1
    %s467 = scalar_select %p464, %s465, %s466
    %p470 = pneg %p464
    %p471 = scmp.eq.s32.totalorder %s33, 3
    %p472 = por %p470, %p471
    %p473 = scmp.ne.s32.totalorder %s465, %s468
    %p474 = scmp.eq.s32.totalorder %s33, 0
    %p475 = por %p473, %p474
    %p476 = scmp.ne.s32.totalorder %s465, %s468
    %p477 = scmp.eq.s32.totalorder %s38, 3
    %p478 = por %p476, %p477
    %p479 = scmp.ne.s32.totalorder %s468, %s469
    %p480 = scmp.eq.s32.totalorder %s38, 0
    %p481 = por %p479, %p480
    %p482 = scmp.ne.s32.totalorder %s468, %s469
    %p483 = scmp.eq.s32.totalorder %s39, 3
    %p484 = por %p482, %p483
    %p486 = scmp.ne.s32.totalorder %s469, %s485
    %p487 = scmp.eq.s32.totalorder %s39, 0
    %p488 = por %p486, %p487
    %s489 = smul.u32 %s40, 2
    %s490 = sadd.s32 %s489, %s41
    %s491 = smul.u32 %s52, 2
    %s492 = sadd.s32 %s491, %s48
    %s493 = ssub.s32 %s490, %s492
    %p494 = scmp.eq.s32.totalorder %s493, 0
    %s496 = sadd.s32 %s495, 1
    %s497 = scalar_select %p494, %s495, %s496
    %p500 = pneg %p494
    %p501 = scmp.eq.s32.totalorder %s33, 3
    %p502 = por %p500, %p501
    %p503 = scmp.ne.s32.totalorder %s495, %s498
    %p504 = scmp.eq.s32.totalorder %s33, 0
    %p505 = por %p503, %p504
    %p506 = scmp.ne.s32.totalorder %s495, %s498
    %p507 = scmp.eq.s32.totalorder %s38, 3
    %p508 = por %p506, %p507
    %p509 = scmp.ne.s32.totalorder %s498, %s499
    %p510 = scmp.eq.s32.totalorder %s38, 0
    %p511 = por %p509, %p510
    %p512 = scmp.ne.s32.totalorder %s498, %s499
    %p513 = scmp.eq.s32.totalorder %s39, 3
    %p514 = por %p512, %p513
    %p516 = scmp.ne.s32.totalorder %s499, %s515
    %p517 = scmp.eq.s32.totalorder %s39, 0
    %p518 = por %p516, %p517
    %s519 = smul.u32 %s40, 2
    %s520 = sadd.s32 %s519, %s41
    %s521 = smul.u32 %s52, 2
    %s522 = sadd.s32 %s521, %s48
    %s523 = ssub.s32 %s520, %s522
    %p524 = scmp.eq.s32.totalorder %s523, 0
    %s526 = sadd.s32 %s525, 1
    %s527 = scalar_select %p524, %s525, %s526
    %p530 = pneg %p524
    %p531 = scmp.eq.s32.totalorder %s33, 3
    %p532 = por %p530, %p531
    %p533 = scmp.ne.s32.totalorder %s525, %s528
    %p534 = scmp.eq.s32.totalorder %s33, 0
    %p535 = por %p533, %p534
    %p536 = scmp.ne.s32.totalorder %s525, %s528
    %p537 = scmp.eq.s32.totalorder %s38, 3
    %p538 = por %p536, %p537
    %p539 = scmp.ne.s32.totalorder %s528, %s529
    %p540 = scmp.eq.s32.totalorder %s38, 0
    %p541 = por %p539, %p540
    %p542 = scmp.ne.s32.totalorder %s528, %s529
    %p543 = scmp.eq.s32.totalorder %s39, 3
    %p544 = por %p542, %p543
    %p546 = scmp.ne.s32.totalorder %s529, %s545
    %p547 = scmp.eq.s32.totalorder %s39, 0
    %p548 = por %p546, %p547
    %s549 = smul.u32 %s40, 2
    %s550 = sadd.s32 %s549, %s41
    %s551 = smul.u32 %s52, 2
    %s552 = sadd.s32 %s551, %s48
    %s553 = ssub.s32 %s550, %s552
    %p554 = scmp.eq.s32.totalorder %s553, 0
    %s556 = sadd.s32 %s555, 1
    %s557 = scalar_select %p554, %s555, %s556
    %p560 = pneg %p554
    %p561 = scmp.eq.s32.totalorder %s33, 3
    %p562 = por %p560, %p561
    %p563 = scmp.ne.s32.totalorder %s555, %s558
    %p564 = scmp.eq.s32.totalorder %s33, 0
    %p565 = por %p563, %p564
    %p566 = scmp.ne.s32.totalorder %s555, %s558
    %p567 = scmp.eq.s32.totalorder %s38, 3
    %p568 = por %p566, %p567
    %p569 = scmp.ne.s32.totalorder %s558, %s559
    %p570 = scmp.eq.s32.totalorder %s38, 0
    %p571 = por %p569, %p570
    %p572 = scmp.ne.s32.totalorder %s558, %s559
    %p573 = scmp.eq.s32.totalorder %s39, 3
    %p574 = por %p572, %p573
    %p576 = scmp.ne.s32.totalorder %s559, %s575
    %p577 = scmp.eq.s32.totalorder %s39, 0
    %p578 = por %p576, %p577
    %s579 = smul.u32 %s40, 2
    %s580 = sadd.s32 %s579, %s41
    %s581 = smul.u32 %s52, 2
    %s582 = sadd.s32 %s581, %s48
    %s583 = ssub.s32 %s580, %s582
    %p584 = scmp.eq.s32.totalorder %s583, 0
    %s586 = sadd.s32 %s585, 1
    %s587 = scalar_select %p584, %s585, %s586
    %p590 = pneg %p584
    %p591 = scmp.eq.s32.totalorder %s33, 3
    %p592 = por %p590, %p591
    %p593 = scmp.ne.s32.totalorder %s585, %s588
    %p594 = scmp.eq.s32.totalorder %s33, 0
    %p595 = por %p593, %p594
    %p596 = scmp.ne.s32.totalorder %s585, %s588
    %p597 = scmp.eq.s32.totalorder %s38, 3
    %p598 = por %p596, %p597
    %p599 = scmp.ne.s32.totalorder %s588, %s589
    %p600 = scmp.eq.s32.totalorder %s38, 0
    %p601 = por %p599, %p600
    %p602 = scmp.ne.s32.totalorder %s588, %s589
    %p603 = scmp.eq.s32.totalorder %s39, 3
    %p604 = por %p602, %p603
    %p606 = scmp.ne.s32.totalorder %s589, %s605
    %p607 = scmp.eq.s32.totalorder %s39, 0
    %p608 = por %p606, %p607
    %s609 = smul.u32 %s40, 2
    %s610 = sadd.s32 %s609, %s41
    %s611 = smul.u32 %s52, 2
    %s612 = sadd.s32 %s611, %s48
    %s613 = ssub.s32 %s610, %s612
    %p614 = scmp.eq.s32.totalorder %s613, 0
    %s616 = sadd.s32 %s615, 1
    %s617 = scalar_select %p614, %s615, %s616
    %p620 = pneg %p614
    %p621 = scmp.eq.s32.totalorder %s33, 3
    %p622 = por %p620, %p621
    %p623 = scmp.ne.s32.totalorder %s615, %s618
    %p624 = scmp.eq.s32.totalorder %s33, 0
    %p625 = por %p623, %p624
    %p626 = scmp.ne.s32.totalorder %s615, %s618
    %p627 = scmp.eq.s32.totalorder %s38, 3
    %p628 = por %p626, %p627
    %p629 = scmp.ne.s32.totalorder %s618, %s619
    %p630 = scmp.eq.s32.totalorder %s38, 0
    %p631 = por %p629, %p630
    %p632 = scmp.ne.s32.totalorder %s618, %s619
    %p633 = scmp.eq.s32.totalorder %s39, 3
    %p634 = por %p632, %p633
    %p636 = scmp.ne.s32.totalorder %s619, %s635
    %p637 = scmp.eq.s32.totalorder %s39, 0
    %p638 = por %p636, %p637
    %s639 = smul.u32 %s40, 2
    %s640 = sadd.s32 %s639, %s41
    %s641 = smul.u32 %s52, 2
    %s642 = sadd.s32 %s641, %s48
    %s643 = ssub.s32 %s640, %s642
    %p644 = scmp.eq.s32.totalorder %s643, 0
    %s646 = sadd.s32 %s645, 1
    %s647 = scalar_select %p644, %s645, %s646
    %p650 = pneg %p644
    %p651 = scmp.eq.s32.totalorder %s33, 3
    %p652 = por %p650, %p651
    %p653 = scmp.ne.s32.totalorder %s645, %s648
    %p654 = scmp.eq.s32.totalorder %s33, 0
    %p655 = por %p653, %p654
    %p656 = scmp.ne.s32.totalorder %s645, %s648
    %p657 = scmp.eq.s32.totalorder %s38, 3
    %p658 = por %p656, %p657
    %p659 = scmp.ne.s32.totalorder %s648, %s649
    %p660 = scmp.eq.s32.totalorder %s38, 0
    %p661 = por %p659, %p660
    %p662 = scmp.ne.s32.totalorder %s648, %s649
    %p663 = scmp.eq.s32.totalorder %s39, 3
    %p664 = por %p662, %p663
    %p666 = scmp.ne.s32.totalorder %s649, %s665
    %p667 = scmp.eq.s32.totalorder %s39, 0
    %p668 = por %p666, %p667
    %s669 = smul.u32 %s40, 2
    %s670 = sadd.s32 %s669, %s41
    %s671 = smul.u32 %s52, 2
    %s672 = sadd.s32 %s671, %s48
    %s673 = ssub.s32 %s670, %s672
    %p674 = scmp.eq.s32.totalorder %s673, 0
    %s676 = sadd.s32 %s675, 1
    %s677 = scalar_select %p674, %s675, %s676
    %p680 = pneg %p674
    %p681 = scmp.eq.s32.totalorder %s33, 3
    %p682 = por %p680, %p681
    %p683 = scmp.ne.s32.totalorder %s675, %s678
    %p684 = scmp.eq.s32.totalorder %s33, 0
    %p685 = por %p683, %p684
    %p686 = scmp.ne.s32.totalorder %s675, %s678
    %p687 = scmp.eq.s32.totalorder %s38, 3
    %p688 = por %p686, %p687
    %p689 = scmp.ne.s32.totalorder %s678, %s679
    %p690 = scmp.eq.s32.totalorder %s38, 0
    %p691 = por %p689, %p690
    %p692 = scmp.ne.s32.totalorder %s678, %s679
    %p693 = scmp.eq.s32.totalorder %s39, 3
    %p694 = por %p692, %p693
    %p696 = scmp.ne.s32.totalorder %s679, %s695
    %p697 = scmp.eq.s32.totalorder %s39, 0
    %p698 = por %p696, %p697
    %s699 = ssub.s32 %s40, %s52
    %p700 = scmp.eq.s32.totalorder %s699, 0
    %s702 = sadd.s32 %s701, 1
    %s703 = scalar_select %p700, %s701, %s702
    %p706 = pneg %p700
    %p707 = scmp.eq.s32.totalorder %s33, 3
    %p708 = por %p706, %p707
    %p709 = scmp.ne.s32.totalorder %s701, %s704
    %p710 = scmp.eq.s32.totalorder %s33, 0
    %p711 = por %p709, %p710
    %p712 = scmp.ne.s32.totalorder %s701, %s704
    %p713 = scmp.eq.s32.totalorder %s38, 3
    %p714 = por %p712, %p713
    %p715 = scmp.ne.s32.totalorder %s704, %s705
    %p716 = scmp.eq.s32.totalorder %s38, 0
    %p717 = por %p715, %p716
    %p718 = scmp.ne.s32.totalorder %s704, %s705
    %p719 = scmp.eq.s32.totalorder %s39, 3
    %p720 = por %p718, %p719
    %p722 = scmp.ne.s32.totalorder %s705, %s721
    %p723 = scmp.eq.s32.totalorder %s39, 0
    %p724 = por %p722, %p723
    %s725 = ssub.s32 %s40, %s52
    %p726 = scmp.eq.s32.totalorder %s725, 0
    %s728 = sadd.s32 %s727, 1
    %s729 = scalar_select %p726, %s727, %s728
    %p732 = pneg %p726
    %p733 = scmp.eq.s32.totalorder %s33, 3
    %p734 = por %p732, %p733
    %p735 = scmp.ne.s32.totalorder %s727, %s730
    %p736 = scmp.eq.s32.totalorder %s33, 0
    %p737 = por %p735, %p736
    %p738 = scmp.ne.s32.totalorder %s727, %s730
    %p739 = scmp.eq.s32.totalorder %s38, 3
    %p740 = por %p738, %p739
    %p741 = scmp.ne.s32.totalorder %s730, %s731
    %p742 = scmp.eq.s32.totalorder %s38, 0
    %p743 = por %p741, %p742
    %p744 = scmp.ne.s32.totalorder %s730, %s731
    %p745 = scmp.eq.s32.totalorder %s39, 3
    %p746 = por %p744, %p745
    %p748 = scmp.ne.s32.totalorder %s731, %s747
    %p749 = scmp.eq.s32.totalorder %s39, 0
    %p750 = por %p748, %p749
    %s751 = ssub.s32 %s40, %s52
    %p752 = scmp.eq.s32.totalorder %s751, 0
    %s754 = sadd.s32 %s753, 1
    %s755 = scalar_select %p752, %s753, %s754
    %p758 = pneg %p752
    %p759 = scmp.eq.s32.totalorder %s33, 3
    %p760 = por %p758, %p759
    %p761 = scmp.ne.s32.totalorder %s753, %s756
    %p762 = scmp.eq.s32.totalorder %s33, 0
    %p763 = por %p761, %p762
    %p764 = scmp.ne.s32.totalorder %s753, %s756
    %p765 = scmp.eq.s32.totalorder %s38, 3
    %p766 = por %p764, %p765
    %p767 = scmp.ne.s32.totalorder %s756, %s757
    %p768 = scmp.eq.s32.totalorder %s38, 0
    %p769 = por %p767, %p768
    %p770 = scmp.ne.s32.totalorder %s756, %s757
    %p771 = scmp.eq.s32.totalorder %s39, 3
    %p772 = por %p770, %p771
    %p774 = scmp.ne.s32.totalorder %s757, %s773
    %p775 = scmp.eq.s32.totalorder %s39, 0
    %p776 = por %p774, %p775
    %s777 = ssub.s32 %s40, %s52
    %p778 = scmp.eq.s32.totalorder %s777, 0
    %s780 = sadd.s32 %s779, 1
    %s781 = scalar_select %p778, %s779, %s780
    %p784 = pneg %p778
    %p785 = scmp.eq.s32.totalorder %s33, 3
    %p786 = por %p784, %p785
    %p787 = scmp.ne.s32.totalorder %s779, %s782
    %p788 = scmp.eq.s32.totalorder %s33, 0
    %p789 = por %p787, %p788
    %p790 = scmp.ne.s32.totalorder %s779, %s782
    %p791 = scmp.eq.s32.totalorder %s38, 3
    %p792 = por %p790, %p791
    %p793 = scmp.ne.s32.totalorder %s782, %s783
    %p794 = scmp.eq.s32.totalorder %s38, 0
    %p795 = por %p793, %p794
    %p796 = scmp.ne.s32.totalorder %s782, %s783
    %p797 = scmp.eq.s32.totalorder %s39, 3
    %p798 = por %p796, %p797
    %p800 = scmp.ne.s32.totalorder %s783, %s799
    %p801 = scmp.eq.s32.totalorder %s39, 0
    %p802 = por %p800, %p801
    %s803 = ssub.s32 %s40, %s52
    %p804 = scmp.eq.s32.totalorder %s803, 0
    %s806 = sadd.s32 %s805, 1
    %s807 = scalar_select %p804, %s805, %s806
    %p810 = pneg %p804
    %p811 = scmp.eq.s32.totalorder %s33, 3
    %p812 = por %p810, %p811
    %p813 = scmp.ne.s32.totalorder %s805, %s808
    %p814 = scmp.eq.s32.totalorder %s33, 0
    %p815 = por %p813, %p814
    %p816 = scmp.ne.s32.totalorder %s805, %s808
    %p817 = scmp.eq.s32.totalorder %s38, 3
    %p818 = por %p816, %p817
    %p819 = scmp.ne.s32.totalorder %s808, %s809
    %p820 = scmp.eq.s32.totalorder %s38, 0
    %p821 = por %p819, %p820
    %p822 = scmp.ne.s32.totalorder %s808, %s809
    %p823 = scmp.eq.s32.totalorder %s39, 3
    %p824 = por %p822, %p823
    %p826 = scmp.ne.s32.totalorder %s809, %s825
    %p827 = scmp.eq.s32.totalorder %s39, 0
    %p828 = por %p826, %p827
    %p829 = scmp.le.s32.totalorder 1, %s33
    %p830 = scmp.lt.s32.totalorder %s33, 5
    %p831 = pnand %p829, %p830
    %p832 = pneg %p831
    // Predicated region
    $region9: #{motion_transformer_forward.1} parent=5 // pred_check
      _
    $region10: #{motion_transformer_forward.1} parent=5 // pred_check_branch
      %834 = sbr.rel (%p831) target = $region12
    $region11: #{motion_transformer_forward.1} parent=5 // pred_region
      %s835 = ssub.s32 %s33, 1
    $region12: #{motion_transformer_forward.1} parent=5 // pred_fallthru
      _
    %p836 = scmp.lt.s32.totalorder %s33, 4
    // Predicated region
    $region13: #{motion_transformer_forward.1} parent=5 // pred_check
      %p837 = pneg %p836
    $region14: #{motion_transformer_forward.1} parent=5 // pred_check_branch
      %839 = sbr.rel (%p837) target = $region16
    $region15: #{motion_transformer_forward.1} parent=5 // pred_region
      // Predicated region
      $region17: #{motion_transformer_forward.1} parent=15 // pred_check
        %p840 = pneg %p65
      $region18: #{motion_transformer_forward.1} parent=15 // pred_check_branch
        %842 = sbr.rel (%p840) target = $region20
      $region19: #{motion_transformer_forward.1} parent=15 // pred_region
        %p843 = scmp.lt.s32.totalorder %s40, 1
        %s844 = scalar_select %p843, %s40, 1
        %s845 = scalar_lea.vmem %s0, %s844
      $region20: #{motion_transformer_forward.1} parent=15 // pred_fallthru
        _
      // Predicated region
      $region21: #{motion_transformer_forward.1} parent=15 // pred_check
        %p846 = pneg %p91
      $region22: #{motion_transformer_forward.1} parent=15 // pred_check_branch
        %848 = sbr.rel (%p846) target = $region24
      $region23: #{motion_transformer_forward.1} parent=15 // pred_region
        %p849 = scmp.lt.s32.totalorder %s40, 1
        %s850 = scalar_select %p849, %s40, 1
        %s851 = smul.addr %s850, 2
        %s852 = smul.addr %s851, 8
        %s853 = scalar_lea.vmem %s1, %s852
      $region24: #{motion_transformer_forward.1} parent=15 // pred_fallthru
        _
      // Predicated region
      $region25: #{motion_transformer_forward.1} parent=15 // pred_check
        %p854 = pneg %p117
      $region26: #{motion_transformer_forward.1} parent=15 // pred_check_branch
        %856 = sbr.rel (%p854) target = $region28
      $region27: #{motion_transformer_forward.1} parent=15 // pred_region
        %p857 = scmp.lt.s32.totalorder %s40, 1
        %s858 = scalar_select %p857, %s40, 1
        %s859 = smul.addr %s858, 2
        %s860 = smul.addr %s859, 8
        %s861 = scalar_lea.vmem %s2, %s860
      $region28: #{motion_transformer_forward.1} parent=15 // pred_fallthru
        _
      // Predicated region
      $region29: #{motion_transformer_forward.1} parent=15 // pred_check
        %p862 = pneg %p143
      $region30: #{motion_transformer_forward.1} parent=15 // pred_check_branch
        %864 = sbr.rel (%p862) target = $region32
      $region31: #{motion_transformer_forward.1} parent=15 // pred_region
        %p865 = scmp.lt.s32.totalorder %s40, 1
        %s866 = scalar_select %p865, %s40, 1
        %s867 = smul.addr %s866, 2
        %s868 = smul.addr %s867, 4
        %s869 = scalar_lea.vmem %s3, %s868
      $region32: #{motion_transformer_forward.1} parent=15 // pred_fallthru
        _
      // Predicated region
      $region33: #{motion_transformer_forward.1} parent=15 // pred_check
        %p870 = pneg %p169
      $region34: #{motion_transformer_forward.1} parent=15 // pred_check_branch
        %872 = sbr.rel (%p870) target = $region36
      $region35: #{motion_transformer_forward.1} parent=15 // pred_region
        %p873 = scmp.lt.s32.totalorder %s40, 1
        %s874 = scalar_select %p873, %s40, 1
        %s875 = smul.addr %s874, 2
        %s876 = smul.addr %s875, 8
        %s877 = scalar_lea.vmem %s4, %s876
      $region36: #{motion_transformer_forward.1} parent=15 // pred_fallthru
        _
      // Predicated region
      $region37: #{motion_transformer_forward.1} parent=15 // pred_check
        %p878 = pneg %p195
      $region38: #{motion_transformer_forward.1} parent=15 // pred_check_branch
        %880 = sbr.rel (%p878) target = $region40
      $region39: #{motion_transformer_forward.1} parent=15 // pred_region
        %p881 = scmp.lt.s32.totalorder %s40, 1
        %s882 = scalar_select %p881, %s40, 1
        %s883 = smul.addr %s882, 3
        %s884 = smul.addr %s883, 4
        %s885 = scalar_lea.vmem %s5, %s884
      $region40: #{motion_transformer_forward.1} parent=15 // pred_fallthru
        _
      // Predicated region
      $region41: #{motion_transformer_forward.1} parent=15 // pred_check
        %p886 = pneg %p221
      $region42: #{motion_transformer_forward.1} parent=15 // pred_check_branch
        %888 = sbr.rel (%p886) target = $region44
      $region43: #{motion_transformer_forward.1} parent=15 // pred_region
        %p889 = scmp.lt.s32.totalorder %s40, 1
        %s890 = scalar_select %p889, %s40, 1
        %s891 = scalar_lea.vmem %s6, %s890
      $region44: #{motion_transformer_forward.1} parent=15 // pred_fallthru
        _
      // Predicated region
      $region45: #{motion_transformer_forward.1} parent=15 // pred_check
        %p892 = pneg %p247
      $region46: #{motion_transformer_forward.1} parent=15 // pred_check_branch
        %894 = sbr.rel (%p892) target = $region48
      $region47: #{motion_transformer_forward.1} parent=15 // pred_region
        %p895 = scmp.lt.s32.totalorder %s40, 1
        %s896 = scalar_select %p895, %s40, 1
        %s897 = smul.addr %s896, 4
        %s898 = smul.addr %s897, 4
        %s899 = scalar_lea.vmem %s7, %s898
      $region48: #{motion_transformer_forward.1} parent=15 // pred_fallthru
        _
      // Predicated region
      $region49: #{motion_transformer_forward.1} parent=15 // pred_check
        %p900 = pneg %p273
      $region50: #{motion_transformer_forward.1} parent=15 // pred_check_branch
        %902 = sbr.rel (%p900) target = $region52
      $region51: #{motion_transformer_forward.1} parent=15 // pred_region
        %p903 = scmp.lt.s32.totalorder %s40, 1
        %s904 = scalar_select %p903, %s40, 1
        %s905 = scalar_lea.vmem %s8, %s904
      $region52: #{motion_transformer_forward.1} parent=15 // pred_fallthru
        _
      // Predicated region
      $region53: #{motion_transformer_forward.1} parent=15 // pred_check
        %p906 = pneg %p299
      $region54: #{motion_transformer_forward.1} parent=15 // pred_check_branch
        %908 = sbr.rel (%p906) target = $region56
      $region55: #{motion_transformer_forward.1} parent=15 // pred_region
        %p909 = scmp.lt.s32.totalorder %s40, 1
        %s910 = scalar_select %p909, %s40, 1
        %s911 = smul.addr %s910, 16
        %s912 = smul.addr %s911, 4
        %s913 = scalar_lea.vmem %s9, %s912
      $region56: #{motion_transformer_forward.1} parent=15 // pred_fallthru
        _
      // Predicated region
      $region57: #{motion_transformer_forward.1} parent=15 // pred_check
        %p914 = pneg %p325
      $region58: #{motion_transformer_forward.1} parent=15 // pred_check_branch
        %916 = sbr.rel (%p914) target = $region60
      $region59: #{motion_transformer_forward.1} parent=15 // pred_region
        %p917 = scmp.lt.s32.totalorder %s40, 1
        %s918 = scalar_select %p917, %s40, 1
        %s919 = scalar_lea.vmem %s10, %s918
      $region60: #{motion_transformer_forward.1} parent=15 // pred_fallthru
        _
      // Predicated region
      $region61: #{motion_transformer_forward.1} parent=15 // pred_check
        %p920 = pneg %p355
      $region62: #{motion_transformer_forward.1} parent=15 // pred_check_branch
        %922 = sbr.rel (%p920) target = $region64
      $region63: #{motion_transformer_forward.1} parent=15 // pred_region
        %s923 = smul.u32 %s40, 2
        %s924 = sadd.s32 %s923, %s41
        %p925 = scmp.lt.s32.totalorder %s924, 3
        %s926 = scalar_select %p925, %s924, 3
        %s927 = scalar_lea.vmem %s11, %s926
        %s928 = smul.u32 %s40, 2
        %s929 = sadd.s32 %s928, %s41
      $region64: #{motion_transformer_forward.1} parent=15 // pred_fallthru
        _
      // Predicated region
      $region65: #{motion_transformer_forward.1} parent=15 // pred_check
        %p930 = pneg %p385
      $region66: #{motion_transformer_forward.1} parent=15 // pred_check_branch
        %932 = sbr.rel (%p930) target = $region68
      $region67: #{motion_transformer_forward.1} parent=15 // pred_region
        %s933 = smul.u32 %s40, 2
        %s934 = sadd.s32 %s933, %s41
        %p935 = scmp.lt.s32.totalorder %s934, 3
        %s936 = scalar_select %p935, %s934, 3
        %s937 = scalar_lea.vmem %s12, %s936
        %s938 = smul.u32 %s40, 2
        %s939 = sadd.s32 %s938, %s41
      $region68: #{motion_transformer_forward.1} parent=15 // pred_fallthru
        _
      // Predicated region
      $region69: #{motion_transformer_forward.1} parent=15 // pred_check
        %p940 = pneg %p415
      $region70: #{motion_transformer_forward.1} parent=15 // pred_check_branch
        %942 = sbr.rel (%p940) target = $region72
      $region71: #{motion_transformer_forward.1} parent=15 // pred_region
        %s943 = smul.u32 %s40, 2
        %s944 = sadd.s32 %s943, %s41
        %p945 = scmp.lt.s32.totalorder %s944, 3
        %s946 = scalar_select %p945, %s944, 3
        %s947 = smul.addr %s946, 4
        %s948 = smul.addr %s947, 4
        %s949 = scalar_lea.vmem %s13, %s948
        %s950 = smul.u32 %s40, 2
        %s951 = sadd.s32 %s950, %s41
      $region72: #{motion_transformer_forward.1} parent=15 // pred_fallthru
        _
      // Predicated region
      $region73: #{motion_transformer_forward.1} parent=15 // pred_check
        %p952 = pneg %p445
      $region74: #{motion_transformer_forward.1} parent=15 // pred_check_branch
        %954 = sbr.rel (%p952) target = $region76
      $region75: #{motion_transformer_forward.1} parent=15 // pred_region
        %s955 = smul.u32 %s40, 2
        %s956 = sadd.s32 %s955, %s41
        %p957 = scmp.lt.s32.totalorder %s956, 3
        %s958 = scalar_select %p957, %s956, 3
        %s959 = scalar_lea.vmem %s14, %s958
        %s960 = smul.u32 %s40, 2
        %s961 = sadd.s32 %s960, %s41
      $region76: #{motion_transformer_forward.1} parent=15 // pred_fallthru
        _
      // Predicated region
      $region77: #{motion_transformer_forward.1} parent=15 // pred_check
        %p962 = pneg %p475
      $region78: #{motion_transformer_forward.1} parent=15 // pred_check_branch
        %964 = sbr.rel (%p962) target = $region80
      $region79: #{motion_transformer_forward.1} parent=15 // pred_region
        %s965 = smul.u32 %s40, 2
        %s966 = sadd.s32 %s965, %s41
        %p967 = scmp.lt.s32.totalorder %s966, 3
        %s968 = scalar_select %p967, %s966, 3
        %s969 = smul.addr %s968, 4
        %s970 = smul.addr %s969, 4
        %s971 = scalar_lea.vmem %s15, %s970
        %s972 = smul.u32 %s40, 2
        %s973 = sadd.s32 %s972, %s41
      $region80: #{motion_transformer_forward.1} parent=15 // pred_fallthru
        _
      // Predicated region
      $region81: #{motion_transformer_forward.1} parent=15 // pred_check
        %p974 = pneg %p505
      $region82: #{motion_transformer_forward.1} parent=15 // pred_check_branch
        %976 = sbr.rel (%p974) target = $region84
      $region83: #{motion_transformer_forward.1} parent=15 // pred_region
        %s977 = smul.u32 %s40, 2
        %s978 = sadd.s32 %s977, %s41
        %p979 = scmp.lt.s32.totalorder %s978, 3
        %s980 = scalar_select %p979, %s978, 3
        %s981 = scalar_lea.vmem %s16, %s980
        %s982 = smul.u32 %s40, 2
        %s983 = sadd.s32 %s982, %s41
      $region84: #{motion_transformer_forward.1} parent=15 // pred_fallthru
        _
      // Predicated region
      $region85: #{motion_transformer_forward.1} parent=15 // pred_check
        %p984 = pneg %p535
      $region86: #{motion_transformer_forward.1} parent=15 // pred_check_branch
        %986 = sbr.rel (%p984) target = $region88
      $region87: #{motion_transformer_forward.1} parent=15 // pred_region
        %s987 = smul.u32 %s40, 2
        %s988 = sadd.s32 %s987, %s41
        %p989 = scmp.lt.s32.totalorder %s988, 3
        %s990 = scalar_select %p989, %s988, 3
        %s991 = scalar_lea.vmem %s17, %s990
        %s992 = smul.u32 %s40, 2
        %s993 = sadd.s32 %s992, %s41
      $region88: #{motion_transformer_forward.1} parent=15 // pred_fallthru
        _
      // Predicated region
      $region89: #{motion_transformer_forward.1} parent=15 // pred_check
        %p994 = pneg %p565
      $region90: #{motion_transformer_forward.1} parent=15 // pred_check_branch
        %996 = sbr.rel (%p994) target = $region92
      $region91: #{motion_transformer_forward.1} parent=15 // pred_region
        %s997 = smul.u32 %s40, 2
        %s998 = sadd.s32 %s997, %s41
        %p999 = scmp.lt.s32.totalorder %s998, 3
        %s1000 = scalar_select %p999, %s998, 3
        %s1001 = scalar_lea.vmem %s18, %s1000
        %s1002 = smul.u32 %s40, 2
        %s1003 = sadd.s32 %s1002, %s41
      $region92: #{motion_transformer_forward.1} parent=15 // pred_fallthru
        _
      // Predicated region
      $region93: #{motion_transformer_forward.1} parent=15 // pred_check
        %p1004 = pneg %p595
      $region94: #{motion_transformer_forward.1} parent=15 // pred_check_branch
        %1006 = sbr.rel (%p1004) target = $region96
      $region95: #{motion_transformer_forward.1} parent=15 // pred_region
        %s1007 = smul.u32 %s40, 2
        %s1008 = sadd.s32 %s1007, %s41
        %p1009 = scmp.lt.s32.totalorder %s1008, 3
        %s1010 = scalar_select %p1009, %s1008, 3
        %s1011 = smul.addr %s1010, 4
        %s1012 = smul.addr %s1011, 4
        %s1013 = scalar_lea.vmem %s19, %s1012
        %s1014 = smul.u32 %s40, 2
        %s1015 = sadd.s32 %s1014, %s41
      $region96: #{motion_transformer_forward.1} parent=15 // pred_fallthru
        _
      // Predicated region
      $region97: #{motion_transformer_forward.1} parent=15 // pred_check
        %p1016 = pneg %p625
      $region98: #{motion_transformer_forward.1} parent=15 // pred_check_branch
        %1018 = sbr.rel (%p1016) target = $region100
      $region99: #{motion_transformer_forward.1} parent=15 // pred_region
        %s1019 = smul.u32 %s40, 2
        %s1020 = sadd.s32 %s1019, %s41
        %p1021 = scmp.lt.s32.totalorder %s1020, 3
        %s1022 = scalar_select %p1021, %s1020, 3
        %s1023 = scalar_lea.vmem %s20, %s1022
        %s1024 = smul.u32 %s40, 2
        %s1025 = sadd.s32 %s1024, %s41
      $region100: #{motion_transformer_forward.1} parent=15 // pred_fallthru
        _
      // Predicated region
      $region101: #{motion_transformer_forward.1} parent=15 // pred_check
        %p1026 = pneg %p655
      $region102: #{motion_transformer_forward.1} parent=15 // pred_check_branch
        %1028 = sbr.rel (%p1026) target = $region104
      $region103: #{motion_transformer_forward.1} parent=15 // pred_region
        %s1029 = smul.u32 %s40, 2
        %s1030 = sadd.s32 %s1029, %s41
        %p1031 = scmp.lt.s32.totalorder %s1030, 3
        %s1032 = scalar_select %p1031, %s1030, 3
        %s1033 = smul.addr %s1032, 8
        %s1034 = smul.addr %s1033, 4
        %s1035 = scalar_lea.vmem %s21, %s1034
        %s1036 = smul.u32 %s40, 2
        %s1037 = sadd.s32 %s1036, %s41
      $region104: #{motion_transformer_forward.1} parent=15 // pred_fallthru
        _
      // Predicated region
      $region105: #{motion_transformer_forward.1} parent=15 // pred_check
        %p1038 = pneg %p685
      $region106: #{motion_transformer_forward.1} parent=15 // pred_check_branch
        %1040 = sbr.rel (%p1038) target = $region108
      $region107: #{motion_transformer_forward.1} parent=15 // pred_region
        %s1041 = smul.u32 %s40, 2
        %s1042 = sadd.s32 %s1041, %s41
        %p1043 = scmp.lt.s32.totalorder %s1042, 3
        %s1044 = scalar_select %p1043, %s1042, 3
        %s1045 = scalar_lea.vmem %s22, %s1044
        %s1046 = smul.u32 %s40, 2
        %s1047 = sadd.s32 %s1046, %s41
      $region108: #{motion_transformer_forward.1} parent=15 // pred_fallthru
        _
      // Predicated region
      $region109: #{motion_transformer_forward.1} parent=15 // pred_check
        %p1048 = pneg %p711
      $region110: #{motion_transformer_forward.1} parent=15 // pred_check_branch
        %1050 = sbr.rel (%p1048) target = $region112
      $region111: #{motion_transformer_forward.1} parent=15 // pred_region
        %p1051 = scmp.lt.s32.totalorder %s40, 1
        %s1052 = scalar_select %p1051, %s40, 1
        %s1053 = scalar_lea.vmem %s23, %s1052
      $region112: #{motion_transformer_forward.1} parent=15 // pred_fallthru
        _
      // Predicated region
      $region113: #{motion_transformer_forward.1} parent=15 // pred_check
        %p1054 = pneg %p737
      $region114: #{motion_transformer_forward.1} parent=15 // pred_check_branch
        %1056 = sbr.rel (%p1054) target = $region116
      $region115: #{motion_transformer_forward.1} parent=15 // pred_region
        %p1057 = scmp.lt.s32.totalorder %s40, 1
        %s1058 = scalar_select %p1057, %s40, 1
        %s1059 = scalar_lea.vmem %s24, %s1058
      $region116: #{motion_transformer_forward.1} parent=15 // pred_fallthru
        _
      // Predicated region
      $region117: #{motion_transformer_forward.1} parent=15 // pred_check
        %p1060 = pneg %p763
      $region118: #{motion_transformer_forward.1} parent=15 // pred_check_branch
        %1062 = sbr.rel (%p1060) target = $region120
      $region119: #{motion_transformer_forward.1} parent=15 // pred_region
        %p1063 = scmp.lt.s32.totalorder %s40, 1
        %s1064 = scalar_select %p1063, %s40, 1
        %s1065 = smul.addr %s1064, 4
        %s1066 = smul.addr %s1065, 4
        %s1067 = scalar_lea.vmem %s25, %s1066
      $region120: #{motion_transformer_forward.1} parent=15 // pred_fallthru
        _
      // Predicated region
      $region121: #{motion_transformer_forward.1} parent=15 // pred_check
        %p1068 = pneg %p789
      $region122: #{motion_transformer_forward.1} parent=15 // pred_check_branch
        %1070 = sbr.rel (%p1068) target = $region124
      $region123: #{motion_transformer_forward.1} parent=15 // pred_region
        %p1071 = scmp.lt.s32.totalorder %s40, 1
        %s1072 = scalar_select %p1071, %s40, 1
        %s1073 = scalar_lea.vmem %s26, %s1072
      $region124: #{motion_transformer_forward.1} parent=15 // pred_fallthru
        _
    $region16: #{motion_transformer_forward.1} parent=5 // pred_fallthru
      _
    %p1074 = scmp.le.s32.totalorder 1, %s33
    %p1075 = scmp.lt.s32.totalorder %s33, 5
    %p1076 = pnand %p1074, %p1075
    %p1077 = pneg %p1076
    // Predicated region
    $region125: #{motion_transformer_forward.1} parent=5 // pred_check
      _
    $region126: #{motion_transformer_forward.1} parent=5 // pred_check_branch
      %1079 = sbr.rel (%p1076) target = $region128
    $region127: #{motion_transformer_forward.1} parent=5 // pred_region
      %s1080 = ssub.s32 %s33, 1
      %p1081 = scmp.lt.s32.totalorder %s42, 1
      %s1082 = scalar_select %p1081, %s42, 1
      %s1083 = scalar_lea.vmem %s0, %s1082
      %p1084 = pneg %p71
      %p1085 = pneg %p68
      %p1086 = scmp.lt.s32.totalorder %s42, 1
      %s1087 = scalar_select %p1086, %s42, 1
      %s1088 = smul.addr %s1087, 2
      %s1089 = smul.addr %s1088, 8
      %s1090 = scalar_lea.vmem %s1, %s1089
      %p1091 = pneg %p97
      %p1092 = pneg %p94
      %p1093 = scmp.lt.s32.totalorder %s42, 1
      %s1094 = scalar_select %p1093, %s42, 1
      %s1095 = smul.addr %s1094, 2
      %s1096 = smul.addr %s1095, 8
      %s1097 = scalar_lea.vmem %s2, %s1096
      %p1098 = pneg %p123
      %p1099 = pneg %p120
      %p1100 = scmp.lt.s32.totalorder %s42, 1
      %s1101 = scalar_select %p1100, %s42, 1
      %s1102 = smul.addr %s1101, 2
      %s1103 = smul.addr %s1102, 4
      %s1104 = scalar_lea.vmem %s3, %s1103
      %p1105 = pneg %p149
      %p1106 = pneg %p146
      %p1107 = scmp.lt.s32.totalorder %s42, 1
      %s1108 = scalar_select %p1107, %s42, 1
      %s1109 = smul.addr %s1108, 2
      %s1110 = smul.addr %s1109, 8
      %s1111 = scalar_lea.vmem %s4, %s1110
      %p1112 = pneg %p175
      %p1113 = pneg %p172
      %p1114 = scmp.lt.s32.totalorder %s42, 1
      %s1115 = scalar_select %p1114, %s42, 1
      %s1116 = smul.addr %s1115, 3
      %s1117 = smul.addr %s1116, 4
      %s1118 = scalar_lea.vmem %s5, %s1117
      %p1119 = pneg %p201
      %p1120 = pneg %p198
      %p1121 = scmp.lt.s32.totalorder %s42, 1
      %s1122 = scalar_select %p1121, %s42, 1
      %s1123 = scalar_lea.vmem %s6, %s1122
      %p1124 = pneg %p227
      %p1125 = pneg %p224
      %p1126 = scmp.lt.s32.totalorder %s42, 1
      %s1127 = scalar_select %p1126, %s42, 1
      %s1128 = smul.addr %s1127, 4
      %s1129 = smul.addr %s1128, 4
      %s1130 = scalar_lea.vmem %s7, %s1129
      %p1131 = pneg %p253
      %p1132 = pneg %p250
      %p1133 = scmp.lt.s32.totalorder %s42, 1
      %s1134 = scalar_select %p1133, %s42, 1
      %s1135 = scalar_lea.vmem %s8, %s1134
      %p1136 = pneg %p279
      %p1137 = pneg %p276
      %p1138 = scmp.lt.s32.totalorder %s42, 1
      %s1139 = scalar_select %p1138, %s42, 1
      %s1140 = smul.addr %s1139, 16
      %s1141 = smul.addr %s1140, 4
      %s1142 = scalar_lea.vmem %s9, %s1141
      %p1143 = pneg %p305
      %p1144 = pneg %p302
      %p1145 = scmp.lt.s32.totalorder %s42, 1
      %s1146 = scalar_select %p1145, %s42, 1
      %s1147 = scalar_lea.vmem %s10, %s1146
      %p1148 = pneg %p331
      %p1149 = pneg %p328
      %s1150 = smul.u32 %s42, 2
      %s1151 = sadd.s32 %s1150, %s43
      %p1152 = scmp.lt.s32.totalorder %s1151, 3
      %s1153 = scalar_select %p1152, %s1151, 3
      %s1154 = scalar_lea.vmem %s11, %s1153
      %p1155 = pneg %p361
      %p1156 = pneg %p358
      %s1157 = smul.u32 %s42, 2
      %s1158 = sadd.s32 %s1157, %s43
      %p1159 = scmp.lt.s32.totalorder %s1158, 3
      %s1160 = scalar_select %p1159, %s1158, 3
      %s1161 = scalar_lea.vmem %s12, %s1160
      %p1162 = pneg %p391
      %p1163 = pneg %p388
      %s1164 = smul.u32 %s42, 2
      %s1165 = sadd.s32 %s1164, %s43
      %p1166 = scmp.lt.s32.totalorder %s1165, 3
      %s1167 = scalar_select %p1166, %s1165, 3
      %s1168 = smul.addr %s1167, 4
      %s1169 = smul.addr %s1168, 4
      %s1170 = scalar_lea.vmem %s13, %s1169
      %p1171 = pneg %p421
      %p1172 = pneg %p418
      %s1173 = smul.u32 %s42, 2
      %s1174 = sadd.s32 %s1173, %s43
      %p1175 = scmp.lt.s32.totalorder %s1174, 3
      %s1176 = scalar_select %p1175, %s1174, 3
      %s1177 = scalar_lea.vmem %s14, %s1176
      %p1178 = pneg %p451
      %p1179 = pneg %p448
      %s1180 = smul.u32 %s42, 2
      %s1181 = sadd.s32 %s1180, %s43
      %p1182 = scmp.lt.s32.totalorder %s1181, 3
      %s1183 = scalar_select %p1182, %s1181, 3
      %s1184 = smul.addr %s1183, 4
      %s1185 = smul.addr %s1184, 4
      %s1186 = scalar_lea.vmem %s15, %s1185
      %p1187 = pneg %p481
      %p1188 = pneg %p478
      %s1189 = smul.u32 %s42, 2
      %s1190 = sadd.s32 %s1189, %s43
      %p1191 = scmp.lt.s32.totalorder %s1190, 3
      %s1192 = scalar_select %p1191, %s1190, 3
      %s1193 = scalar_lea.vmem %s16, %s1192
      %p1194 = pneg %p511
      %p1195 = pneg %p508
      %s1196 = smul.u32 %s42, 2
      %s1197 = sadd.s32 %s1196, %s43
      %p1198 = scmp.lt.s32.totalorder %s1197, 3
      %s1199 = scalar_select %p1198, %s1197, 3
      %s1200 = scalar_lea.vmem %s17, %s1199
      %p1201 = pneg %p541
      %p1202 = pneg %p538
      %s1203 = smul.u32 %s42, 2
      %s1204 = sadd.s32 %s1203, %s43
      %p1205 = scmp.lt.s32.totalorder %s1204, 3
      %s1206 = scalar_select %p1205, %s1204, 3
      %s1207 = scalar_lea.vmem %s18, %s1206
      %p1208 = pneg %p571
      %p1209 = pneg %p568
      %s1210 = smul.u32 %s42, 2
      %s1211 = sadd.s32 %s1210, %s43
      %p1212 = scmp.lt.s32.totalorder %s1211, 3
      %s1213 = scalar_select %p1212, %s1211, 3
      %s1214 = smul.addr %s1213, 4
      %s1215 = smul.addr %s1214, 4
      %s1216 = scalar_lea.vmem %s19, %s1215
      %p1217 = pneg %p601
      %p1218 = pneg %p598
      %s1219 = smul.u32 %s42, 2
      %s1220 = sadd.s32 %s1219, %s43
      %p1221 = scmp.lt.s32.totalorder %s1220, 3
      %s1222 = scalar_select %p1221, %s1220, 3
      %s1223 = scalar_lea.vmem %s20, %s1222
      %p1224 = pneg %p631
      %p1225 = pneg %p628
      %s1226 = smul.u32 %s42, 2
      %s1227 = sadd.s32 %s1226, %s43
      %p1228 = scmp.lt.s32.totalorder %s1227, 3
      %s1229 = scalar_select %p1228, %s1227, 3
      %s1230 = smul.addr %s1229, 8
      %s1231 = smul.addr %s1230, 4
      %s1232 = scalar_lea.vmem %s21, %s1231
      %p1233 = pneg %p661
      %p1234 = pneg %p658
      %s1235 = smul.u32 %s42, 2
      %s1236 = sadd.s32 %s1235, %s43
      %p1237 = scmp.lt.s32.totalorder %s1236, 3
      %s1238 = scalar_select %p1237, %s1236, 3
      %s1239 = scalar_lea.vmem %s22, %s1238
      %p1240 = pneg %p691
      %p1241 = pneg %p688
      %p1242 = scmp.lt.s32.totalorder %s42, 1
      %s1243 = scalar_select %p1242, %s42, 1
      %s1244 = scalar_lea.vmem %s23, %s1243
      %p1245 = pneg %p717
      %p1246 = pneg %p714
      %p1247 = scmp.lt.s32.totalorder %s42, 1
      %s1248 = scalar_select %p1247, %s42, 1
      %s1249 = scalar_lea.vmem %s24, %s1248
      %p1250 = pneg %p743
      %p1251 = pneg %p740
      %p1252 = scmp.lt.s32.totalorder %s42, 1
      %s1253 = scalar_select %p1252, %s42, 1
      %s1254 = smul.addr %s1253, 4
      %s1255 = smul.addr %s1254, 4
      %s1256 = scalar_lea.vmem %s25, %s1255
      %p1257 = pneg %p769
      %p1258 = pneg %p766
      %p1259 = scmp.lt.s32.totalorder %s42, 1
      %s1260 = scalar_select %p1259, %s42, 1
      %s1261 = scalar_lea.vmem %s26, %s1260
      %p1262 = pneg %p795
      %p1263 = pneg %p792
      %p1264 = pneg %p821
      %p1265 = pneg %p818
      %p1266 = scmp.lt.s32.totalorder %s42, 1
      %s1267 = scalar_select %p1266, %s42, 1
      %s1268 = smul.addr %s1267, 2
      %s1269 = smul.addr %s1268, 8
      %s1270 = scalar_lea.vmem %s27, %s1269
      %p1271 = scmp.lt.s32.totalorder %s42, 1
      %s1272 = scalar_select %p1271, %s42, 1
      %s1273 = scalar_lea.vmem %s0, %s1272
      %p1274 = scmp.lt.s32.totalorder %s42, 1
      %s1275 = scalar_select %p1274, %s42, 1
      %s1276 = smul.addr %s1275, 2
      %s1277 = smul.addr %s1276, 8
      %s1278 = scalar_lea.vmem %s1, %s1277
      %p1279 = scmp.lt.s32.totalorder %s42, 1
      %s1280 = scalar_select %p1279, %s42, 1
      %s1281 = smul.addr %s1280, 2
      %s1282 = smul.addr %s1281, 8
      %s1283 = scalar_lea.vmem %s2, %s1282
      %p1284 = scmp.lt.s32.totalorder %s42, 1
      %s1285 = scalar_select %p1284, %s42, 1
      %s1286 = smul.addr %s1285, 2
      %s1287 = smul.addr %s1286, 4
      %s1288 = scalar_lea.vmem %s3, %s1287
      %p1289 = scmp.lt.s32.totalorder %s42, 1
      %s1290 = scalar_select %p1289, %s42, 1
      %s1291 = smul.addr %s1290, 2
      %s1292 = smul.addr %s1291, 8
      %s1293 = scalar_lea.vmem %s4, %s1292
      %p1294 = scmp.lt.s32.totalorder %s42, 1
      %s1295 = scalar_select %p1294, %s42, 1
      %s1296 = smul.addr %s1295, 3
      %s1297 = smul.addr %s1296, 4
      %s1298 = scalar_lea.vmem %s5, %s1297
      %p1299 = scmp.lt.s32.totalorder %s42, 1
      %s1300 = scalar_select %p1299, %s42, 1
      %s1301 = scalar_lea.vmem %s6, %s1300
      %p1302 = scmp.lt.s32.totalorder %s42, 1
      %s1303 = scalar_select %p1302, %s42, 1
      %s1304 = smul.addr %s1303, 4
      %s1305 = smul.addr %s1304, 4
      %s1306 = scalar_lea.vmem %s7, %s1305
      %p1307 = scmp.lt.s32.totalorder %s42, 1
      %s1308 = scalar_select %p1307, %s42, 1
      %s1309 = scalar_lea.vmem %s8, %s1308
      %p1310 = scmp.lt.s32.totalorder %s42, 1
      %s1311 = scalar_select %p1310, %s42, 1
      %s1312 = smul.addr %s1311, 16
      %s1313 = smul.addr %s1312, 4
      %s1314 = scalar_lea.vmem %s9, %s1313
      %p1315 = scmp.lt.s32.totalorder %s42, 1
      %s1316 = scalar_select %p1315, %s42, 1
      %s1317 = scalar_lea.vmem %s10, %s1316
      %s1318 = smul.u32 %s42, 2
      %s1319 = sadd.s32 %s1318, %s43
      %p1320 = scmp.lt.s32.totalorder %s1319, 3
      %s1321 = scalar_select %p1320, %s1319, 3
      %s1322 = scalar_lea.vmem %s11, %s1321
      %s1323 = smul.u32 %s42, 2
      %s1324 = sadd.s32 %s1323, %s43
      %s1325 = smul.u32 %s42, 2
      %s1326 = sadd.s32 %s1325, %s43
      %p1327 = scmp.lt.s32.totalorder %s1326, 3
      %s1328 = scalar_select %p1327, %s1326, 3
      %s1329 = scalar_lea.vmem %s12, %s1328
      %s1330 = smul.u32 %s42, 2
      %s1331 = sadd.s32 %s1330, %s43
      %s1332 = smul.u32 %s42, 2
      %s1333 = sadd.s32 %s1332, %s43
      %p1334 = scmp.lt.s32.totalorder %s1333, 3
      %s1335 = scalar_select %p1334, %s1333, 3
      %s1336 = smul.addr %s1335, 4
      %s1337 = smul.addr %s1336, 4
      %s1338 = scalar_lea.vmem %s13, %s1337
      %s1339 = smul.u32 %s42, 2
      %s1340 = sadd.s32 %s1339, %s43
      %s1341 = smul.u32 %s42, 2
      %s1342 = sadd.s32 %s1341, %s43
      %p1343 = scmp.lt.s32.totalorder %s1342, 3
      %s1344 = scalar_select %p1343, %s1342, 3
      %s1345 = scalar_lea.vmem %s14, %s1344
      %s1346 = smul.u32 %s42, 2
      %s1347 = sadd.s32 %s1346, %s43
      %s1348 = smul.u32 %s42, 2
      %s1349 = sadd.s32 %s1348, %s43
      %p1350 = scmp.lt.s32.totalorder %s1349, 3
      %s1351 = scalar_select %p1350, %s1349, 3
      %s1352 = smul.addr %s1351, 4
      %s1353 = smul.addr %s1352, 4
      %s1354 = scalar_lea.vmem %s15, %s1353
      %s1355 = smul.u32 %s42, 2
      %s1356 = sadd.s32 %s1355, %s43
      %s1357 = smul.u32 %s42, 2
      %s1358 = sadd.s32 %s1357, %s43
      %p1359 = scmp.lt.s32.totalorder %s1358, 3
      %s1360 = scalar_select %p1359, %s1358, 3
      %s1361 = scalar_lea.vmem %s16, %s1360
      %s1362 = smul.u32 %s42, 2
      %s1363 = sadd.s32 %s1362, %s43
      %s1364 = smul.u32 %s42, 2
      %s1365 = sadd.s32 %s1364, %s43
      %p1366 = scmp.lt.s32.totalorder %s1365, 3
      %s1367 = scalar_select %p1366, %s1365, 3
      %s1368 = scalar_lea.vmem %s17, %s1367
      %s1369 = smul.u32 %s42, 2
      %s1370 = sadd.s32 %s1369, %s43
      %s1371 = smul.u32 %s42, 2
      %s1372 = sadd.s32 %s1371, %s43
      %p1373 = scmp.lt.s32.totalorder %s1372, 3
      %s1374 = scalar_select %p1373, %s1372, 3
      %s1375 = scalar_lea.vmem %s18, %s1374
      %s1376 = smul.u32 %s42, 2
      %s1377 = sadd.s32 %s1376, %s43
      %s1378 = smul.u32 %s42, 2
      %s1379 = sadd.s32 %s1378, %s43
      %p1380 = scmp.lt.s32.totalorder %s1379, 3
      %s1381 = scalar_select %p1380, %s1379, 3
      %s1382 = smul.addr %s1381, 4
      %s1383 = smul.addr %s1382, 4
      %s1384 = scalar_lea.vmem %s19, %s1383
      %s1385 = smul.u32 %s42, 2
      %s1386 = sadd.s32 %s1385, %s43
      %s1387 = smul.u32 %s42, 2
      %s1388 = sadd.s32 %s1387, %s43
      %p1389 = scmp.lt.s32.totalorder %s1388, 3
      %s1390 = scalar_select %p1389, %s1388, 3
      %s1391 = scalar_lea.vmem %s20, %s1390
      %s1392 = smul.u32 %s42, 2
      %s1393 = sadd.s32 %s1392, %s43
      %s1394 = smul.u32 %s42, 2
      %s1395 = sadd.s32 %s1394, %s43
      %p1396 = scmp.lt.s32.totalorder %s1395, 3
      %s1397 = scalar_select %p1396, %s1395, 3
      %s1398 = smul.addr %s1397, 8
      %s1399 = smul.addr %s1398, 4
      %s1400 = scalar_lea.vmem %s21, %s1399
      %s1401 = smul.u32 %s42, 2
      %s1402 = sadd.s32 %s1401, %s43
      %s1403 = smul.u32 %s42, 2
      %s1404 = sadd.s32 %s1403, %s43
      %p1405 = scmp.lt.s32.totalorder %s1404, 3
      %s1406 = scalar_select %p1405, %s1404, 3
      %s1407 = scalar_lea.vmem %s22, %s1406
      %s1408 = smul.u32 %s42, 2
      %s1409 = sadd.s32 %s1408, %s43
      %p1410 = scmp.lt.s32.totalorder %s42, 1
      %s1411 = scalar_select %p1410, %s42, 1
      %s1412 = scalar_lea.vmem %s23, %s1411
      %p1413 = scmp.lt.s32.totalorder %s42, 1
      %s1414 = scalar_select %p1413, %s42, 1
      %s1415 = scalar_lea.vmem %s24, %s1414
      %p1416 = scmp.lt.s32.totalorder %s42, 1
      %s1417 = scalar_select %p1416, %s42, 1
      %s1418 = smul.addr %s1417, 4
      %s1419 = smul.addr %s1418, 4
      %s1420 = scalar_lea.vmem %s25, %s1419
      %p1421 = scmp.lt.s32.totalorder %s42, 1
      %s1422 = scalar_select %p1421, %s42, 1
      %s1423 = scalar_lea.vmem %s26, %s1422
      %p1424 = scmp.lt.s32.totalorder %s42, 1
      %s1425 = scalar_select %p1424, %s42, 1
      %s1426 = smul.addr %s1425, 2
      %s1427 = smul.addr %s1426, 8
      %s1428 = scalar_lea.vmem %s27, %s1427
      %v1430 = vld [vmem:[%s1273] sm:$0x1]
      %p1431 = scmp.eq.s32.totalorder %s43, 0
      // Predicated region
      $region129: #{motion_transformer_forward.1} parent=127 // pred_check
        %p1432 = pneg %p1431
      $region130: #{motion_transformer_forward.1} parent=127 // pred_check_branch
        %1434 = sbr.rel (%p1432) target = $region132
      $region131: #{motion_transformer_forward.1} parent=127 // pred_region
        %v1435 = vld [vmem:[%s1278] sm:$0xff]
        %v1436 = vld [vmem:[%s1278 + $0x8] sm:$0xff]
        %v1437 = vpack.c.bf16 %v1436, %v1435
        %v1438 = vld [vmem:[%s1298] sm:$0xf]
        %v1439 = vld [vmem:[%s1298 + $0x4] sm:$0xf]
        %v1440 = vld [vmem:[%s1298 + $0x8] sm:$0xf]
        %v1441 = vld [vmem:[%s1301] sm:$0x1]
        %v1443 = vperm.slane %v1441, 0
        %v1448 = vunpack.c.l.b16 %v1438
        %v1449 = vunpack.c.l.b16 %v1439
        %v1450 = vunpack.c.l.b16 %v1440
        %v1451 = vpack.c.b16 %v1449, %v1448
        %v1452 = vpack.c.b16 %v1450, %v1450
        %vm1454 = vcmask 195584
        %v1456 = vsel %vm1454, %v1437, 0
        %vm1458 = vcmask 1043456
        %v1460 = vsel %vm1458, %v1452, 0
        %1462 = vmatpush.bf16.msra.mxu0 0
        %1463 = vmatpush.bf16.msra.mxu0 0
        %1464 = vmatpush.bf16.msra.mxu0 0
        %1465 = vmatpush.bf16.msra.mxu0 0
        %1466 = vmatpush.bf16.msra.mxu0 0
        %1467 = vmatpush.bf16.msra.mxu0 0
        %1468 = vmatpush.bf16.msra.mxu0 %v1460
        %1469 = vmatpush.bf16.msra.mxu0 %v1451
        %1470 = vmatmul.bf16.gmra.mxu0 %v1456
        %v1471 = vpop.f32.mrf.mxu0
        %v1472 = vadd.f32 %v1443, %v1471
        %v1473 = vpop.f32.mrf.mxu0
        %v1474 = vadd.f32 %v1443, %v1473
        %1475 = vdwg.mxu0
        %v1476 = vld [vmem:[%s1288] sm:$0xf]
        %v1477 = vld [vmem:[%s1288 + $0x4] sm:$0xf]
        %v1478 = vunpack.c.l.bf16 %v1476
        %v1479 = vunpack.c.l.bf16 %v1477
        %v1480 = vadd.f32 %v1472, %v1478
        %v1481 = vadd.f32 %v1474, %v1479
        %v1482 = vld [vmem:[%s1283] sm:$0xff]
        %v1483 = vld [vmem:[%s1283 + $0x8] sm:$0xff]
        %v1484 = vpack.c.bf16 %v1483, %v1482
        %v1485 = vld [vmem:[%s1306] sm:$0xf]
        %v1486 = vld [vmem:[%s1306 + $0x4] sm:$0xf]
        %v1487 = vld [vmem:[%s1306 + $0x8] sm:$0xf]
        %v1488 = vld [vmem:[%s1306 + $0xc] sm:$0xf]
        %v1489 = vld [vmem:[%s1309] sm:$0x1]
        %v1491 = vperm.slane %v1489, 0
        %v1497 = vunpack.c.l.b16 %v1485
        %v1498 = vunpack.c.l.b16 %v1486
        %v1499 = vunpack.c.l.b16 %v1487
        %v1500 = vunpack.c.l.b16 %v1488
        %v1501 = vpack.c.b16 %v1498, %v1497
        %v1502 = vpack.c.b16 %v1500, %v1499
        %vm1505 = vcmask 261120
        %v1507 = vsel %vm1505, %v1484, 0
        %1509 = vmatpush.bf16.msra.mxu0 0
        %1510 = vmatpush.bf16.msra.mxu0 0
        %1511 = vmatpush.bf16.msra.mxu0 0
        %1512 = vmatpush.bf16.msra.mxu0 0
        %1513 = vmatpush.bf16.msra.mxu0 0
        %1514 = vmatpush.bf16.msra.mxu0 0
        %1515 = vmatpush.bf16.msra.mxu0 %v1502
        %1516 = vmatpush.bf16.msra.mxu0 %v1501
        %1517 = vmatmul.bf16.gmra.mxu0 %v1507
        %v1518 = vpop.f32.mrf.mxu0
        %v1519 = vadd.f32 %v1491, %v1518
        %v1520 = vpop.f32.mrf.mxu0
        %v1521 = vadd.f32 %v1491, %v1520
        %1522 = vdwg.mxu0
        %v1523 = vxor.u32 %v1519, 2147483648
        %v1524 = vxor.u32 %v1521, 2147483648
        %v1525 = vmul.f32 %v1523, 1.442695
        %v1526 = vpow.pop %v1525
        %v1527 = vmul.f32 %v1524, 1.442695
        %v1528 = vpow.pop %v1527
        %v1529 = vadd.f32 %v1526, 1.0
        %v1530 = vadd.f32 %v1528, 1.0
        %v1531 = vrcp.pop %v1529
        %v1532 = vmul.f32 %v1529, %v1531
        %v1533 = vsub.f32 1.0, %v1532
        %v1534 = vmul.f32 %v1531, %v1533
        %v1535 = vadd.f32 %v1531, %v1534
        %vm1536 = vweird.f32 %v1529
        %vm1537 = vweird.f32 %v1531
        %vm1538 = vmor %vm1536, %vm1537
        %v1539 = vsel %vm1538, %v1531, %v1535
        %v1540 = vand.u32 2147483647, %v1529
        %vm1541 = vcmp.eq.f32.partialorder %v1540, 8.507059e+37
        %v1542 = vand.u32 %v1529, 2147483648
        %v1543 = vor.u32 1.1754944e-38, %v1542
        %v1544 = vsel %vm1541, %v1543, %v1539
        %v1545 = vmul.f32 1.0, %v1544
        %v1546 = vrcp.pop %v1530
        %v1547 = vmul.f32 %v1530, %v1546
        %v1548 = vsub.f32 1.0, %v1547
        %v1549 = vmul.f32 %v1546, %v1548
        %v1550 = vadd.f32 %v1546, %v1549
        %vm1551 = vweird.f32 %v1530
        %vm1552 = vweird.f32 %v1546
        %vm1553 = vmor %vm1551, %vm1552
        %v1554 = vsel %vm1553, %v1546, %v1550
        %v1555 = vand.u32 2147483647, %v1530
        %vm1556 = vcmp.eq.f32.partialorder %v1555, 8.507059e+37
        %v1557 = vand.u32 %v1530, 2147483648
        %v1558 = vor.u32 1.1754944e-38, %v1557
        %v1559 = vsel %vm1556, %v1558, %v1554
        %v1560 = vmul.f32 1.0, %v1559
        %v1561 = vmul.f32 %v1519, %v1545
        %v1562 = vmul.f32 %v1521, %v1560
        %v1563 = vpack.c.bf16 %v1562, %v1561
        %v1564 = vld [vmem:[%s1314] sm:$0xf]
        %v1565 = vld [vmem:[%s1314 + $0x4] sm:$0xf]
        %v1566 = vld [vmem:[%s1314 + $0x8] sm:$0xf]
        %v1567 = vld [vmem:[%s1314 + $0xc] sm:$0xf]
        %v1568 = vld [vmem:[%s1314 + $0x10] sm:$0xf]
        %v1569 = vld [vmem:[%s1314 + $0x14] sm:$0xf]
        %v1570 = vld [vmem:[%s1314 + $0x18] sm:$0xf]
        %v1571 = vld [vmem:[%s1314 + $0x1c] sm:$0xf]
        %v1572 = vld [vmem:[%s1314 + $0x20] sm:$0xf]
        %v1573 = vld [vmem:[%s1314 + $0x24] sm:$0xf]
        %v1574 = vld [vmem:[%s1314 + $0x28] sm:$0xf]
        %v1575 = vld [vmem:[%s1314 + $0x2c] sm:$0xf]
        %v1576 = vld [vmem:[%s1314 + $0x30] sm:$0xf]
        %v1577 = vld [vmem:[%s1314 + $0x34] sm:$0xf]
        %v1578 = vld [vmem:[%s1314 + $0x38] sm:$0xf]
        %v1579 = vld [vmem:[%s1314 + $0x3c] sm:$0xf]
        %v1580 = vld [vmem:[%s1317] sm:$0x1]
        %v1582 = vperm.slane %v1580, 0
        %v1600 = vunpack.c.l.b16 %v1564
        %v1601 = vunpack.c.l.b16 %v1565
        %v1602 = vunpack.c.l.b16 %v1566
        %v1603 = vunpack.c.l.b16 %v1567
        %v1604 = vunpack.c.l.b16 %v1568
        %v1605 = vunpack.c.l.b16 %v1569
        %v1606 = vunpack.c.l.b16 %v1570
        %v1607 = vunpack.c.l.b16 %v1571
        %v1608 = vunpack.c.l.b16 %v1572
        %v1609 = vunpack.c.l.b16 %v1573
        %v1610 = vunpack.c.l.b16 %v1574
        %v1611 = vunpack.c.l.b16 %v1575
        %v1612 = vunpack.c.l.b16 %v1576
        %v1613 = vunpack.c.l.b16 %v1577
        %v1614 = vunpack.c.l.b16 %v1578
        %v1615 = vunpack.c.l.b16 %v1579
        %v1616 = vpack.c.b16 %v1601, %v1600
        %v1617 = vpack.c.b16 %v1603, %v1602
        %v1618 = vpack.c.b16 %v1605, %v1604
        %v1619 = vpack.c.b16 %v1607, %v1606
        %v1620 = vpack.c.b16 %v1609, %v1608
        %v1621 = vpack.c.b16 %v1611, %v1610
        %v1622 = vpack.c.b16 %v1613, %v1612
        %v1623 = vpack.c.b16 %v1615, %v1614
        %1632 = vmatpush.bf16.msra.mxu0 %v1623
        %1633 = vmatpush.bf16.msra.mxu0 %v1622
        %1634 = vmatpush.bf16.msra.mxu0 %v1621
        %1635 = vmatpush.bf16.msra.mxu0 %v1620
        %1636 = vmatpush.bf16.msra.mxu0 %v1619
        %1637 = vmatpush.bf16.msra.mxu0 %v1618
        %1638 = vmatpush.bf16.msra.mxu0 %v1617
        %1639 = vmatpush.bf16.msra.mxu0 %v1616
        %1640 = vmatmul.bf16.gmra.mxu0 %v1563
        %v1641 = vpop.f32.mrf.mxu0
        %v1642 = vadd.f32 %v1582, %v1641
        %v1643 = vpop.f32.mrf.mxu0
        %v1644 = vadd.f32 %v1582, %v1643
        %1645 = vdwg.mxu0
        %v1646 = vadd.f32 %v1480, %v1642
        %v1647 = vadd.f32 %v1481, %v1644
        %1648 = vst.msk [vmem:[#allocation2] sm:$0xff] %vm1505, %v1646
        %1649 = vst.msk [vmem:[#allocation2 + $0x8] sm:$0xff] %vm1505, %v1647
      $region132: #{motion_transformer_forward.1} parent=127 // pred_fallthru
        _
      %v1650 = vld [vmem:[#allocation2] sm:$0xff]
      %v1651 = vld [vmem:[#allocation2 + $0x8] sm:$0xff]
      %v1652 = vld [vmem:[%s1322] sm:$0x1]
      %v1653 = vld [vmem:[%s1329] sm:$0x1]
      %vm1654 = vcmask 261120
      %v1655 = vsel %vm1654, %v1650, 0.0
      %1656 = vadd.xlane.f32.xlu0 %v1655
      %v1657 = vpop.xlane.xlu0 %1656
      %v1658 = vsel %vm1654, %v1651, 0.0
      %1659 = vadd.xlane.f32.xlu0 %v1658
      %v1660 = vpop.xlane.xlu0 %1659
      %v1662 = vperm.slane %v1430, 0
      %v1664 = vmul.f32 %v1657, %v1662
      %v1665 = vmul.f32 %v1660, %v1662
      %v1666 = vmul.f32 %v1650, %v1650
      %v1667 = vmul.f32 %v1651, %v1651
      %v1668 = vsel %vm1654, %v1666, 0.0
      %1669 = vadd.xlane.f32.xlu0 %v1668
      %v1670 = vpop.xlane.xlu0 %1669
      %v1671 = vsel %vm1654, %v1667, 0.0
      %1672 = vadd.xlane.f32.xlu0 %v1671
      %v1673 = vpop.xlane.xlu0 %1672
      %v1674 = vmul.f32 %v1670, %v1662
      %v1675 = vmul.f32 %v1673, %v1662
      %v1676 = vmul.f32 %v1664, %v1664
      %v1677 = vmul.f32 %v1665, %v1665
      %v1678 = vsub.f32 %v1674, %v1676
      %v1679 = vsub.f32 %v1675, %v1677
      %1681 = vset.pattern.permute.xlu0 0
      %1682 = vperm.xlu0 %1681, %v1664
      %v1683 = vpop.permute.xlu0 %1682
      %1686 = vset.pattern.permute.xlu0 0
      %1687 = vperm.xlu0 %1686, %v1665
      %v1688 = vpop.permute.xlu0 %1687
      %v1690 = vsub.f32 %v1650, %v1683
      %v1691 = vsub.f32 %v1651, %v1688
      %v1692 = vadd.f32 %v1678, 1e-05
      %v1693 = vadd.f32 %v1679, 1e-05
      %v1694 = vrsqrt.pop %v1692
      %v1695 = vmul.f32 %v1694, %v1692
      %v1696 = vmul.f32 %v1695, %v1694
      %v1697 = vmul.f32 0.5, %v1696
      %v1698 = vsub.f32 1.5, %v1697
      %v1699 = vmul.f32 %v1694, %v1698
      %vm1700 = vweird.f32 %v1692
      %vm1701 = vweird.f32 %v1694
      %vm1702 = vmor %vm1700, %vm1701
      %v1703 = vsel %vm1702, %v1694, %v1699
      %v1704 = vrsqrt.pop %v1693
      %v1705 = vmul.f32 %v1704, %v1693
      %v1706 = vmul.f32 %v1705, %v1704
      %v1707 = vmul.f32 0.5, %v1706
      %v1708 = vsub.f32 1.5, %v1707
      %v1709 = vmul.f32 %v1704, %v1708
      %vm1710 = vweird.f32 %v1693
      %vm1711 = vweird.f32 %v1704
      %vm1712 = vmor %vm1710, %vm1711
      %v1713 = vsel %vm1712, %v1704, %v1709
      %1715 = vset.pattern.permute.xlu0 0
      %1716 = vperm.xlu0 %1715, %v1703
      %v1717 = vpop.permute.xlu0 %1716
      %1720 = vset.pattern.permute.xlu0 0
      %1721 = vperm.xlu0 %1720, %v1713
      %v1722 = vpop.permute.xlu0 %1721
      %v1724 = vmul.f32 %v1690, %v1717
      %v1725 = vmul.f32 %v1691, %v1722
      %v1727 = vperm.slane %v1652, 0
      %v1729 = vmul.f32 %v1724, %v1727
      %v1730 = vmul.f32 %v1725, %v1727
      %v1732 = vperm.slane %v1653, 0
      %v1734 = vadd.f32 %v1729, %v1732
      %v1735 = vadd.f32 %v1730, %v1732
      %v1736 = vpack.c.bf16 %v1735, %v1734
      %v1737 = vld [vmem:[%s1338] sm:$0xf]
      %v1738 = vld [vmem:[%s1338 + $0x4] sm:$0xf]
      %v1739 = vld [vmem:[%s1338 + $0x8] sm:$0xf]
      %v1740 = vld [vmem:[%s1338 + $0xc] sm:$0xf]
      %v1741 = vld [vmem:[%s1345] sm:$0x1]
      %v1743 = vperm.slane %v1741, 0
      %v1749 = vunpack.c.l.b16 %v1737
      %v1750 = vunpack.c.l.b16 %v1738
      %v1751 = vunpack.c.l.b16 %v1739
      %v1752 = vunpack.c.l.b16 %v1740
      %v1753 = vpack.c.b16 %v1750, %v1749
      %v1754 = vpack.c.b16 %v1752, %v1751
      %v1758 = vsel %vm1654, %v1736, 0
      %1760 = vmatpush.bf16.msra.mxu0 0
      %1761 = vmatpush.bf16.msra.mxu0 0
      %1762 = vmatpush.bf16.msra.mxu0 0
      %1763 = vmatpush.bf16.msra.mxu0 0
      %1764 = vmatpush.bf16.msra.mxu0 0
      %1765 = vmatpush.bf16.msra.mxu0 0
      %1766 = vmatpush.bf16.msra.mxu0 %v1754
      %1767 = vmatpush.bf16.msra.mxu0 %v1753
      %1768 = vmatmul.bf16.gmra.mxu0 %v1758
      %v1769 = vpop.f32.mrf.mxu0
      %v1770 = vadd.f32 %v1743, %v1769
      %v1771 = vpop.f32.mrf.mxu0
      %v1772 = vadd.f32 %v1743, %v1771
      %1773 = vdwg.mxu0
      %v1774 = vld [vmem:[%s1293] sm:$0xff]
      %v1775 = vld [vmem:[%s1293 + $0x8] sm:$0xff]
      %v1776 = vld [vmem:[%s1354] sm:$0xf]
      %v1777 = vld [vmem:[%s1354 + $0x4] sm:$0xf]
      %v1778 = vld [vmem:[%s1354 + $0x8] sm:$0xf]
      %v1779 = vld [vmem:[%s1354 + $0xc] sm:$0xf]
      %v1780 = vpack.c.bf16 %v1772, %v1770
      %1782 = vrot.lane.b32.xlu0 %v1780, 96
      %v1783 = vpop.permute.xlu0 %1782
      %vm1784 = vcmask 64512
      %v1786 = vsel %vm1784, %v1780, 0
      %v1789 = vsel %vm1784, %v1783, 0
      %1791 = vmatpush.bf16.xpose.msra.mxu0 0
      %1792 = vmatpush.bf16.xpose.msra.mxu0 0
      %1793 = vmatpush.bf16.xpose.msra.mxu0 0
      %1794 = vmatpush.bf16.xpose.msra.mxu0 0
      %1795 = vmatpush.bf16.xpose.msra.mxu0 0
      %1796 = vmatpush.bf16.xpose.msra.mxu0 0
      %1797 = vmatpush.bf16.xpose.msra.mxu0 0
      %1798 = vmatpush.bf16.xpose.msra.mxu0 %v1789
      %1799 = vmatmul.bf16.gmra.mxu0 %v1786
      %v1800 = vpop.f32.mrf.mxu0
      %v1801 = vadd.f32 %v1774, %v1800
      %v1802 = vpop.f32.mrf.mxu0
      %v1803 = vadd.f32 %v1775, %v1802
      %1804 = vdwg.mxu0
      %vm1805 = vcmask 130048
      %v1806 = vsel %vm1805, %v1801, -inf
      %1807 = vmax.xlane.f32.xlu0 %v1806
      %v1808 = vpop.xlane.xlu0 %1807
      %v1809 = vsel %vm1805, %v1803, -inf
      %1810 = vmax.xlane.f32.xlu0 %v1809
      %v1811 = vpop.xlane.xlu0 %1810
      %v1812 = vsub.f32 %v1801, %v1808
      %v1813 = vsub.f32 %v1803, %v1811
      %v1814 = vmul.f32 %v1812, 1.442695
      %v1815 = vpow.pop %v1814
      %v1816 = vmul.f32 %v1813, 1.442695
      %v1817 = vpow.pop %v1816
      %v1818 = vsel %vm1805, %v1815, 0.0
      %1819 = vadd.xlane.f32.xlu0 %v1818
      %v1820 = vpop.xlane.xlu0 %1819
      %v1821 = vsel %vm1805, %v1817, 0.0
      %1822 = vadd.xlane.f32.xlu0 %v1821
      %v1823 = vpop.xlane.xlu0 %1822
      %v1824 = vrcp.pop %v1820
      %v1825 = vrcp.pop %v1823
      %v1826 = vmul.f32 %v1815, %v1824
      %v1827 = vmul.f32 %v1817, %v1825
      %v1828 = vpack.c.bf16 %v1827, %v1826
      %1829 = vrot.lane.b32.xlu0 %v1780, 64
      %v1830 = vpop.permute.xlu0 %1829
      %v1833 = vsel %vm1805, %v1828, 0
      %1835 = vmatpush.bf16.msra.mxu0 0
      %1836 = vmatpush.bf16.msra.mxu0 0
      %1837 = vmatpush.bf16.msra.mxu0 0
      %1838 = vmatpush.bf16.msra.mxu0 0
      %1839 = vmatpush.bf16.msra.mxu0 0
      %1840 = vmatpush.bf16.msra.mxu0 0
      %1841 = vmatpush.bf16.msra.mxu0 0
      %1842 = vmatpush.bf16.msra.mxu0 %v1830
      %1843 = vmatmul.bf16.gmra.mxu0 %v1833
      %v1844 = vpop.f32.mrf.mxu0
      %v1845 = vadd.f32 0.0, %v1844
      %v1846 = vpop.f32.mrf.mxu0
      %v1847 = vadd.f32 0.0, %v1846
      %1848 = vdwg.mxu0
      %v1849 = vpack.c.bf16 %v1847, %v1845
      %1850 = vrot.lane.b32.xlu0 %v1780, 120
      %v1851 = vpop.permute.xlu0 %1850
      %1852 = vrot.lane.b32.xlu0 %v1780, 88
      %v1853 = vpop.permute.xlu0 %1852
      %v1855 = vsel %vm1784, %v1851, 0
      %v1858 = vsel %vm1784, %v1853, 0
      %1860 = vmatpush.bf16.xpose.msra.mxu0 0
      %1861 = vmatpush.bf16.xpose.msra.mxu0 0
      %1862 = vmatpush.bf16.xpose.msra.mxu0 0
      %1863 = vmatpush.bf16.xpose.msra.mxu0 0
      %1864 = vmatpush.bf16.xpose.msra.mxu0 0
      %1865 = vmatpush.bf16.xpose.msra.mxu0 0
      %1866 = vmatpush.bf16.xpose.msra.mxu0 0
      %1867 = vmatpush.bf16.xpose.msra.mxu0 %v1858
      %1868 = vmatmul.bf16.gmra.mxu0 %v1855
      %v1869 = vpop.f32.mrf.mxu0
      %v1870 = vadd.f32 %v1774, %v1869
      %v1871 = vpop.f32.mrf.mxu0
      %v1872 = vadd.f32 %v1775, %v1871
      %1873 = vdwg.mxu0
      %v1874 = vsel %vm1805, %v1870, -inf
      %1875 = vmax.xlane.f32.xlu0 %v1874
      %v1876 = vpop.xlane.xlu0 %1875
      %v1877 = vsel %vm1805, %v1872, -inf
      %1878 = vmax.xlane.f32.xlu0 %v1877
      %v1879 = vpop.xlane.xlu0 %1878
      %v1880 = vsub.f32 %v1870, %v1876
      %v1881 = vsub.f32 %v1872, %v1879
      %v1882 = vmul.f32 %v1880, 1.442695
      %v1883 = vpow.pop %v1882
      %v1884 = vmul.f32 %v1881, 1.442695
      %v1885 = vpow.pop %v1884
      %v1886 = vsel %vm1805, %v1883, 0.0
      %1887 = vadd.xlane.f32.xlu0 %v1886
      %v1888 = vpop.xlane.xlu0 %1887
      %v1889 = vsel %vm1805, %v1885, 0.0
      %1890 = vadd.xlane.f32.xlu0 %v1889
      %v1891 = vpop.xlane.xlu0 %1890
      %v1892 = vrcp.pop %v1888
      %v1893 = vrcp.pop %v1891
      %v1894 = vmul.f32 %v1883, %v1892
      %v1895 = vmul.f32 %v1885, %v1893
      %v1896 = vpack.c.bf16 %v1895, %v1894
      %1897 = vrot.lane.b32.xlu0 %v1780, 56
      %v1898 = vpop.permute.xlu0 %1897
      %v1901 = vsel %vm1805, %v1896, 0
      %1903 = vmatpush.bf16.msra.mxu0 0
      %1904 = vmatpush.bf16.msra.mxu0 0
      %1905 = vmatpush.bf16.msra.mxu0 0
      %1906 = vmatpush.bf16.msra.mxu0 0
      %1907 = vmatpush.bf16.msra.mxu0 0
      %1908 = vmatpush.bf16.msra.mxu0 0
      %1909 = vmatpush.bf16.msra.mxu0 0
      %1910 = vmatpush.bf16.msra.mxu0 %v1898
      %1911 = vmatmul.bf16.gmra.mxu0 %v1901
      %v1912 = vpop.f32.mrf.mxu0
      %v1913 = vadd.f32 0.0, %v1912
      %v1914 = vpop.f32.mrf.mxu0
      %v1915 = vadd.f32 0.0, %v1914
      %1916 = vdwg.mxu0
      %v1917 = vpack.c.bf16 %v1915, %v1913
      %v1919 = vsel %vm1784, %v1917, 0
      %vm1921 = vcmask 1043456
      %v1923 = vsel %vm1921, %v1777, 0
      %1925 = vmatpush.bf16.msra.mxu0 0
      %1926 = vmatpush.bf16.msra.mxu0 0
      %1927 = vmatpush.bf16.msra.mxu0 0
      %1928 = vmatpush.bf16.msra.mxu0 0
      %1929 = vmatpush.bf16.msra.mxu0 0
      %1930 = vmatpush.bf16.msra.mxu0 0
      %1931 = vmatpush.bf16.msra.mxu0 0
      %1932 = vmatpush.bf16.msra.mxu0 %v1923
      %1933 = vmatmul.bf16.gmra.mxu0 %v1919
      %v1934 = vpop.f32.mrf.mxu0
      %v1935 = vadd.f32 0.0, %v1934
      %v1936 = vpop.f32.mrf.mxu0
      %v1937 = vadd.f32 0.0, %v1936
      %1938 = vdwg.mxu0
      %v1940 = vsel %vm1784, %v1849, 0
      %v1943 = vsel %vm1921, %v1776, 0
      %1945 = vmatpush.bf16.msra.mxu0 0
      %1946 = vmatpush.bf16.msra.mxu0 0
      %1947 = vmatpush.bf16.msra.mxu0 0
      %1948 = vmatpush.bf16.msra.mxu0 0
      %1949 = vmatpush.bf16.msra.mxu0 0
      %1950 = vmatpush.bf16.msra.mxu0 0
      %1951 = vmatpush.bf16.msra.mxu0 0
      %1952 = vmatpush.bf16.msra.mxu0 %v1943
      %1953 = vmatmul.bf16.gmra.mxu0 %v1940
      %v1954 = vpop.f32.mrf.mxu0
      %v1955 = vadd.f32 %v1935, %v1954
      %v1956 = vpop.f32.mrf.mxu0
      %v1957 = vadd.f32 %v1937, %v1956
      %1958 = vdwg.mxu0
      %1959 = vrot.lane.b32.xlu0 %v1780, 112
      %v1960 = vpop.permute.xlu0 %1959
      %1961 = vrot.lane.b32.xlu0 %v1780, 80
      %v1962 = vpop.permute.xlu0 %1961
      %v1964 = vsel %vm1784, %v1960, 0
      %v1967 = vsel %vm1784, %v1962, 0
      %1969 = vmatpush.bf16.xpose.msra.mxu0 0
      %1970 = vmatpush.bf16.xpose.msra.mxu0 0
      %1971 = vmatpush.bf16.xpose.msra.mxu0 0
      %1972 = vmatpush.bf16.xpose.msra.mxu0 0
      %1973 = vmatpush.bf16.xpose.msra.mxu0 0
      %1974 = vmatpush.bf16.xpose.msra.mxu0 0
      %1975 = vmatpush.bf16.xpose.msra.mxu0 0
      %1976 = vmatpush.bf16.xpose.msra.mxu0 %v1967
      %1977 = vmatmul.bf16.gmra.mxu0 %v1964
      %v1978 = vpop.f32.mrf.mxu0
      %v1979 = vadd.f32 %v1774, %v1978
      %v1980 = vpop.f32.mrf.mxu0
      %v1981 = vadd.f32 %v1775, %v1980
      %1982 = vdwg.mxu0
      %v1983 = vsel %vm1805, %v1979, -inf
      %1984 = vmax.xlane.f32.xlu0 %v1983
      %v1985 = vpop.xlane.xlu0 %1984
      %v1986 = vsel %vm1805, %v1981, -inf
      %1987 = vmax.xlane.f32.xlu0 %v1986
      %v1988 = vpop.xlane.xlu0 %1987
      %v1989 = vsub.f32 %v1979, %v1985
      %v1990 = vsub.f32 %v1981, %v1988
      %v1991 = vmul.f32 %v1989, 1.442695
      %v1992 = vpow.pop %v1991
      %v1993 = vmul.f32 %v1990, 1.442695
      %v1994 = vpow.pop %v1993
      %v1995 = vsel %vm1805, %v1992, 0.0
      %1996 = vadd.xlane.f32.xlu0 %v1995
      %v1997 = vpop.xlane.xlu0 %1996
      %v1998 = vsel %vm1805, %v1994, 0.0
      %1999 = vadd.xlane.f32.xlu0 %v1998
      %v2000 = vpop.xlane.xlu0 %1999
      %v2001 = vrcp.pop %v1997
      %v2002 = vrcp.pop %v2000
      %v2003 = vmul.f32 %v1992, %v2001
      %v2004 = vmul.f32 %v1994, %v2002
      %v2005 = vpack.c.bf16 %v2004, %v2003
      %2006 = vrot.lane.b32.xlu0 %v1780, 48
      %v2007 = vpop.permute.xlu0 %2006
      %v2010 = vsel %vm1805, %v2005, 0
      %2012 = vmatpush.bf16.msra.mxu0 0
      %2013 = vmatpush.bf16.msra.mxu0 0
      %2014 = vmatpush.bf16.msra.mxu0 0
      %2015 = vmatpush.bf16.msra.mxu0 0
      %2016 = vmatpush.bf16.msra.mxu0 0
      %2017 = vmatpush.bf16.msra.mxu0 0
      %2018 = vmatpush.bf16.msra.mxu0 0
      %2019 = vmatpush.bf16.msra.mxu0 %v2007
      %2020 = vmatmul.bf16.gmra.mxu0 %v2010
      %v2021 = vpop.f32.mrf.mxu0
      %v2022 = vadd.f32 0.0, %v2021
      %v2023 = vpop.f32.mrf.mxu0
      %v2024 = vadd.f32 0.0, %v2023
      %2025 = vdwg.mxu0
      %v2026 = vpack.c.bf16 %v2024, %v2022
      %v2028 = vsel %vm1784, %v2026, 0
      %v2031 = vsel %vm1921, %v1778, 0
      %2033 = vmatpush.bf16.msra.mxu0 0
      %2034 = vmatpush.bf16.msra.mxu0 0
      %2035 = vmatpush.bf16.msra.mxu0 0
      %2036 = vmatpush.bf16.msra.mxu0 0
      %2037 = vmatpush.bf16.msra.mxu0 0
      %2038 = vmatpush.bf16.msra.mxu0 0
      %2039 = vmatpush.bf16.msra.mxu0 0
      %2040 = vmatpush.bf16.msra.mxu0 %v2031
      %2041 = vmatmul.bf16.gmra.mxu0 %v2028
      %v2042 = vpop.f32.mrf.mxu0
      %v2043 = vadd.f32 0.0, %v2042
      %v2044 = vpop.f32.mrf.mxu0
      %v2045 = vadd.f32 0.0, %v2044
      %2046 = vdwg.mxu0
      %v2047 = vadd.f32 %v1955, %v2043
      %v2048 = vadd.f32 %v1957, %v2045
      %2049 = vrot.lane.b32.xlu0 %v1780, 104
      %v2050 = vpop.permute.xlu0 %2049
      %2051 = vrot.lane.b32.xlu0 %v1780, 72
      %v2052 = vpop.permute.xlu0 %2051
      %v2054 = vsel %vm1784, %v2050, 0
      %v2057 = vsel %vm1784, %v2052, 0
      %2059 = vmatpush.bf16.xpose.msra.mxu0 0
      %2060 = vmatpush.bf16.xpose.msra.mxu0 0
      %2061 = vmatpush.bf16.xpose.msra.mxu0 0
      %2062 = vmatpush.bf16.xpose.msra.mxu0 0
      %2063 = vmatpush.bf16.xpose.msra.mxu0 0
      %2064 = vmatpush.bf16.xpose.msra.mxu0 0
      %2065 = vmatpush.bf16.xpose.msra.mxu0 0
      %2066 = vmatpush.bf16.xpose.msra.mxu0 %v2057
      %2067 = vmatmul.bf16.gmra.mxu0 %v2054
      %v2068 = vpop.f32.mrf.mxu0
      %v2069 = vadd.f32 %v1774, %v2068
      %v2070 = vpop.f32.mrf.mxu0
      %v2071 = vadd.f32 %v1775, %v2070
      %2072 = vdwg.mxu0
      %v2073 = vsel %vm1805, %v2069, -inf
      %2074 = vmax.xlane.f32.xlu0 %v2073
      %v2075 = vpop.xlane.xlu0 %2074
      %v2076 = vsel %vm1805, %v2071, -inf
      %2077 = vmax.xlane.f32.xlu0 %v2076
      %v2078 = vpop.xlane.xlu0 %2077
      %v2079 = vsub.f32 %v2069, %v2075
      %v2080 = vsub.f32 %v2071, %v2078
      %v2081 = vmul.f32 %v2079, 1.442695
      %v2082 = vpow.pop %v2081
      %v2083 = vmul.f32 %v2080, 1.442695
      %v2084 = vpow.pop %v2083
      %v2085 = vsel %vm1805, %v2082, 0.0
      %2086 = vadd.xlane.f32.xlu0 %v2085
      %v2087 = vpop.xlane.xlu0 %2086
      %v2088 = vsel %vm1805, %v2084, 0.0
      %2089 = vadd.xlane.f32.xlu0 %v2088
      %v2090 = vpop.xlane.xlu0 %2089
      %v2091 = vrcp.pop %v2087
      %v2092 = vrcp.pop %v2090
      %v2093 = vmul.f32 %v2082, %v2091
      %v2094 = vmul.f32 %v2084, %v2092
      %v2095 = vpack.c.bf16 %v2094, %v2093
      %2096 = vrot.lane.b32.xlu0 %v1780, 40
      %v2097 = vpop.permute.xlu0 %2096
      %v2100 = vsel %vm1805, %v2095, 0
      %2102 = vmatpush.bf16.msra.mxu0 0
      %2103 = vmatpush.bf16.msra.mxu0 0
      %2104 = vmatpush.bf16.msra.mxu0 0
      %2105 = vmatpush.bf16.msra.mxu0 0
      %2106 = vmatpush.bf16.msra.mxu0 0
      %2107 = vmatpush.bf16.msra.mxu0 0
      %2108 = vmatpush.bf16.msra.mxu0 0
      %2109 = vmatpush.bf16.msra.mxu0 %v2097
      %2110 = vmatmul.bf16.gmra.mxu0 %v2100
      %v2111 = vpop.f32.mrf.mxu0
      %v2112 = vadd.f32 0.0, %v2111
      %v2113 = vpop.f32.mrf.mxu0
      %v2114 = vadd.f32 0.0, %v2113
      %2115 = vdwg.mxu0
      %v2116 = vpack.c.bf16 %v2114, %v2112
      %v2118 = vsel %vm1784, %v2116, 0
      %v2121 = vsel %vm1921, %v1779, 0
      %2123 = vmatpush.bf16.msra.mxu0 0
      %2124 = vmatpush.bf16.msra.mxu0 0
      %2125 = vmatpush.bf16.msra.mxu0 0
      %2126 = vmatpush.bf16.msra.mxu0 0
      %2127 = vmatpush.bf16.msra.mxu0 0
      %2128 = vmatpush.bf16.msra.mxu0 0
      %2129 = vmatpush.bf16.msra.mxu0 0
      %2130 = vmatpush.bf16.msra.mxu0 %v2121
      %2131 = vmatmul.bf16.gmra.mxu0 %v2118
      %v2132 = vpop.f32.mrf.mxu0
      %v2133 = vadd.f32 0.0, %v2132
      %v2134 = vpop.f32.mrf.mxu0
      %v2135 = vadd.f32 0.0, %v2134
      %2136 = vdwg.mxu0
      %v2137 = vadd.f32 %v2047, %v2133
      %v2138 = vadd.f32 %v2048, %v2135
      %v2139 = vadd.f32 %v1650, %v2137
      %v2140 = vadd.f32 %v1651, %v2138
      %v2141 = vld [vmem:[%s1361] sm:$0x1]
      %v2143 = vperm.slane %v2141, 0
      %v2145 = vadd.f32 %v2139, %v2143
      %v2146 = vadd.f32 %v2140, %v2143
      %v2147 = vld [vmem:[%s1368] sm:$0x1]
      %v2148 = vld [vmem:[%s1375] sm:$0x1]
      %v2149 = vsel %vm1654, %v2145, 0.0
      %2150 = vadd.xlane.f32.xlu0 %v2149
      %v2151 = vpop.xlane.xlu0 %2150
      %v2152 = vsel %vm1654, %v2146, 0.0
      %2153 = vadd.xlane.f32.xlu0 %v2152
      %v2154 = vpop.xlane.xlu0 %2153
      %v2155 = vmul.f32 %v2151, %v1662
      %v2156 = vmul.f32 %v2154, %v1662
      %v2157 = vmul.f32 %v2145, %v2145
      %v2158 = vmul.f32 %v2146, %v2146
      %v2159 = vsel %vm1654, %v2157, 0.0
      %2160 = vadd.xlane.f32.xlu0 %v2159
      %v2161 = vpop.xlane.xlu0 %2160
      %v2162 = vsel %vm1654, %v2158, 0.0
      %2163 = vadd.xlane.f32.xlu0 %v2162
      %v2164 = vpop.xlane.xlu0 %2163
      %v2165 = vmul.f32 %v2161, %v1662
      %v2166 = vmul.f32 %v2164, %v1662
      %v2167 = vmul.f32 %v2155, %v2155
      %v2168 = vmul.f32 %v2156, %v2156
      %v2169 = vsub.f32 %v2165, %v2167
      %v2170 = vsub.f32 %v2166, %v2168
      %2172 = vset.pattern.permute.xlu0 0
      %2173 = vperm.xlu0 %2172, %v2155
      %v2174 = vpop.permute.xlu0 %2173
      %2177 = vset.pattern.permute.xlu0 0
      %2178 = vperm.xlu0 %2177, %v2156
      %v2179 = vpop.permute.xlu0 %2178
      %v2181 = vsub.f32 %v2145, %v2174
      %v2182 = vsub.f32 %v2146, %v2179
      %v2183 = vadd.f32 %v2169, 1e-05
      %v2184 = vadd.f32 %v2170, 1e-05
      %v2185 = vrsqrt.pop %v2183
      %v2186 = vmul.f32 %v2185, %v2183
      %v2187 = vmul.f32 %v2186, %v2185
      %v2188 = vmul.f32 0.5, %v2187
      %v2189 = vsub.f32 1.5, %v2188
      %v2190 = vmul.f32 %v2185, %v2189
      %vm2191 = vweird.f32 %v2183
      %vm2192 = vweird.f32 %v2185
      %vm2193 = vmor %vm2191, %vm2192
      %v2194 = vsel %vm2193, %v2185, %v2190
      %v2195 = vrsqrt.pop %v2184
      %v2196 = vmul.f32 %v2195, %v2184
      %v2197 = vmul.f32 %v2196, %v2195
      %v2198 = vmul.f32 0.5, %v2197
      %v2199 = vsub.f32 1.5, %v2198
      %v2200 = vmul.f32 %v2195, %v2199
      %vm2201 = vweird.f32 %v2184
      %vm2202 = vweird.f32 %v2195
      %vm2203 = vmor %vm2201, %vm2202
      %v2204 = vsel %vm2203, %v2195, %v2200
      %2206 = vset.pattern.permute.xlu0 0
      %2207 = vperm.xlu0 %2206, %v2194
      %v2208 = vpop.permute.xlu0 %2207
      %2211 = vset.pattern.permute.xlu0 0
      %2212 = vperm.xlu0 %2211, %v2204
      %v2213 = vpop.permute.xlu0 %2212
      %v2215 = vmul.f32 %v2181, %v2208
      %v2216 = vmul.f32 %v2182, %v2213
      %v2218 = vperm.slane %v2147, 0
      %v2220 = vmul.f32 %v2215, %v2218
      %v2221 = vmul.f32 %v2216, %v2218
      %v2223 = vperm.slane %v2148, 0
      %v2225 = vadd.f32 %v2220, %v2223
      %v2226 = vadd.f32 %v2221, %v2223
      %v2227 = vpack.c.bf16 %v2226, %v2225
      %v2228 = vld [vmem:[%s1384] sm:$0xf]
      %v2229 = vld [vmem:[%s1384 + $0x4] sm:$0xf]
      %v2230 = vld [vmem:[%s1384 + $0x8] sm:$0xf]
      %v2231 = vld [vmem:[%s1384 + $0xc] sm:$0xf]
      %v2232 = vld [vmem:[%s1391] sm:$0x1]
      %v2234 = vperm.slane %v2232, 0
      %v2240 = vunpack.c.l.b16 %v2228
      %v2241 = vunpack.c.l.b16 %v2229
      %v2242 = vunpack.c.l.b16 %v2230
      %v2243 = vunpack.c.l.b16 %v2231
      %v2244 = vpack.c.b16 %v2241, %v2240
      %v2245 = vpack.c.b16 %v2243, %v2242
      %v2249 = vsel %vm1654, %v2227, 0
      %2251 = vmatpush.bf16.msra.mxu0 0
      %2252 = vmatpush.bf16.msra.mxu0 0
      %2253 = vmatpush.bf16.msra.mxu0 0
      %2254 = vmatpush.bf16.msra.mxu0 0
      %2255 = vmatpush.bf16.msra.mxu0 0
      %2256 = vmatpush.bf16.msra.mxu0 0
      %2257 = vmatpush.bf16.msra.mxu0 %v2245
      %2258 = vmatpush.bf16.msra.mxu0 %v2244
      %2259 = vmatmul.bf16.gmra.mxu0 %v2249
      %v2260 = vpop.f32.mrf.mxu0
      %v2261 = vadd.f32 %v2234, %v2260
      %v2262 = vpop.f32.mrf.mxu0
      %v2263 = vadd.f32 %v2234, %v2262
      %2264 = vdwg.mxu0
      %v2265 = vmul.f32 %v2261, %v2261
      %v2266 = vmul.f32 %v2263, %v2263
      %v2267 = vmul.f32 %v2261, %v2265
      %v2268 = vmul.f32 %v2263, %v2266
      %v2269 = vmul.f32 %v2267, 0.044715
      %v2270 = vmul.f32 %v2268, 0.044715
      %v2271 = vadd.f32 %v2261, %v2269
      %v2272 = vadd.f32 %v2263, %v2270
      %v2273 = vmul.f32 %v2271, 0.7978846
      %v2274 = vmul.f32 %v2272, 0.7978846
      %v2275 = vtanh.pop %v2273
      %v2276 = vtanh.pop %v2274
      %v2277 = vadd.f32 %v2275, 1.0
      %v2278 = vadd.f32 %v2276, 1.0
      %v2279 = vmul.f32 %v2277, 0.5
      %v2280 = vmul.f32 %v2278, 0.5
      %v2281 = vmul.f32 %v2261, %v2279
      %v2282 = vmul.f32 %v2263, %v2280
      %v2283 = vpack.c.bf16 %v2282, %v2281
      %v2284 = vld [vmem:[%s1400] sm:$0xf]
      %v2285 = vld [vmem:[%s1400 + $0x4] sm:$0xf]
      %v2286 = vld [vmem:[%s1400 + $0x8] sm:$0xf]
      %v2287 = vld [vmem:[%s1400 + $0xc] sm:$0xf]
      %v2288 = vld [vmem:[%s1400 + $0x10] sm:$0xf]
      %v2289 = vld [vmem:[%s1400 + $0x14] sm:$0xf]
      %v2290 = vld [vmem:[%s1400 + $0x18] sm:$0xf]
      %v2291 = vld [vmem:[%s1400 + $0x1c] sm:$0xf]
      %v2292 = vld [vmem:[%s1407] sm:$0x1]
      %v2294 = vperm.slane %v2292, 0
      %v2304 = vunpack.c.l.b16 %v2284
      %v2305 = vunpack.c.l.b16 %v2285
      %v2306 = vunpack.c.l.b16 %v2286
      %v2307 = vunpack.c.l.b16 %v2287
      %v2308 = vunpack.c.l.b16 %v2288
      %v2309 = vunpack.c.l.b16 %v2289
      %v2310 = vunpack.c.l.b16 %v2290
      %v2311 = vunpack.c.l.b16 %v2291
      %v2312 = vpack.c.b16 %v2305, %v2304
      %v2313 = vpack.c.b16 %v2307, %v2306
      %v2314 = vpack.c.b16 %v2309, %v2308
      %v2315 = vpack.c.b16 %v2311, %v2310
      %vm2320 = vcmask 523264
      %v2322 = vsel %vm2320, %v2283, 0
      %2324 = vmatpush.bf16.msra.mxu0 0
      %2325 = vmatpush.bf16.msra.mxu0 0
      %2326 = vmatpush.bf16.msra.mxu0 0
      %2327 = vmatpush.bf16.msra.mxu0 0
      %2328 = vmatpush.bf16.msra.mxu0 %v2315
      %2329 = vmatpush.bf16.msra.mxu0 %v2314
      %2330 = vmatpush.bf16.msra.mxu0 %v2313
      %2331 = vmatpush.bf16.msra.mxu0 %v2312
      %2332 = vmatmul.bf16.gmra.mxu0 %v2322
      %v2333 = vpop.f32.mrf.mxu0
      %v2334 = vadd.f32 %v2294, %v2333
      %v2335 = vpop.f32.mrf.mxu0
      %v2336 = vadd.f32 %v2294, %v2335
      %2337 = vdwg.mxu0
      %v2338 = vadd.f32 %v2145, %v2334
      %v2339 = vadd.f32 %v2146, %v2336
      %2340 = vst.msk [vmem:[#allocation2] sm:$0xff] %vm1654, %v2338
      %2341 = vst.msk [vmem:[#allocation2 + $0x8] sm:$0xff] %vm1654, %v2339
      %p2342 = scmp.eq.s32.totalorder %s43, 1
      // Predicated region
      $region133: #{motion_transformer_forward.1} parent=127 // pred_check
        %p2343 = pneg %p2342
      $region134: #{motion_transformer_forward.1} parent=127 // pred_check_branch
        %2345 = sbr.rel (%p2343) target = $region136
      $region135: #{motion_transformer_forward.1} parent=127 // pred_region
        %v2346 = vld [vmem:[#allocation2] sm:$0xff]
        %v2347 = vld [vmem:[#allocation2 + $0x8] sm:$0xff]
        %v2348 = vld [vmem:[%s1412] sm:$0x1]
        %v2349 = vld [vmem:[%s1415] sm:$0x1]
        %v2350 = vsel %vm1654, %v2346, 0.0
        %2351 = vadd.xlane.f32.xlu0 %v2350
        %v2352 = vpop.xlane.xlu0 %2351
        %v2353 = vsel %vm1654, %v2347, 0.0
        %2354 = vadd.xlane.f32.xlu0 %v2353
        %v2355 = vpop.xlane.xlu0 %2354
        %v2356 = vmul.f32 %v2352, %v1662
        %v2357 = vmul.f32 %v2355, %v1662
        %v2358 = vmul.f32 %v2346, %v2346
        %v2359 = vmul.f32 %v2347, %v2347
        %v2360 = vsel %vm1654, %v2358, 0.0
        %2361 = vadd.xlane.f32.xlu0 %v2360
        %v2362 = vpop.xlane.xlu0 %2361
        %v2363 = vsel %vm1654, %v2359, 0.0
        %2364 = vadd.xlane.f32.xlu0 %v2363
        %v2365 = vpop.xlane.xlu0 %2364
        %v2366 = vmul.f32 %v2362, %v1662
        %v2367 = vmul.f32 %v2365, %v1662
        %v2368 = vmul.f32 %v2356, %v2356
        %v2369 = vmul.f32 %v2357, %v2357
        %v2370 = vsub.f32 %v2366, %v2368
        %v2371 = vsub.f32 %v2367, %v2369
        %2373 = vset.pattern.permute.xlu0 0
        %2374 = vperm.xlu0 %2373, %v2356
        %v2375 = vpop.permute.xlu0 %2374
        %2378 = vset.pattern.permute.xlu0 0
        %2379 = vperm.xlu0 %2378, %v2357
        %v2380 = vpop.permute.xlu0 %2379
        %v2382 = vsub.f32 %v2346, %v2375
        %v2383 = vsub.f32 %v2347, %v2380
        %v2384 = vadd.f32 %v2370, 1e-05
        %v2385 = vadd.f32 %v2371, 1e-05
        %v2386 = vrsqrt.pop %v2384
        %v2387 = vmul.f32 %v2386, %v2384
        %v2388 = vmul.f32 %v2387, %v2386
        %v2389 = vmul.f32 0.5, %v2388
        %v2390 = vsub.f32 1.5, %v2389
        %v2391 = vmul.f32 %v2386, %v2390
        %vm2392 = vweird.f32 %v2384
        %vm2393 = vweird.f32 %v2386
        %vm2394 = vmor %vm2392, %vm2393
        %v2395 = vsel %vm2394, %v2386, %v2391
        %v2396 = vrsqrt.pop %v2385
        %v2397 = vmul.f32 %v2396, %v2385
        %v2398 = vmul.f32 %v2397, %v2396
        %v2399 = vmul.f32 0.5, %v2398
        %v2400 = vsub.f32 1.5, %v2399
        %v2401 = vmul.f32 %v2396, %v2400
        %vm2402 = vweird.f32 %v2385
        %vm2403 = vweird.f32 %v2396
        %vm2404 = vmor %vm2402, %vm2403
        %v2405 = vsel %vm2404, %v2396, %v2401
        %2407 = vset.pattern.permute.xlu0 0
        %2408 = vperm.xlu0 %2407, %v2395
        %v2409 = vpop.permute.xlu0 %2408
        %2412 = vset.pattern.permute.xlu0 0
        %2413 = vperm.xlu0 %2412, %v2405
        %v2414 = vpop.permute.xlu0 %2413
        %v2416 = vmul.f32 %v2382, %v2409
        %v2417 = vmul.f32 %v2383, %v2414
        %v2419 = vperm.slane %v2348, 0
        %v2421 = vmul.f32 %v2416, %v2419
        %v2422 = vmul.f32 %v2417, %v2419
        %v2424 = vperm.slane %v2349, 0
        %v2426 = vadd.f32 %v2421, %v2424
        %v2427 = vadd.f32 %v2422, %v2424
        %v2428 = vpack.c.bf16 %v2427, %v2426
        %v2429 = vld [vmem:[%s1420] sm:$0xf]
        %v2430 = vld [vmem:[%s1420 + $0x4] sm:$0xf]
        %v2431 = vld [vmem:[%s1420 + $0x8] sm:$0xf]
        %v2432 = vld [vmem:[%s1420 + $0xc] sm:$0xf]
        %v2433 = vld [vmem:[%s1423] sm:$0x1]
        %v2435 = vperm.slane %v2433, 0
        %v2441 = vunpack.c.l.b16 %v2429
        %v2442 = vunpack.c.l.b16 %v2430
        %v2443 = vunpack.c.l.b16 %v2431
        %v2444 = vunpack.c.l.b16 %v2432
        %v2445 = vpack.c.b16 %v2442, %v2441
        %v2446 = vpack.c.b16 %v2444, %v2443
        %v2450 = vsel %vm1654, %v2428, 0
        %2452 = vmatpush.bf16.msra.mxu0 0
        %2453 = vmatpush.bf16.msra.mxu0 0
        %2454 = vmatpush.bf16.msra.mxu0 0
        %2455 = vmatpush.bf16.msra.mxu0 0
        %2456 = vmatpush.bf16.msra.mxu0 0
        %2457 = vmatpush.bf16.msra.mxu0 0
        %2458 = vmatpush.bf16.msra.mxu0 %v2446
        %2459 = vmatpush.bf16.msra.mxu0 %v2445
        %2460 = vmatmul.bf16.gmra.mxu0 %v2450
        %v2461 = vpop.f32.mrf.mxu0
        %v2462 = vadd.f32 %v2435, %v2461
        %v2463 = vpop.f32.mrf.mxu0
        %v2464 = vadd.f32 %v2435, %v2463
        %2465 = vdwg.mxu0
        %vm2466 = vcmask 195584
        %2467 = vst.msk [vmem:[%s1428] sm:$0xff] %vm2466, %v2462
        %2468 = vst.msk [vmem:[%s1428 + $0x8] sm:$0xff] %vm2466, %v2464
      $region136: #{motion_transformer_forward.1} parent=127 // pred_fallthru
        _
      %p2469 = scmp.lt.s32.totalorder %s42, 1
      %s2470 = scalar_select %p2469, %s42, 1
      %s2471 = smul.addr %s2470, 2
      %s2472 = smul.addr %s2471, 8
      %s2473 = scalar_lea.vmem %s27, %s2472
      // Predicated region
      $region137: #{motion_transformer_forward.1} parent=127 // pred_check
        %p2474 = pneg %p818
      $region138: #{motion_transformer_forward.1} parent=127 // pred_check_branch
        %2476 = sbr.rel (%p2474) target = $region140
      $region139: #{motion_transformer_forward.1} parent=127 // pred_region
        _
      $region140: #{motion_transformer_forward.1} parent=127 // pred_fallthru
        _
    $region128: #{motion_transformer_forward.1} parent=5 // pred_fallthru
      _
    %p2477 = scmp.le.s32.totalorder 2, %s33
    // Predicated region
    $region141: #{motion_transformer_forward.1} parent=5 // pred_check
      %p2478 = pneg %p2477
    $region142: #{motion_transformer_forward.1} parent=5 // pred_check_branch
      %2480 = sbr.rel (%p2478) target = $region144
    $region143: #{motion_transformer_forward.1} parent=5 // pred_region
      %s2481 = ssub.s32 %s33, 2
      // Predicated region
      $region145: #{motion_transformer_forward.1} parent=143 // pred_check
        %p2482 = pneg %p824
      $region146: #{motion_transformer_forward.1} parent=143 // pred_check_branch
        %2484 = sbr.rel (%p2482) target = $region148
      $region147: #{motion_transformer_forward.1} parent=143 // pred_region
        %p2485 = scmp.lt.s32.totalorder %s44, 1
        %s2486 = scalar_select %p2485, %s44, 1
        %s2487 = smul.addr %s2486, 2
        %s2488 = smul.addr %s2487, 8
        %s2489 = scalar_lea.vmem %s27, %s2488
      $region148: #{motion_transformer_forward.1} parent=143 // pred_fallthru
        _
    $region144: #{motion_transformer_forward.1} parent=5 // pred_fallthru
      _
  $region6: #{motion_transformer_forward.1} parent=0 // loop_footer
    %s37 = sadd.s32 1, %s33
  $region7: #{motion_transformer_forward.1} parent=0 // loop_footer_branch
    %32 = sbr.rel target = $region3
  $region8: #{motion_transformer_forward.1} parent=0 // loop_exit
    _

</llo_original>
